<compile_context>
chip_gen: v6e
topology: v6e:2x2x1
jax: 0.10.0
libtpu: 0.0.40
codegen_flags: <defaults>
</compile_context>

<pallas_src>
import math

import jax
import jax.numpy as jnp
from jax.experimental import pallas as pl
from jax.experimental.pallas import tpu as pltpu


# ---------------------------------------------------------------------------
# Fused kernel: conv_first(1x1)+BN -> attention fuse -> conv_last(3x3)+BN
# One grid step = one (batch, row-tile).  Halo rows are recomputed from the two
# extra single-row input blocks; the coarse y block is nearest-upsampled in-kernel.
# ---------------------------------------------------------------------------
def _abf_fused_kernel(rows_ref,                       # scalar-prefetch table (unused in body)
                      x_ref, xt_ref, xb_ref,          # fine x: main rows (flat), top/bottom halo row
                      y_ref, yt_ref, yb_ref,          # coarse y: main rows, top/bottom halo row
                      w1_ref, s1_ref, b1_ref,
                      wax_ref, way_ref, ba_ref,
                      w3_ref, s2_ref, b2_ref,
                      yo_ref, xf_ref,
                      yup_ref, b_ref):
    del rows_ref
    f32 = jnp.float32
    t = pl.program_id(1)
    nT = pl.num_programs(1)

    TH, W, Cmid = xf_ref.shape[1], xf_ref.shape[2], xf_ref.shape[3]
    Cout = yo_ref.shape[3]
    THc, Wy = y_ref.shape[1], y_ref.shape[2]
    r = TH // THc                      # row upsample factor
    s = W // Wy                        # col upsample factor
    THp = TH + 2                       # tile + 1-row halo each side
    Wp = b_ref.shape[1]                # 16-aligned padded width (>= W + 1) carried through the conv

    w1 = w1_ref[...]
    s1, b1 = s1_ref[...], b1_ref[...]
    wax0, wax1 = wax_ref[0:1, :], wax_ref[1:2, :]
    way0, way1 = way_ref[0:1, :], way_ref[1:2, :]
    ba0, ba1 = ba_ref[:, 0:1], ba_ref[:, 1:2]
    s2, b2 = s2_ref[...], b2_ref[...]

    # ---- nearest upsample of coarse y (rows x r, cols x s) + halo rows, all in VMEM ------
    ym = y_ref[0]                                                   # (THc, Wy, Cmid)
    if r > 1:
        # row replication: leading-dim broadcast + merge (layout-free)
        ym = jnp.broadcast_to(ym[:, None], (THc, r, Wy, Cmid)).reshape(TH, Wy, Cmid)
    yall = jnp.concatenate([yt_ref[0], ym, yb_ref[0]], axis=0)      # (THp, Wy, Cmid)
    if s > 1:
        # column replication: Wy small sublane broadcasts into the scratch (elementary ops only)
        for j in range(Wy):
            yup_ref[:, j * s:(j + 1) * s, :] = jnp.broadcast_to(
                yall[:, j:j + 1, :], (THp, s, Cmid))
    else:
        yup_ref[...] = yall
    y_main = yup_ref[1:TH + 1]                                      # (TH, W, Cmid)
    y_top = yup_ref[0]                                              # (W, Cmid)
    y_bot = yup_ref[THp - 1]                                        # (W, Cmid)

    # ---- stage 1: conv_first (1x1, no bias) + folded BN, then attention fusion -----------
    def conv1_bn(v):                                                # (R, Cin) -> (R, Cmid) f32
        return jnp.dot(v, w1, preferred_element_type=f32) * s1 + b1

    def attn_fuse(xm, yv):
        # 2-wide attention stays off the MXU: VPU broadcast-mul + XLU lane reduce
        a0 = (jnp.sum(xm * wax0, axis=-1, keepdims=True)
              + jnp.sum(yv * way0, axis=-1, keepdims=True) + ba0)
        a1 = (jnp.sum(xm * wax1, axis=-1, keepdims=True)
              + jnp.sum(yv * way1, axis=-1, keepdims=True) + ba1)
        return xm * jax.nn.sigmoid(a0) + yv * jax.nn.sigmoid(a1)

    # main rows
    xm2 = conv1_bn(x_ref[0])                                        # (TH*W, Cmid)
    xm3 = xm2.reshape(TH, W, Cmid)                                  # layout-free when W % 8 == 0
    xf3 = attn_fuse(xm3, y_main)                                    # (TH, W, Cmid) f32
    xf_ref[0] = xf3.astype(xf_ref.dtype)

    # halo rows (recomputed; zeroed at the true image boundary = the conv's zero padding)
    xf_t = attn_fuse(conv1_bn(xt_ref[0, 0]), y_top)                 # (W, Cmid)
    xf_b = attn_fuse(conv1_bn(xb_ref[0, 0]), y_bot)
    xf_t = jnp.where(t == 0, 0.0, xf_t)
    xf_b = jnp.where(t == nT - 1, 0.0, xf_b)

    # ---- assemble the zero-padded xf tile for the 3x3 conv --------------------------------
    cdt = b_ref.dtype
    b_ref[:, W:, :] = jnp.zeros((THp, Wp - W, Cmid), cdt)           # right zero-pad columns
    b_ref[0, :W, :] = xf_t.astype(cdt)
    b_ref[1:TH + 1, :W, :] = xf3.astype(cdt)
    b_ref[THp - 1, :W, :] = xf_b.astype(cdt)

    # ---- conv_last (3x3, pad 1, no bias) + folded BN --------------------------------------
    # One matmul per kh with RHS (Cmid, 3*Cout); kw taps are re-aligned on the narrow output
    # side with pltpu.roll over the flattened padded rows (wrap-around lands on the zero pad
    # columns / cropped columns, so it is exact).
    n_rows = TH * Wp
    acc = jnp.zeros((n_rows, Cout), f32)
    for kh in range(3):
        lhs = b_ref[kh:kh + TH].reshape(n_rows, Cmid)               # layout-free (Wp % 16 == 0)
        pk = jnp.dot(lhs, w3_ref[kh], preferred_element_type=f32)   # (n_rows, 3*Cout)
        for kw in range(3):
            tap = pk[:, kw * Cout:(kw + 1) * Cout]
            if kw != 1:
                tap = pltpu.roll(tap, (1 - kw) % n_rows, axis=0)
            acc = acc + tap
    out = acc.reshape(TH, Wp, Cout)[:, :W, :]                       # crop the padded width
    yo_ref[0] = (out * s2 + b2).astype(yo_ref.dtype)


# ---------------------------------------------------------------------------
# Tile-height selection from a VMEM budget (review: re-derive TH, don't fix 32)
# ---------------------------------------------------------------------------
def _choose_tile_h(H, W, Wy, r, Cin, Cmid, Cout, isz, tile_h, budget_bytes):
    sub = 8 if isz >= 4 else 16        # sublane quantum of the streaming dtype

    def valid(th):
        if H % th or th % r:
            return False
        if th != H and (th * W) % sub:
            return False
        return True

    wp = ((W + 1 + 15) // 16) * 16

    def vmem_bytes(th):
        thp, thc = th + 2, th // r
        blk_in = (th * W * Cin + 2 * W * Cin + thc * Wy * Cmid + 2 * Wy * Cmid) * isz
        blk_out = th * W * (Cout + Cmid) * 4
        weights = (Cin * Cmid + 9 * Cmid * Cout) * isz
        scratch = (thp * W * Cmid + thp * wp * Cmid) * isz
        live = (2 * th * W * Cmid + th * wp * (3 * Cout + Cout)) * 4
        return 2 * (blk_in + blk_out) + weights + scratch + live

    cands = [th for th in range(1, H + 1) if valid(th)]
    if tile_h is not None:
        capped = [th for th in cands if th <= tile_h]
        cands = capped or cands[:1]
    fitting = [th for th in cands if vmem_bytes(th) <= budget_bytes]
    return max(fitting) if fitting else min(cands)


# ---------------------------------------------------------------------------
# Wrapper (NCHW<->NHWC glue; no activation gathers / copies in HBM)
# ---------------------------------------------------------------------------
def abf_forward_pallas(x_nchw, y_nchw, params, shape, *, tile_h=None,
                       compute_dtype=jnp.float32, vmem_budget_bytes=24 * 1024 * 1024):
    N, Cin, H, W = x_nchw.shape
    Cmid = params["w1"].shape[1]
    Cout = params["w3"].shape[-1]
    _, _, Hy, Wy = y_nchw.shape
    assert tuple(shape) == (H, W)
    # TODO(synk): only integer nearest-upsample factors are supported in-kernel.
    assert H % Hy == 0 and W % Wy == 0, "nearest resize requires integer upsample factors"
    r, s = H // Hy, W // Wy

    cdt = jnp.dtype(compute_dtype)
    isz = cdt.itemsize
    out_dt = cdt if isz == 2 else jnp.float32

    TH = _choose_tile_h(H, W, Wy, r, Cin, Cmid, Cout, isz, tile_h, vmem_budget_bytes)
    nT = H // TH
    THc = TH // r
    THp = TH + 2
    Wp = ((W + 1 + 15) // 16) * 16     # padded conv width: >= W+1 zero column, 16-aligned

    # NCHW -> NHWC (channels on the lane axis); flat-spatial view for the main x blocks.
    # TODO(synk): keep the surrounding pipeline NHWC to drop these transposes entirely.
    x_nhwc = jnp.transpose(x_nchw, (0, 2, 3, 1)).astype(cdt)
    x_flat = x_nhwc.reshape(N, H * W, Cin)
    y_nhwc = jnp.transpose(y_nchw, (0, 2, 3, 1)).astype(cdt)        # stays at coarse (Hy, Wy)

    w1 = params["w1"].astype(cdt)
    # conv_last weight regrouped to (kh, Cmid, kw*Cout) so each kh tap is one wide matmul RHS
    w3r = jnp.transpose(params["w3"], (0, 2, 1, 3)).reshape(3, Cmid, 3 * Cout).astype(cdt)

    # clamped halo row indices per tile (scalar-prefetched; boundary rows are zeroed in-kernel)
    ts = jnp.arange(nT, dtype=jnp.int32)
    rows_tbl = jnp.stack([
        jnp.maximum(ts * TH - 1, 0),           # x halo row above the tile
        jnp.minimum((ts + 1) * TH, H - 1),     # x halo row below the tile
        jnp.maximum(ts * THc - 1, 0),          # coarse y halo row above
        jnp.minimum((ts + 1) * THc, Hy - 1),   # coarse y halo row below
    ], axis=1)

    grid_spec = pltpu.PrefetchScalarGridSpec(
        num_scalar_prefetch=1,
        grid=(N, nT),
        in_specs=[
            pl.BlockSpec((1, TH * W, Cin), lambda n, t, tbl: (n, t, 0)),
            pl.BlockSpec((1, 1, W, Cin), lambda n, t, tbl: (n, tbl[t, 0], 0, 0)),
            pl.BlockSpec((1, 1, W, Cin), lambda n, t, tbl: (n, tbl[t, 1], 0, 0)),
            pl.BlockSpec((1, THc, Wy, Cmid), lambda n, t, tbl: (n, t, 0, 0)),
            pl.BlockSpec((1, 1, Wy, Cmid), lambda n, t, tbl: (n, tbl[t, 2], 0, 0)),
            pl.BlockSpec((1, 1, Wy, Cmid), lambda n, t, tbl: (n, tbl[t, 3], 0, 0)),
            pl.BlockSpec((Cin, Cmid), lambda n, t, tbl: (0, 0)),              # w1
            pl.BlockSpec((1, Cmid), lambda n, t, tbl: (0, 0)),                # s1
            pl.BlockSpec((1, Cmid), lambda n, t, tbl: (0, 0)),                # b1
            pl.BlockSpec((2, Cmid), lambda n, t, tbl: (0, 0)),                # waxT
            pl.BlockSpec((2, Cmid), lambda n, t, tbl: (0, 0)),                # wayT
            pl.BlockSpec((1, 2), lambda n, t, tbl: (0, 0)),                   # ba
            pl.BlockSpec((3, Cmid, 3 * Cout), lambda n, t, tbl: (0, 0, 0)),   # w3r
            pl.BlockSpec((1, Cout), lambda n, t, tbl: (0, 0)),                # s2
            pl.BlockSpec((1, Cout), lambda n, t, tbl: (0, 0)),                # b2
        ],
        out_specs=(
            pl.BlockSpec((1, TH, W, Cout), lambda n, t, tbl: (n, t, 0, 0)),
            pl.BlockSpec((1, TH, W, Cmid), lambda n, t, tbl: (n, t, 0, 0)),
        ),
        scratch_shapes=[
            pltpu.VMEM((THp, W, Cmid), cdt),        # upsampled y (main + halo rows)
            pltpu.VMEM((THp, Wp, Cmid), cdt),       # zero-padded xf tile for the 3x3 conv
        ],
    )

    yo, xf = pl.pallas_call(
        _abf_fused_kernel,
        out_shape=(jax.ShapeDtypeStruct((N, H, W, Cout), out_dt),
                   jax.ShapeDtypeStruct((N, H, W, Cmid), out_dt)),
        grid_spec=grid_spec,
        compiler_params=pltpu.CompilerParams(
            dimension_semantics=("parallel", "parallel"),
            # well under v7x's 64 MiB physical VMEM; above v5e/v6e's scoped defaults
            vmem_limit_bytes=44 * 1024 * 1024),
    )(rows_tbl, x_flat, x_nhwc, x_nhwc, y_nhwc, y_nhwc, y_nhwc,
      w1, params["s1"], params["b1"], params["waxT"], params["wayT"], params["ba"],
      w3r, params["s2"], params["b2"])

    # back to NCHW to match the PyTorch module's return convention: (y, x)
    return jnp.transpose(yo, (0, 3, 1, 2)), jnp.transpose(xf, (0, 3, 1, 2))


# ---------------------------------------------------------------------------
# Pure-JAX reference (NHWC) for correctness checking
# ---------------------------------------------------------------------------
def nearest_resize_nhwc(y, H, W):
    N, Hy, Wy, C = y.shape
    hi = (jnp.arange(H) * Hy) // H
    wi = (jnp.arange(W) * Wy) // W
    return y[:, hi][:, :, wi]


def abf_reference(x_nchw, y_nchw, params, shape):
    H, W = shape
    hp = jax.lax.Precision.HIGHEST
    x = jnp.transpose(x_nchw, (0, 2, 3, 1)).astype(jnp.float32)
    y = jnp.transpose(y_nchw, (0, 2, 3, 1)).astype(jnp.float32)
    yi = nearest_resize_nhwc(y, H, W)

    xm = jnp.einsum("nhwc,cd->nhwd", x, params["w1"], precision=hp)
    xm = xm * params["s1"][0] + params["b1"][0]
    za = (jnp.einsum("nhwc,cd->nhwd", xm, params["waxT"].T, precision=hp)
          + jnp.einsum("nhwc,cd->nhwd", yi, params["wayT"].T, precision=hp)
          + params["ba"])
    z = jax.nn.sigmoid(za)
    xf = xm * z[..., 0:1] + yi * z[..., 1:2]

    xpad = jnp.pad(xf, ((0, 0), (1, 1), (1, 1), (0, 0)))
    Cout = params["w3"].shape[-1]
    yo = jnp.zeros(xf.shape[:3] + (Cout,), jnp.float32)
    for kh in range(3):
        for kw in range(3):
            yo = yo + jnp.einsum("nhwc,cd->nhwd",
                                 xpad[:, kh:kh + H, kw:kw + W, :],
                                 params["w3"][kh, kw], precision=hp)
    yo = yo * params["s2"][0] + params["b2"][0]
    return jnp.transpose(yo, (0, 3, 1, 2)), jnp.transpose(xf, (0, 3, 1, 2))


# ---------------------------------------------------------------------------
# Deterministic synthetic parameters (shapes implied by ABF.__init__)
# ---------------------------------------------------------------------------
def make_params(key, Cin, Cmid, Cout):
    ks = jax.random.split(key, 12)

    def kaiming_uniform(k, shape, fan_in, a=1.0):
        bound = math.sqrt(6.0 / ((1.0 + a * a) * fan_in))
        return jax.random.uniform(k, shape, jnp.float32, -bound, bound)

    # conv_first: torch weight (Cmid, Cin, 1, 1) -> here (Cin, Cmid)
    w1 = kaiming_uniform(ks[0], (Cin, Cmid), fan_in=Cin, a=1.0)
    # conv_last: torch weight (Cout, Cmid, 3, 3) -> here (3, 3, Cmid, Cout)
    w3 = kaiming_uniform(ks[1], (3, 3, Cmid, Cout), fan_in=Cmid * 9, a=1.0)
    # att_conv: torch weight (2, 2*Cmid, 1, 1) + bias (2,)
    ab = 1.0 / math.sqrt(2 * Cmid)
    wa = jax.random.uniform(ks[2], (2 * Cmid, 2), jnp.float32, -ab, ab)
    ba = jax.random.uniform(ks[3], (1, 2), jnp.float32, -ab, ab)

    # BatchNorm (eval-mode) synthetic running stats, folded to per-channel affine
    def bn_fold(kg, kb, km, kv, C):
        g = jax.random.uniform(kg, (C,), jnp.float32, 0.8, 1.2)
        b = jax.random.uniform(kb, (C,), jnp.float32, -0.1, 0.1)
        m = jax.random.uniform(km, (C,), jnp.float32, -0.1, 0.1)
        v = jax.random.uniform(kv, (C,), jnp.float32, 0.5, 1.5)
        sc = g / jnp.sqrt(v + 1e-5)
        return sc.reshape(1, C), (b - m * sc).reshape(1, C)

    s1, b1 = bn_fold(ks[4], ks[5], ks[6], ks[7], Cmid)
    s2, b2 = bn_fold(ks[8], ks[9], ks[10], ks[11], Cout)

    return dict(w1=w1, s1=s1, b1=b1,
                waxT=jnp.transpose(wa[:Cmid]),    # (2, Cmid)
                wayT=jnp.transpose(wa[Cmid:]),    # (2, Cmid)
                ba=ba,                             # (1, 2)
                w3=w3, s2=s2, b2=b2)


if __name__ == "__main__":
    N, Cin, Cmid, Cout = 2, 4, 16, 8
    H = W = 16
    Hy = Wy = 8   # y comes at a coarser resolution and is nearest-upsampled to (H, W)

    key = jax.random.PRNGKey(0)
    kx, ky, kp = jax.random.split(key, 3)
    x = jax.random.normal(kx, (N, Cin, H, W), jnp.float32)      # NCHW like PyTorch
    y = jax.random.normal(ky, (N, Cmid, Hy, Wy), jnp.float32)   # NCHW like PyTorch
    params = make_params(kp, Cin, Cmid, Cout)

    y_ref, x_ref = abf_reference(x, y, params, (H, W))

    # f32 path (tile_h=8 -> 2 row-tiles so the interior-halo path is exercised)
    run_f32 = jax.jit(lambda a, b: abf_forward_pallas(a, b, params, (H, W), tile_h=8))
    y_out, x_out = run_f32(x, y)
    jax.block_until_ready((y_out, x_out))
    ok_y = bool(jnp.allclose(y_out, y_ref, atol=2e-3, rtol=2e-3))
    ok_x = bool(jnp.allclose(x_out, x_ref, atol=2e-3, rtol=2e-3))
    if not (ok_y and ok_x):
        raise AssertionError(
            f"f32 mismatch: y_max_err={float(jnp.max(jnp.abs(y_out - y_ref)))}, "
            f"x_max_err={float(jnp.max(jnp.abs(x_out - x_ref)))}")

    # bf16-streaming path (halves HBM traffic; checked loosely against the f32 reference)
    run_bf16 = jax.jit(lambda a, b: abf_forward_pallas(
        a, b, params, (H, W), tile_h=8, compute_dtype=jnp.bfloat16))
    y_bf, x_bf = run_bf16(x, y)
    jax.block_until_ready((y_bf, x_bf))
    ok_yb = bool(jnp.allclose(y_bf.astype(jnp.float32), y_ref, atol=3e-1, rtol=1e-1))
    ok_xb = bool(jnp.allclose(x_bf.astype(jnp.float32), x_ref, atol=3e-1, rtol=1e-1))
    if not (ok_yb and ok_xb):
        raise AssertionError(
            f"bf16 mismatch: y_max_err={float(jnp.max(jnp.abs(y_bf.astype(jnp.float32) - y_ref)))}, "
            f"x_max_err={float(jnp.max(jnp.abs(x_bf.astype(jnp.float32) - x_ref)))}")

    print("KERNEL_OK")
</pallas_src>

<mosaic_0001>
module attributes {stable_mosaic.version = 11 : i64} {
  func.func @_abf_fused_kernel(%arg0: i32, %arg1: i32, %arg2: memref<2x4xi32, #tpu.memory_space<smem>>, %arg3: memref<1x128x4xf32, #tpu.memory_space<vmem>>, %arg4: memref<1x1x16x4xf32, #tpu.memory_space<vmem>>, %arg5: memref<1x1x16x4xf32, #tpu.memory_space<vmem>>, %arg6: memref<1x4x8x16xf32, #tpu.memory_space<vmem>>, %arg7: memref<1x1x8x16xf32, #tpu.memory_space<vmem>>, %arg8: memref<1x1x8x16xf32, #tpu.memory_space<vmem>>, %arg9: memref<4x16xf32, #tpu.memory_space<vmem>>, %arg10: memref<1x16xf32, #tpu.memory_space<vmem>>, %arg11: memref<1x16xf32, #tpu.memory_space<vmem>>, %arg12: memref<2x16xf32, #tpu.memory_space<vmem>>, %arg13: memref<2x16xf32, #tpu.memory_space<vmem>>, %arg14: memref<1x2xf32, #tpu.memory_space<vmem>>, %arg15: memref<3x16x24xf32, #tpu.memory_space<vmem>>, %arg16: memref<1x8xf32, #tpu.memory_space<vmem>>, %arg17: memref<1x8xf32, #tpu.memory_space<vmem>>, %arg18: memref<1x8x16x8xf32, #tpu.memory_space<vmem>>, %arg19: memref<1x8x16x16xf32, #tpu.memory_space<vmem>>, %arg20: memref<10x16x16xf32, #tpu.memory_space<vmem>>, %arg21: memref<10x32x16xf32, #tpu.memory_space<vmem>>) attributes {dimension_semantics = [#tpu.dimension_semantics<parallel>, #tpu.dimension_semantics<parallel>], iteration_bounds = array<i64: 2, 2>, scalar_prefetch = 1 : i64, scratch_operands = 2 : i64, tpu.core_type = #tpu.core_type<tc>, window_params = [{transform_indices = @transform_0, window_bounds = array<i64: 1, 128, 4>}, {transform_indices = @transform_1, window_bounds = array<i64: 1, 1, 16, 4>}, {transform_indices = @transform_2, window_bounds = array<i64: 1, 1, 16, 4>}, {transform_indices = @transform_3, window_bounds = array<i64: 1, 4, 8, 16>}, {transform_indices = @transform_4, window_bounds = array<i64: 1, 1, 8, 16>}, {transform_indices = @transform_5, window_bounds = array<i64: 1, 1, 8, 16>}, {pipeline_mode = #tpu.pipeline_mode<synchronous>, transform_indices = @transform_6, window_bounds = array<i64: 4, 16>}, {pipeline_mode = #tpu.pipeline_mode<synchronous>, transform_indices = @transform_7, window_bounds = array<i64: 1, 16>}, {pipeline_mode = #tpu.pipeline_mode<synchronous>, transform_indices = @transform_8, window_bounds = array<i64: 1, 16>}, {pipeline_mode = #tpu.pipeline_mode<synchronous>, transform_indices = @transform_9, window_bounds = array<i64: 2, 16>}, {pipeline_mode = #tpu.pipeline_mode<synchronous>, transform_indices = @transform_10, window_bounds = array<i64: 2, 16>}, {pipeline_mode = #tpu.pipeline_mode<synchronous>, transform_indices = @transform_11, window_bounds = array<i64: 1, 2>}, {pipeline_mode = #tpu.pipeline_mode<synchronous>, transform_indices = @transform_12, window_bounds = array<i64: 3, 16, 24>}, {pipeline_mode = #tpu.pipeline_mode<synchronous>, transform_indices = @transform_13, window_bounds = array<i64: 1, 8>}, {pipeline_mode = #tpu.pipeline_mode<synchronous>, transform_indices = @transform_14, window_bounds = array<i64: 1, 8>}, {transform_indices = @transform_15, window_bounds = array<i64: 1, 8, 16, 8>}, {transform_indices = @transform_16, window_bounds = array<i64: 1, 8, 16, 16>}]} {
    %c0 = arith.constant 0 : index
    %c0_0 = arith.constant 0 : index
    %0 = vector.load %arg9[%c0, %c0_0] : memref<4x16xf32, #tpu.memory_space<vmem>>, vector<4x16xf32>
    %c0_1 = arith.constant 0 : index
    %c0_2 = arith.constant 0 : index
    %1 = vector.load %arg10[%c0_1, %c0_2] : memref<1x16xf32, #tpu.memory_space<vmem>>, vector<1x16xf32>
    %c0_3 = arith.constant 0 : index
    %c0_4 = arith.constant 0 : index
    %2 = vector.load %arg11[%c0_3, %c0_4] : memref<1x16xf32, #tpu.memory_space<vmem>>, vector<1x16xf32>
    %c0_5 = arith.constant 0 : index
    %c0_6 = arith.constant 0 : index
    %3 = vector.load %arg12[%c0_5, %c0_6] : memref<2x16xf32, #tpu.memory_space<vmem>>, vector<1x16xf32>
    %c1 = arith.constant 1 : index
    %c0_7 = arith.constant 0 : index
    %4 = vector.load %arg12[%c1, %c0_7] : memref<2x16xf32, #tpu.memory_space<vmem>>, vector<1x16xf32>
    %c0_8 = arith.constant 0 : index
    %c0_9 = arith.constant 0 : index
    %5 = vector.load %arg13[%c0_8, %c0_9] : memref<2x16xf32, #tpu.memory_space<vmem>>, vector<1x16xf32>
    %c1_10 = arith.constant 1 : index
    %c0_11 = arith.constant 0 : index
    %6 = vector.load %arg13[%c1_10, %c0_11] : memref<2x16xf32, #tpu.memory_space<vmem>>, vector<1x16xf32>
    %c0_12 = arith.constant 0 : index
    %c0_13 = arith.constant 0 : index
    %7 = vector.load %arg14[%c0_12, %c0_13] : memref<1x2xf32, #tpu.memory_space<vmem>>, vector<1x1xf32>
    %c0_14 = arith.constant 0 : index
    %c1_15 = arith.constant 1 : index
    %8 = vector.load %arg14[%c0_14, %c1_15] : memref<1x2xf32, #tpu.memory_space<vmem>>, vector<1x1xf32>
    %c0_16 = arith.constant 0 : index
    %c0_17 = arith.constant 0 : index
    %9 = vector.load %arg16[%c0_16, %c0_17] : memref<1x8xf32, #tpu.memory_space<vmem>>, vector<1x8xf32>
    %c0_18 = arith.constant 0 : index
    %c0_19 = arith.constant 0 : index
    %10 = vector.load %arg17[%c0_18, %c0_19] : memref<1x8xf32, #tpu.memory_space<vmem>>, vector<1x8xf32>
    %c0_20 = arith.constant 0 : index
    %c0_21 = arith.constant 0 : index
    %c0_22 = arith.constant 0 : index
    %c0_23 = arith.constant 0 : index
    %11 = vector.load %arg6[%c0_20, %c0_21, %c0_22, %c0_23] : memref<1x4x8x16xf32, #tpu.memory_space<vmem>>, vector<1x4x8x16xf32>
    %12 = vector.shape_cast %11 : vector<1x4x8x16xf32> to vector<4x8x16xf32>
    %13 = vector.shape_cast %12 : vector<4x8x16xf32> to vector<4x1x8x16xf32>
    %14 = vector.shape_cast %13 : vector<4x1x8x16xf32> to vector<4x1x8x16xf32>
    %15 = vector.broadcast %14 : vector<4x1x8x16xf32> to vector<4x2x8x16xf32>
    %16 = vector.shape_cast %15 : vector<4x2x8x16xf32> to vector<8x8x16xf32>
    %c0_24 = arith.constant 0 : index
    %c0_25 = arith.constant 0 : index
    %c0_26 = arith.constant 0 : index
    %c0_27 = arith.constant 0 : index
    %17 = vector.load %arg7[%c0_24, %c0_25, %c0_26, %c0_27] : memref<1x1x8x16xf32, #tpu.memory_space<vmem>>, vector<1x1x8x16xf32>
    %18 = vector.shape_cast %17 : vector<1x1x8x16xf32> to vector<1x8x16xf32>
    %c0_28 = arith.constant 0 : index
    %c0_29 = arith.constant 0 : index
    %c0_30 = arith.constant 0 : index
    %c0_31 = arith.constant 0 : index
    %19 = vector.load %arg8[%c0_28, %c0_29, %c0_30, %c0_31] : memref<1x1x8x16xf32, #tpu.memory_space<vmem>>, vector<1x1x8x16xf32>
    %20 = vector.shape_cast %19 : vector<1x1x8x16xf32> to vector<1x8x16xf32>
    %21 = tpu.concatenate %18, %16, %20 in 0 : vector<1x8x16xf32>, vector<8x8x16xf32>, vector<1x8x16xf32> -> vector<10x8x16xf32>
    %22 = vector.extract_strided_slice %21 {offsets = [0, 0, 0], sizes = [10, 1, 16], strides = [1, 1, 1]} : vector<10x8x16xf32> to vector<10x1x16xf32>
    %23 = vector.shape_cast %22 : vector<10x1x16xf32> to vector<10x1x16xf32>
    %24 = vector.broadcast %23 : vector<10x1x16xf32> to vector<10x2x16xf32>
    %c0_32 = arith.constant 0 : index
    %c0_33 = arith.constant 0 : index
    %c0_34 = arith.constant 0 : index
    %25 = vector.load %arg20[%c0_32, %c0_33, %c0_34] : memref<10x16x16xf32, #tpu.memory_space<vmem>>, vector<10x2x16xf32>
    tpu.vector_store %arg20[%c0_32, %c0_33, %c0_34], %24 {strides = array<i32>} : memref<10x16x16xf32, #tpu.memory_space<vmem>>, vector<10x2x16xf32>,
    %26 = vector.extract_strided_slice %21 {offsets = [0, 1, 0], sizes = [10, 1, 16], strides = [1, 1, 1]} : vector<10x8x16xf32> to vector<10x1x16xf32>
    %27 = vector.shape_cast %26 : vector<10x1x16xf32> to vector<10x1x16xf32>
    %28 = vector.broadcast %27 : vector<10x1x16xf32> to vector<10x2x16xf32>
    %c0_35 = arith.constant 0 : index
    %c2 = arith.constant 2 : index
    %c0_36 = arith.constant 0 : index
    %29 = vector.load %arg20[%c0_35, %c2, %c0_36] : memref<10x16x16xf32, #tpu.memory_space<vmem>>, vector<10x2x16xf32>
    tpu.vector_store %arg20[%c0_35, %c2, %c0_36], %28 {strides = array<i32>} : memref<10x16x16xf32, #tpu.memory_space<vmem>>, vector<10x2x16xf32>,
    %30 = vector.extract_strided_slice %21 {offsets = [0, 2, 0], sizes = [10, 1, 16], strides = [1, 1, 1]} : vector<10x8x16xf32> to vector<10x1x16xf32>
    %31 = vector.shape_cast %30 : vector<10x1x16xf32> to vector<10x1x16xf32>
    %32 = vector.broadcast %31 : vector<10x1x16xf32> to vector<10x2x16xf32>
    %c0_37 = arith.constant 0 : index
    %c4 = arith.constant 4 : index
    %c0_38 = arith.constant 0 : index
    %33 = vector.load %arg20[%c0_37, %c4, %c0_38] : memref<10x16x16xf32, #tpu.memory_space<vmem>>, vector<10x2x16xf32>
    tpu.vector_store %arg20[%c0_37, %c4, %c0_38], %32 {strides = array<i32>} : memref<10x16x16xf32, #tpu.memory_space<vmem>>, vector<10x2x16xf32>,
    %34 = vector.extract_strided_slice %21 {offsets = [0, 3, 0], sizes = [10, 1, 16], strides = [1, 1, 1]} : vector<10x8x16xf32> to vector<10x1x16xf32>
    %35 = vector.shape_cast %34 : vector<10x1x16xf32> to vector<10x1x16xf32>
    %36 = vector.broadcast %35 : vector<10x1x16xf32> to vector<10x2x16xf32>
    %c0_39 = arith.constant 0 : index
    %c6 = arith.constant 6 : index
    %c0_40 = arith.constant 0 : index
    %37 = vector.load %arg20[%c0_39, %c6, %c0_40] : memref<10x16x16xf32, #tpu.memory_space<vmem>>, vector<10x2x16xf32>
    tpu.vector_store %arg20[%c0_39, %c6, %c0_40], %36 {strides = array<i32>} : memref<10x16x16xf32, #tpu.memory_space<vmem>>, vector<10x2x16xf32>,
    %38 = vector.extract_strided_slice %21 {offsets = [0, 4, 0], sizes = [10, 1, 16], strides = [1, 1, 1]} : vector<10x8x16xf32> to vector<10x1x16xf32>
    %39 = vector.shape_cast %38 : vector<10x1x16xf32> to vector<10x1x16xf32>
    %40 = vector.broadcast %39 : vector<10x1x16xf32> to vector<10x2x16xf32>
    %c0_41 = arith.constant 0 : index
    %c8 = arith.constant 8 : index
    %c0_42 = arith.constant 0 : index
    %41 = vector.load %arg20[%c0_41, %c8, %c0_42] : memref<10x16x16xf32, #tpu.memory_space<vmem>>, vector<10x2x16xf32>
    tpu.vector_store %arg20[%c0_41, %c8, %c0_42], %40 {strides = array<i32>} : memref<10x16x16xf32, #tpu.memory_space<vmem>>, vector<10x2x16xf32>,
    %42 = vector.extract_strided_slice %21 {offsets = [0, 5, 0], sizes = [10, 1, 16], strides = [1, 1, 1]} : vector<10x8x16xf32> to vector<10x1x16xf32>
    %43 = vector.shape_cast %42 : vector<10x1x16xf32> to vector<10x1x16xf32>
    %44 = vector.broadcast %43 : vector<10x1x16xf32> to vector<10x2x16xf32>
    %c0_43 = arith.constant 0 : index
    %c10 = arith.constant 10 : index
    %c0_44 = arith.constant 0 : index
    %45 = vector.load %arg20[%c0_43, %c10, %c0_44] : memref<10x16x16xf32, #tpu.memory_space<vmem>>, vector<10x2x16xf32>
    tpu.vector_store %arg20[%c0_43, %c10, %c0_44], %44 {strides = array<i32>} : memref<10x16x16xf32, #tpu.memory_space<vmem>>, vector<10x2x16xf32>,
    %46 = vector.extract_strided_slice %21 {offsets = [0, 6, 0], sizes = [10, 1, 16], strides = [1, 1, 1]} : vector<10x8x16xf32> to vector<10x1x16xf32>
    %47 = vector.shape_cast %46 : vector<10x1x16xf32> to vector<10x1x16xf32>
    %48 = vector.broadcast %47 : vector<10x1x16xf32> to vector<10x2x16xf32>
    %c0_45 = arith.constant 0 : index
    %c12 = arith.constant 12 : index
    %c0_46 = arith.constant 0 : index
    %49 = vector.load %arg20[%c0_45, %c12, %c0_46] : memref<10x16x16xf32, #tpu.memory_space<vmem>>, vector<10x2x16xf32>
    tpu.vector_store %arg20[%c0_45, %c12, %c0_46], %48 {strides = array<i32>} : memref<10x16x16xf32, #tpu.memory_space<vmem>>, vector<10x2x16xf32>,
    %50 = vector.extract_strided_slice %21 {offsets = [0, 7, 0], sizes = [10, 1, 16], strides = [1, 1, 1]} : vector<10x8x16xf32> to vector<10x1x16xf32>
    %51 = vector.shape_cast %50 : vector<10x1x16xf32> to vector<10x1x16xf32>
    %52 = vector.broadcast %51 : vector<10x1x16xf32> to vector<10x2x16xf32>
    %c0_47 = arith.constant 0 : index
    %c14 = arith.constant 14 : index
    %c0_48 = arith.constant 0 : index
    %53 = vector.load %arg20[%c0_47, %c14, %c0_48] : memref<10x16x16xf32, #tpu.memory_space<vmem>>, vector<10x2x16xf32>
    tpu.vector_store %arg20[%c0_47, %c14, %c0_48], %52 {strides = array<i32>} : memref<10x16x16xf32, #tpu.memory_space<vmem>>, vector<10x2x16xf32>,
    %c1_49 = arith.constant 1 : index
    %c0_50 = arith.constant 0 : index
    %c0_51 = arith.constant 0 : index
    %54 = vector.load %arg20[%c1_49, %c0_50, %c0_51] : memref<10x16x16xf32, #tpu.memory_space<vmem>>, vector<8x16x16xf32>
    %c0_52 = arith.constant 0 : index
    %c0_53 = arith.constant 0 : index
    %c0_54 = arith.constant 0 : index
    %55 = vector.load %arg20[%c0_52, %c0_53, %c0_54] : memref<10x16x16xf32, #tpu.memory_space<vmem>>, vector<1x16x16xf32>
    %56 = vector.shape_cast %55 : vector<1x16x16xf32> to vector<16x16xf32>
    %c9 = arith.constant 9 : index
    %c0_55 = arith.constant 0 : index
    %c0_56 = arith.constant 0 : index
    %57 = vector.load %arg20[%c9, %c0_55, %c0_56] : memref<10x16x16xf32, #tpu.memory_space<vmem>>, vector<1x16x16xf32>
    %58 = vector.shape_cast %57 : vector<1x16x16xf32> to vector<16x16xf32>
    %c0_57 = arith.constant 0 : index
    %c0_58 = arith.constant 0 : index
    %c0_59 = arith.constant 0 : index
    %59 = vector.load %arg3[%c0_57, %c0_58, %c0_59] : memref<1x128x4xf32, #tpu.memory_space<vmem>>, vector<1x128x4xf32>
    %60 = vector.shape_cast %59 : vector<1x128x4xf32> to vector<128x4xf32>
    %cst = arith.constant dense<0.000000e+00> : vector<128x16xf32>
    %61 = tpu.matmul %60, %0, %cst {dimension_numbers = #tpu.dot_dimension_numbers<[1], [0], [0], [1], [0, 0, 1, 1], [], []>} : vector<128x4xf32>, vector<4x16xf32>, vector<128x16xf32> -> vector<128x16xf32>
    %62 = vector.broadcast %1 : vector<1x16xf32> to vector<128x16xf32>
    %63 = arith.mulf %61, %62 : vector<128x16xf32>
    %64 = vector.broadcast %2 : vector<1x16xf32> to vector<128x16xf32>
    %65 = arith.addf %63, %64 : vector<128x16xf32>
    %66 = vector.shape_cast %65 : vector<128x16xf32> to vector<8x16x16xf32>
    %67 = vector.shape_cast %3 : vector<1x16xf32> to vector<1x1x16xf32>
    %68 = vector.broadcast %67 : vector<1x1x16xf32> to vector<8x16x16xf32>
    %69 = arith.mulf %66, %68 : vector<8x16x16xf32>
    %cst_60 = arith.constant dense<0.000000e+00> : vector<8x16xf32>
    %70 = vector.multi_reduction <add>, %69, %cst_60 [2] : vector<8x16x16xf32> to vector<8x16xf32>
    %71 = vector.shape_cast %70 : vector<8x16xf32> to vector<8x16x1xf32>
    %72 = vector.shape_cast %5 : vector<1x16xf32> to vector<1x1x16xf32>
    %73 = vector.broadcast %72 : vector<1x1x16xf32> to vector<8x16x16xf32>
    %74 = arith.mulf %54, %73 : vector<8x16x16xf32>
    %cst_61 = arith.constant dense<0.000000e+00> : vector<8x16xf32>
    %75 = vector.multi_reduction <add>, %74, %cst_61 [2] : vector<8x16x16xf32> to vector<8x16xf32>
    %76 = vector.shape_cast %75 : vector<8x16xf32> to vector<8x16x1xf32>
    %77 = arith.addf %71, %76 : vector<8x16x1xf32>
    %78 = vector.shape_cast %7 : vector<1x1xf32> to vector<1x1x1xf32>
    %79 = vector.broadcast %78 : vector<1x1x1xf32> to vector<8x16x1xf32>
    %80 = arith.addf %77, %79 : vector<8x16x1xf32>
    %81 = vector.shape_cast %4 : vector<1x16xf32> to vector<1x1x16xf32>
    %82 = vector.broadcast %81 : vector<1x1x16xf32> to vector<8x16x16xf32>
    %83 = arith.mulf %66, %82 : vector<8x16x16xf32>
    %cst_62 = arith.constant dense<0.000000e+00> : vector<8x16xf32>
    %84 = vector.multi_reduction <add>, %83, %cst_62 [2] : vector<8x16x16xf32> to vector<8x16xf32>
    %85 = vector.shape_cast %84 : vector<8x16xf32> to vector<8x16x1xf32>
    %86 = vector.shape_cast %6 : vector<1x16xf32> to vector<1x1x16xf32>
    %87 = vector.broadcast %86 : vector<1x1x16xf32> to vector<8x16x16xf32>
    %88 = arith.mulf %54, %87 : vector<8x16x16xf32>
    %cst_63 = arith.constant dense<0.000000e+00> : vector<8x16xf32>
    %89 = vector.multi_reduction <add>, %88, %cst_63 [2] : vector<8x16x16xf32> to vector<8x16xf32>
    %90 = vector.shape_cast %89 : vector<8x16xf32> to vector<8x16x1xf32>
    %91 = arith.addf %85, %90 : vector<8x16x1xf32>
    %92 = vector.shape_cast %8 : vector<1x1xf32> to vector<1x1x1xf32>
    %93 = vector.broadcast %92 : vector<1x1x1xf32> to vector<8x16x1xf32>
    %94 = arith.addf %91, %93 : vector<8x16x1xf32>
    %95 = arith.negf %80 : vector<8x16x1xf32>
    %96 = math.exp %95 : vector<8x16x1xf32>
    %cst_64 = arith.constant 1.000000e+00 : f32
    %97 = vector.broadcast %cst_64 : f32 to vector<8x16x1xf32>
    %98 = arith.addf %97, %96 : vector<8x16x1xf32>
    %99 = arith.divf %97, %98 : vector<8x16x1xf32>
    %100 = vector.broadcast %99 : vector<8x16x1xf32> to vector<8x16x16xf32>
    %101 = arith.mulf %66, %100 : vector<8x16x16xf32>
    %102 = arith.negf %94 : vector<8x16x1xf32>
    %103 = math.exp %102 : vector<8x16x1xf32>
    %cst_65 = arith.constant 1.000000e+00 : f32
    %104 = vector.broadcast %cst_65 : f32 to vector<8x16x1xf32>
    %105 = arith.addf %104, %103 : vector<8x16x1xf32>
    %106 = arith.divf %104, %105 : vector<8x16x1xf32>
    %107 = vector.broadcast %106 : vector<8x16x1xf32> to vector<8x16x16xf32>
    %108 = arith.mulf %54, %107 : vector<8x16x16xf32>
    %109 = arith.addf %101, %108 : vector<8x16x16xf32>
    %c0_66 = arith.constant 0 : index
    %c0_67 = arith.constant 0 : index
    %c0_68 = arith.constant 0 : index
    %c0_69 = arith.constant 0 : index
    %110 = vector.load %arg19[%c0_66, %c0_67, %c0_68, %c0_69] : memref<1x8x16x16xf32, #tpu.memory_space<vmem>>, vector<1x8x16x16xf32>
    %111 = vector.shape_cast %110 : vector<1x8x16x16xf32> to vector<8x16x16xf32>
    %112 = vector.shape_cast %109 : vector<8x16x16xf32> to vector<1x8x16x16xf32>
    tpu.vector_store %arg19[%c0_66, %c0_67, %c0_68, %c0_69], %112 {strides = array<i32>} : memref<1x8x16x16xf32, #tpu.memory_space<vmem>>, vector<1x8x16x16xf32>,
    %c0_70 = arith.constant 0 : index
    %c0_71 = arith.constant 0 : index
    %c0_72 = arith.constant 0 : index
    %c0_73 = arith.constant 0 : index
    %113 = vector.load %arg4[%c0_70, %c0_71, %c0_72, %c0_73] : memref<1x1x16x4xf32, #tpu.memory_space<vmem>>, vector<1x1x16x4xf32>
    %114 = vector.shape_cast %113 : vector<1x1x16x4xf32> to vector<16x4xf32>
    %cst_74 = arith.constant dense<0.000000e+00> : vector<16x16xf32>
    %115 = tpu.matmul %114, %0, %cst_74 {dimension_numbers = #tpu.dot_dimension_numbers<[1], [0], [0], [1], [0, 0, 1, 1], [], []>} : vector<16x4xf32>, vector<4x16xf32>, vector<16x16xf32> -> vector<16x16xf32>
    %116 = vector.broadcast %1 : vector<1x16xf32> to vector<16x16xf32>
    %117 = arith.mulf %115, %116 : vector<16x16xf32>
    %118 = vector.broadcast %2 : vector<1x16xf32> to vector<16x16xf32>
    %119 = arith.addf %117, %118 : vector<16x16xf32>
    %120 = vector.broadcast %3 : vector<1x16xf32> to vector<16x16xf32>
    %121 = arith.mulf %119, %120 : vector<16x16xf32>
    %cst_75 = arith.constant dense<0.000000e+00> : vector<16xf32>
    %122 = vector.multi_reduction <add>, %121, %cst_75 [1] : vector<16x16xf32> to vector<16xf32>
    %123 = vector.shape_cast %122 : vector<16xf32> to vector<16x1xf32>
    %124 = vector.broadcast %5 : vector<1x16xf32> to vector<16x16xf32>
    %125 = arith.mulf %56, %124 : vector<16x16xf32>
    %cst_76 = arith.constant dense<0.000000e+00> : vector<16xf32>
    %126 = vector.multi_reduction <add>, %125, %cst_76 [1] : vector<16x16xf32> to vector<16xf32>
    %127 = vector.shape_cast %126 : vector<16xf32> to vector<16x1xf32>
    %128 = arith.addf %123, %127 : vector<16x1xf32>
    %129 = vector.broadcast %7 : vector<1x1xf32> to vector<16x1xf32>
    %130 = arith.addf %128, %129 : vector<16x1xf32>
    %131 = vector.broadcast %4 : vector<1x16xf32> to vector<16x16xf32>
    %132 = arith.mulf %119, %131 : vector<16x16xf32>
    %cst_77 = arith.constant dense<0.000000e+00> : vector<16xf32>
    %133 = vector.multi_reduction <add>, %132, %cst_77 [1] : vector<16x16xf32> to vector<16xf32>
    %134 = vector.shape_cast %133 : vector<16xf32> to vector<16x1xf32>
    %135 = vector.broadcast %6 : vector<1x16xf32> to vector<16x16xf32>
    %136 = arith.mulf %56, %135 : vector<16x16xf32>
    %cst_78 = arith.constant dense<0.000000e+00> : vector<16xf32>
    %137 = vector.multi_reduction <add>, %136, %cst_78 [1] : vector<16x16xf32> to vector<16xf32>
    %138 = vector.shape_cast %137 : vector<16xf32> to vector<16x1xf32>
    %139 = arith.addf %134, %138 : vector<16x1xf32>
    %140 = vector.broadcast %8 : vector<1x1xf32> to vector<16x1xf32>
    %141 = arith.addf %139, %140 : vector<16x1xf32>
    %142 = arith.negf %130 : vector<16x1xf32>
    %143 = math.exp %142 : vector<16x1xf32>
    %cst_79 = arith.constant 1.000000e+00 : f32
    %144 = vector.broadcast %cst_79 : f32 to vector<16x1xf32>
    %145 = arith.addf %144, %143 : vector<16x1xf32>
    %146 = arith.divf %144, %145 : vector<16x1xf32>
    %147 = vector.broadcast %146 : vector<16x1xf32> to vector<16x16xf32>
    %148 = arith.mulf %119, %147 : vector<16x16xf32>
    %149 = arith.negf %141 : vector<16x1xf32>
    %150 = math.exp %149 : vector<16x1xf32>
    %cst_80 = arith.constant 1.000000e+00 : f32
    %151 = vector.broadcast %cst_80 : f32 to vector<16x1xf32>
    %152 = arith.addf %151, %150 : vector<16x1xf32>
    %153 = arith.divf %151, %152 : vector<16x1xf32>
    %154 = vector.broadcast %153 : vector<16x1xf32> to vector<16x16xf32>
    %155 = arith.mulf %56, %154 : vector<16x16xf32>
    %156 = arith.addf %148, %155 : vector<16x16xf32>
    %c0_81 = arith.constant 0 : index
    %c0_82 = arith.constant 0 : index
    %c0_83 = arith.constant 0 : index
    %c0_84 = arith.constant 0 : index
    %157 = vector.load %arg5[%c0_81, %c0_82, %c0_83, %c0_84] : memref<1x1x16x4xf32, #tpu.memory_space<vmem>>, vector<1x1x16x4xf32>
    %158 = vector.shape_cast %157 : vector<1x1x16x4xf32> to vector<16x4xf32>
    %cst_85 = arith.constant dense<0.000000e+00> : vector<16x16xf32>
    %159 = tpu.matmul %158, %0, %cst_85 {dimension_numbers = #tpu.dot_dimension_numbers<[1], [0], [0], [1], [0, 0, 1, 1], [], []>} : vector<16x4xf32>, vector<4x16xf32>, vector<16x16xf32> -> vector<16x16xf32>
    %160 = vector.broadcast %1 : vector<1x16xf32> to vector<16x16xf32>
    %161 = arith.mulf %159, %160 : vector<16x16xf32>
    %162 = vector.broadcast %2 : vector<1x16xf32> to vector<16x16xf32>
    %163 = arith.addf %161, %162 : vector<16x16xf32>
    %164 = vector.broadcast %3 : vector<1x16xf32> to vector<16x16xf32>
    %165 = arith.mulf %163, %164 : vector<16x16xf32>
    %cst_86 = arith.constant dense<0.000000e+00> : vector<16xf32>
    %166 = vector.multi_reduction <add>, %165, %cst_86 [1] : vector<16x16xf32> to vector<16xf32>
    %167 = vector.shape_cast %166 : vector<16xf32> to vector<16x1xf32>
    %168 = vector.broadcast %5 : vector<1x16xf32> to vector<16x16xf32>
    %169 = arith.mulf %58, %168 : vector<16x16xf32>
    %cst_87 = arith.constant dense<0.000000e+00> : vector<16xf32>
    %170 = vector.multi_reduction <add>, %169, %cst_87 [1] : vector<16x16xf32> to vector<16xf32>
    %171 = vector.shape_cast %170 : vector<16xf32> to vector<16x1xf32>
    %172 = arith.addf %167, %171 : vector<16x1xf32>
    %173 = vector.broadcast %7 : vector<1x1xf32> to vector<16x1xf32>
    %174 = arith.addf %172, %173 : vector<16x1xf32>
    %175 = vector.broadcast %4 : vector<1x16xf32> to vector<16x16xf32>
    %176 = arith.mulf %163, %175 : vector<16x16xf32>
    %cst_88 = arith.constant dense<0.000000e+00> : vector<16xf32>
    %177 = vector.multi_reduction <add>, %176, %cst_88 [1] : vector<16x16xf32> to vector<16xf32>
    %178 = vector.shape_cast %177 : vector<16xf32> to vector<16x1xf32>
    %179 = vector.broadcast %6 : vector<1x16xf32> to vector<16x16xf32>
    %180 = arith.mulf %58, %179 : vector<16x16xf32>
    %cst_89 = arith.constant dense<0.000000e+00> : vector<16xf32>
    %181 = vector.multi_reduction <add>, %180, %cst_89 [1] : vector<16x16xf32> to vector<16xf32>
    %182 = vector.shape_cast %181 : vector<16xf32> to vector<16x1xf32>
    %183 = arith.addf %178, %182 : vector<16x1xf32>
    %184 = vector.broadcast %8 : vector<1x1xf32> to vector<16x1xf32>
    %185 = arith.addf %183, %184 : vector<16x1xf32>
    %186 = arith.negf %174 : vector<16x1xf32>
    %187 = math.exp %186 : vector<16x1xf32>
    %cst_90 = arith.constant 1.000000e+00 : f32
    %188 = vector.broadcast %cst_90 : f32 to vector<16x1xf32>
    %189 = arith.addf %188, %187 : vector<16x1xf32>
    %190 = arith.divf %188, %189 : vector<16x1xf32>
    %191 = vector.broadcast %190 : vector<16x1xf32> to vector<16x16xf32>
    %192 = arith.mulf %163, %191 : vector<16x16xf32>
    %193 = arith.negf %185 : vector<16x1xf32>
    %194 = math.exp %193 : vector<16x1xf32>
    %cst_91 = arith.constant 1.000000e+00 : f32
    %195 = vector.broadcast %cst_91 : f32 to vector<16x1xf32>
    %196 = arith.addf %195, %194 : vector<16x1xf32>
    %197 = arith.divf %195, %196 : vector<16x1xf32>
    %198 = vector.broadcast %197 : vector<16x1xf32> to vector<16x16xf32>
    %199 = arith.mulf %58, %198 : vector<16x16xf32>
    %200 = arith.addf %192, %199 : vector<16x16xf32>
    %c0_i32 = arith.constant 0 : i32
    %201 = arith.cmpi eq, %arg1, %c0_i32 : i32
    %cst_92 = arith.constant 0.000000e+00 : f32
    %202 = vector.broadcast %cst_92 : f32 to vector<16x16xf32>
    %203 = arith.select %201, %202, %156 : vector<16x16xf32>
    %c1_i32 = arith.constant 1 : i32
    %204 = arith.cmpi eq, %arg1, %c1_i32 : i32
    %cst_93 = arith.constant 0.000000e+00 : f32
    %205 = vector.broadcast %cst_93 : f32 to vector<16x16xf32>
    %206 = arith.select %204, %205, %200 : vector<16x16xf32>
    %cst_94 = arith.constant 0.000000e+00 : f32
    %207 = vector.broadcast %cst_94 : f32 to vector<10x16x16xf32>
    %c0_95 = arith.constant 0 : index
    %c16 = arith.constant 16 : index
    %c0_96 = arith.constant 0 : index
    %208 = vector.load %arg21[%c0_95, %c16, %c0_96] : memref<10x32x16xf32, #tpu.memory_space<vmem>>, vector<10x16x16xf32>
    tpu.vector_store %arg21[%c0_95, %c16, %c0_96], %207 {strides = array<i32>} : memref<10x32x16xf32, #tpu.memory_space<vmem>>, vector<10x16x16xf32>,
    %c0_97 = arith.constant 0 : index
    %c0_98 = arith.constant 0 : index
    %c0_99 = arith.constant 0 : index
    %209 = vector.load %arg21[%c0_97, %c0_98, %c0_99] : memref<10x32x16xf32, #tpu.memory_space<vmem>>, vector<1x16x16xf32>
    %210 = vector.shape_cast %209 : vector<1x16x16xf32> to vector<16x16xf32>
    %211 = vector.shape_cast %203 : vector<16x16xf32> to vector<1x16x16xf32>
    tpu.vector_store %arg21[%c0_97, %c0_98, %c0_99], %211 {strides = array<i32>} : memref<10x32x16xf32, #tpu.memory_space<vmem>>, vector<1x16x16xf32>,
    %c1_100 = arith.constant 1 : index
    %c0_101 = arith.constant 0 : index
    %c0_102 = arith.constant 0 : index
    %212 = vector.load %arg21[%c1_100, %c0_101, %c0_102] : memref<10x32x16xf32, #tpu.memory_space<vmem>>, vector<8x16x16xf32>
    tpu.vector_store %arg21[%c1_100, %c0_101, %c0_102], %109 {strides = array<i32>} : memref<10x32x16xf32, #tpu.memory_space<vmem>>, vector<8x16x16xf32>,
    %c9_103 = arith.constant 9 : index
    %c0_104 = arith.constant 0 : index
    %c0_105 = arith.constant 0 : index
    %213 = vector.load %arg21[%c9_103, %c0_104, %c0_105] : memref<10x32x16xf32, #tpu.memory_space<vmem>>, vector<1x16x16xf32>
    %214 = vector.shape_cast %213 : vector<1x16x16xf32> to vector<16x16xf32>
    %215 = vector.shape_cast %206 : vector<16x16xf32> to vector<1x16x16xf32>
    tpu.vector_store %arg21[%c9_103, %c0_104, %c0_105], %215 {strides = array<i32>} : memref<10x32x16xf32, #tpu.memory_space<vmem>>, vector<1x16x16xf32>,
    %cst_106 = arith.constant 0.000000e+00 : f32
    %216 = vector.broadcast %cst_106 : f32 to vector<256x8xf32>
    %c0_107 = arith.constant 0 : index
    %c0_108 = arith.constant 0 : index
    %c0_109 = arith.constant 0 : index
    %217 = vector.load %arg21[%c0_107, %c0_108, %c0_109] : memref<10x32x16xf32, #tpu.memory_space<vmem>>, vector<8x32x16xf32>
    %218 = vector.shape_cast %217 : vector<8x32x16xf32> to vector<256x16xf32>
    %c0_110 = arith.constant 0 : index
    %c0_111 = arith.constant 0 : index
    %c0_112 = arith.constant 0 : index
    %219 = vector.load %arg15[%c0_110, %c0_111, %c0_112] : memref<3x16x24xf32, #tpu.memory_space<vmem>>, vector<1x16x24xf32>
    %220 = vector.shape_cast %219 : vector<1x16x24xf32> to vector<16x24xf32>
    %cst_113 = arith.constant dense<0.000000e+00> : vector<256x24xf32>
    %221 = tpu.matmul %218, %220, %cst_113 {dimension_numbers = #tpu.dot_dimension_numbers<[1], [0], [0], [1], [0, 0, 1, 1], [], []>} : vector<256x16xf32>, vector<16x24xf32>, vector<256x24xf32> -> vector<256x24xf32>
    %222 = vector.extract_strided_slice %221 {offsets = [0, 0], sizes = [256, 8], strides = [1, 1]} : vector<256x24xf32> to vector<256x8xf32>
    %c1_i32_114 = arith.constant 1 : i32
    %223 = tpu.dynamic_rotate %222 by %c1_i32_114 dim 0 : vector<256x8xf32>, i32 -> vector<256x8xf32>
    %224 = arith.addf %216, %223 : vector<256x8xf32>
    %225 = vector.extract_strided_slice %221 {offsets = [0, 8], sizes = [256, 8], strides = [1, 1]} : vector<256x24xf32> to vector<256x8xf32>
    %226 = arith.addf %224, %225 : vector<256x8xf32>
    %227 = vector.extract_strided_slice %221 {offsets = [0, 16], sizes = [256, 8], strides = [1, 1]} : vector<256x24xf32> to vector<256x8xf32>
    %c255_i32 = arith.constant 255 : i32
    %228 = tpu.dynamic_rotate %227 by %c255_i32 dim 0 : vector<256x8xf32>, i32 -> vector<256x8xf32>
    %229 = arith.addf %226, %228 : vector<256x8xf32>
    %c1_115 = arith.constant 1 : index
    %c0_116 = arith.constant 0 : index
    %c0_117 = arith.constant 0 : index
    %230 = vector.load %arg21[%c1_115, %c0_116, %c0_117] : memref<10x32x16xf32, #tpu.memory_space<vmem>>, vector<8x32x16xf32>
    %231 = vector.shape_cast %230 : vector<8x32x16xf32> to vector<256x16xf32>
    %c1_118 = arith.constant 1 : index
    %c0_119 = arith.constant 0 : index
    %c0_120 = arith.constant 0 : index
    %232 = vector.load %arg15[%c1_118, %c0_119, %c0_120] : memref<3x16x24xf32, #tpu.memory_space<vmem>>, vector<1x16x24xf32>
    %233 = vector.shape_cast %232 : vector<1x16x24xf32> to vector<16x24xf32>
    %cst_121 = arith.constant dense<0.000000e+00> : vector<256x24xf32>
    %234 = tpu.matmul %231, %233, %cst_121 {dimension_numbers = #tpu.dot_dimension_numbers<[1], [0], [0], [1], [0, 0, 1, 1], [], []>} : vector<256x16xf32>, vector<16x24xf32>, vector<256x24xf32> -> vector<256x24xf32>
    %235 = vector.extract_strided_slice %234 {offsets = [0, 0], sizes = [256, 8], strides = [1, 1]} : vector<256x24xf32> to vector<256x8xf32>
    %c1_i32_122 = arith.constant 1 : i32
    %236 = tpu.dynamic_rotate %235 by %c1_i32_122 dim 0 : vector<256x8xf32>, i32 -> vector<256x8xf32>
    %237 = arith.addf %229, %236 : vector<256x8xf32>
    %238 = vector.extract_strided_slice %234 {offsets = [0, 8], sizes = [256, 8], strides = [1, 1]} : vector<256x24xf32> to vector<256x8xf32>
    %239 = arith.addf %237, %238 : vector<256x8xf32>
    %240 = vector.extract_strided_slice %234 {offsets = [0, 16], sizes = [256, 8], strides = [1, 1]} : vector<256x24xf32> to vector<256x8xf32>
    %c255_i32_123 = arith.constant 255 : i32
    %241 = tpu.dynamic_rotate %240 by %c255_i32_123 dim 0 : vector<256x8xf32>, i32 -> vector<256x8xf32>
    %242 = arith.addf %239, %241 : vector<256x8xf32>
    %c2_124 = arith.constant 2 : index
    %c0_125 = arith.constant 0 : index
    %c0_126 = arith.constant 0 : index
    %243 = vector.load %arg21[%c2_124, %c0_125, %c0_126] : memref<10x32x16xf32, #tpu.memory_space<vmem>>, vector<8x32x16xf32>
    %244 = vector.shape_cast %243 : vector<8x32x16xf32> to vector<256x16xf32>
    %c2_127 = arith.constant 2 : index
    %c0_128 = arith.constant 0 : index
    %c0_129 = arith.constant 0 : index
    %245 = vector.load %arg15[%c2_127, %c0_128, %c0_129] : memref<3x16x24xf32, #tpu.memory_space<vmem>>, vector<1x16x24xf32>
    %246 = vector.shape_cast %245 : vector<1x16x24xf32> to vector<16x24xf32>
    %cst_130 = arith.constant dense<0.000000e+00> : vector<256x24xf32>
    %247 = tpu.matmul %244, %246, %cst_130 {dimension_numbers = #tpu.dot_dimension_numbers<[1], [0], [0], [1], [0, 0, 1, 1], [], []>} : vector<256x16xf32>, vector<16x24xf32>, vector<256x24xf32> -> vector<256x24xf32>
    %248 = vector.extract_strided_slice %247 {offsets = [0, 0], sizes = [256, 8], strides = [1, 1]} : vector<256x24xf32> to vector<256x8xf32>
    %c1_i32_131 = arith.constant 1 : i32
    %249 = tpu.dynamic_rotate %248 by %c1_i32_131 dim 0 : vector<256x8xf32>, i32 -> vector<256x8xf32>
    %250 = arith.addf %242, %249 : vector<256x8xf32>
    %251 = vector.extract_strided_slice %247 {offsets = [0, 8], sizes = [256, 8], strides = [1, 1]} : vector<256x24xf32> to vector<256x8xf32>
    %252 = arith.addf %250, %251 : vector<256x8xf32>
    %253 = vector.extract_strided_slice %247 {offsets = [0, 16], sizes = [256, 8], strides = [1, 1]} : vector<256x24xf32> to vector<256x8xf32>
    %c255_i32_132 = arith.constant 255 : i32
    %254 = tpu.dynamic_rotate %253 by %c255_i32_132 dim 0 : vector<256x8xf32>, i32 -> vector<256x8xf32>
    %255 = arith.addf %252, %254 : vector<256x8xf32>
    %256 = vector.shape_cast %255 : vector<256x8xf32> to vector<8x32x8xf32>
    %257 = vector.extract_strided_slice %256 {offsets = [0, 0, 0], sizes = [8, 16, 8], strides = [1, 1, 1]} : vector<8x32x8xf32> to vector<8x16x8xf32>
    %258 = vector.shape_cast %9 : vector<1x8xf32> to vector<1x1x8xf32>
    %259 = vector.broadcast %258 : vector<1x1x8xf32> to vector<8x16x8xf32>
    %260 = arith.mulf %257, %259 : vector<8x16x8xf32>
    %261 = vector.shape_cast %10 : vector<1x8xf32> to vector<1x1x8xf32>
    %262 = vector.broadcast %261 : vector<1x1x8xf32> to vector<8x16x8xf32>
    %263 = arith.addf %260, %262 : vector<8x16x8xf32>
    %c0_133 = arith.constant 0 : index
    %c0_134 = arith.constant 0 : index
    %c0_135 = arith.constant 0 : index
    %c0_136 = arith.constant 0 : index
    %264 = vector.load %arg18[%c0_133, %c0_134, %c0_135, %c0_136] : memref<1x8x16x8xf32, #tpu.memory_space<vmem>>, vector<1x8x16x8xf32>
    %265 = vector.shape_cast %264 : vector<1x8x16x8xf32> to vector<8x16x8xf32>
    %266 = vector.shape_cast %263 : vector<8x16x8xf32> to vector<1x8x16x8xf32>
    tpu.vector_store %arg18[%c0_133, %c0_134, %c0_135, %c0_136], %266 {strides = array<i32>} : memref<1x8x16x8xf32, #tpu.memory_space<vmem>>, vector<1x8x16x8xf32>,
    return
  }
  func.func @transform_0(%arg0: i32, %arg1: i32, %arg2: memref<2x4xi32, #tpu.memory_space<smem>>) -> (i32, i32, i32) {
    %c0_i32 = arith.constant 0 : i32
    %c0_i32_0 = arith.constant 0 : i32
    return %arg0, %arg1, %c0_i32 : i32, i32, i32
  }
  func.func @transform_1(%arg0: i32, %arg1: i32, %arg2: memref<2x4xi32, #tpu.memory_space<smem>>) -> (i32, i32, i32, i32) {
    %0 = arith.index_cast %arg1 : i32 to index
    %c0 = arith.constant 0 : index
    %1 = memref.load %arg2[%0, %c0] : memref<2x4xi32, #tpu.memory_space<smem>>
    %c0_i32 = arith.constant 0 : i32
    %c0_i32_0 = arith.constant 0 : i32
    %c0_i32_1 = arith.constant 0 : i32
    return %arg0, %1, %c0_i32, %c0_i32_0 : i32, i32, i32, i32
  }
  func.func @transform_2(%arg0: i32, %arg1: i32, %arg2: memref<2x4xi32, #tpu.memory_space<smem>>) -> (i32, i32, i32, i32) {
    %0 = arith.index_cast %arg1 : i32 to index
    %c1 = arith.constant 1 : index
    %1 = memref.load %arg2[%0, %c1] : memref<2x4xi32, #tpu.memory_space<smem>>
    %c0_i32 = arith.constant 0 : i32
    %c0_i32_0 = arith.constant 0 : i32
    %c0_i32_1 = arith.constant 0 : i32
    return %arg0, %1, %c0_i32, %c0_i32_0 : i32, i32, i32, i32
  }
  func.func @transform_3(%arg0: i32, %arg1: i32, %arg2: memref<2x4xi32, #tpu.memory_space<smem>>) -> (i32, i32, i32, i32) {
    %c0_i32 = arith.constant 0 : i32
    %c0_i32_0 = arith.constant 0 : i32
    %c0_i32_1 = arith.constant 0 : i32
    return %arg0, %arg1, %c0_i32, %c0_i32_0 : i32, i32, i32, i32
  }
  func.func @transform_4(%arg0: i32, %arg1: i32, %arg2: memref<2x4xi32, #tpu.memory_space<smem>>) -> (i32, i32, i32, i32) {
    %0 = arith.index_cast %arg1 : i32 to index
    %c2 = arith.constant 2 : index
    %1 = memref.load %arg2[%0, %c2] : memref<2x4xi32, #tpu.memory_space<smem>>
    %c0_i32 = arith.constant 0 : i32
    %c0_i32_0 = arith.constant 0 : i32
    %c0_i32_1 = arith.constant 0 : i32
    return %arg0, %1, %c0_i32, %c0_i32_0 : i32, i32, i32, i32
  }
  func.func @transform_5(%arg0: i32, %arg1: i32, %arg2: memref<2x4xi32, #tpu.memory_space<smem>>) -> (i32, i32, i32, i32) {
    %0 = arith.index_cast %arg1 : i32 to index
    %c3 = arith.constant 3 : index
    %1 = memref.load %arg2[%0, %c3] : memref<2x4xi32, #tpu.memory_space<smem>>
    %c0_i32 = arith.constant 0 : i32
    %c0_i32_0 = arith.constant 0 : i32
    %c0_i32_1 = arith.constant 0 : i32
    return %arg0, %1, %c0_i32, %c0_i32_0 : i32, i32, i32, i32
  }
  func.func @transform_6(%arg0: i32, %arg1: i32, %arg2: memref<2x4xi32, #tpu.memory_space<smem>>) -> (i32, i32) {
    %c0_i32 = arith.constant 0 : i32
    %c0_i32_0 = arith.constant 0 : i32
    %c0_i32_1 = arith.constant 0 : i32
    return %c0_i32, %c0_i32_0 : i32, i32
  }
  func.func @transform_7(%arg0: i32, %arg1: i32, %arg2: memref<2x4xi32, #tpu.memory_space<smem>>) -> (i32, i32) {
    %c0_i32 = arith.constant 0 : i32
    %c0_i32_0 = arith.constant 0 : i32
    %c0_i32_1 = arith.constant 0 : i32
    return %c0_i32, %c0_i32_0 : i32, i32
  }
  func.func @transform_8(%arg0: i32, %arg1: i32, %arg2: memref<2x4xi32, #tpu.memory_space<smem>>) -> (i32, i32) {
    %c0_i32 = arith.constant 0 : i32
    %c0_i32_0 = arith.constant 0 : i32
    %c0_i32_1 = arith.constant 0 : i32
    return %c0_i32, %c0_i32_0 : i32, i32
  }
  func.func @transform_9(%arg0: i32, %arg1: i32, %arg2: memref<2x4xi32, #tpu.memory_space<smem>>) -> (i32, i32) {
    %c0_i32 = arith.constant 0 : i32
    %c0_i32_0 = arith.constant 0 : i32
    %c0_i32_1 = arith.constant 0 : i32
    return %c0_i32, %c0_i32_0 : i32, i32
  }
  func.func @transform_10(%arg0: i32, %arg1: i32, %arg2: memref<2x4xi32, #tpu.memory_space<smem>>) -> (i32, i32) {
    %c0_i32 = arith.constant 0 : i32
    %c0_i32_0 = arith.constant 0 : i32
    %c0_i32_1 = arith.constant 0 : i32
    return %c0_i32, %c0_i32_0 : i32, i32
  }
  func.func @transform_11(%arg0: i32, %arg1: i32, %arg2: memref<2x4xi32, #tpu.memory_space<smem>>) -> (i32, i32) {
    %c0_i32 = arith.constant 0 : i32
    %c0_i32_0 = arith.constant 0 : i32
    %c0_i32_1 = arith.constant 0 : i32
    return %c0_i32, %c0_i32_0 : i32, i32
  }
  func.func @transform_12(%arg0: i32, %arg1: i32, %arg2: memref<2x4xi32, #tpu.memory_space<smem>>) -> (i32, i32, i32) {
    %c0_i32 = arith.constant 0 : i32
    %c0_i32_0 = arith.constant 0 : i32
    %c0_i32_1 = arith.constant 0 : i32
    %c0_i32_2 = arith.constant 0 : i32
    return %c0_i32, %c0_i32_0, %c0_i32_1 : i32, i32, i32
  }
  func.func @transform_13(%arg0: i32, %arg1: i32, %arg2: memref<2x4xi32, #tpu.memory_space<smem>>) -> (i32, i32) {
    %c0_i32 = arith.constant 0 : i32
    %c0_i32_0 = arith.constant 0 : i32
    %c0_i32_1 = arith.constant 0 : i32
    return %c0_i32, %c0_i32_0 : i32, i32
  }
  func.func @transform_14(%arg0: i32, %arg1: i32, %arg2: memref<2x4xi32, #tpu.memory_space<smem>>) -> (i32, i32) {
    %c0_i32 = arith.constant 0 : i32
    %c0_i32_0 = arith.constant 0 : i32
    %c0_i32_1 = arith.constant 0 : i32
    return %c0_i32, %c0_i32_0 : i32, i32
  }
  func.func @transform_15(%arg0: i32, %arg1: i32, %arg2: memref<2x4xi32, #tpu.memory_space<smem>>) -> (i32, i32, i32, i32) {
    %c0_i32 = arith.constant 0 : i32
    %c0_i32_0 = arith.constant 0 : i32
    %c0_i32_1 = arith.constant 0 : i32
    return %arg0, %arg1, %c0_i32, %c0_i32_0 : i32, i32, i32, i32
  }
  func.func @transform_16(%arg0: i32, %arg1: i32, %arg2: memref<2x4xi32, #tpu.memory_space<smem>>) -> (i32, i32, i32, i32) {
    %c0_i32 = arith.constant 0 : i32
    %c0_i32_0 = arith.constant 0 : i32
    %c0_i32_1 = arith.constant 0 : i32
    return %arg0, %arg1, %c0_i32, %c0_i32_0 : i32, i32, i32, i32
  }
}

</mosaic_0001>

<llo_original>
// kernel: _lambda_.1
$region0: #{_lambda_.1}
  #allocation0 [shape = 'u32[]', space=smem, size = 0x4, offset = 0x4, fixed_abs, tag = 'smem constant byte address 0x4 - core index']
  #allocation1 [shape = 'u32[144,128]{1,0:T(1,128)}', space=vmem, size = 0x12000, scoped, tag = 'internal scratch']
  #allocation2 [shape = 'f32[10,16,16]{2,1,0:T(8,128)}', space=vmem, size = 0x14000, scoped, tag = 'scratch operand']
  #allocation3 [shape = 'f32[10,32,16]{2,1,0:T(8,128)}', space=vmem, size = 0x28000, scoped, tag = 'scratch operand']
  #allocation4 [shape = 's32[1]{0}', space=sflag, size = 0x4, scoped, tag = 'scoped memory for _lambda_.1']
  #allocation5 [shape = 'u8[1024]{0}', space=smem, size = 0x400, scoped, tag = 'prefetched SMEM operand 0']
  %s0 = inlined_call_operand.vmem [shape: s32[2,4], index: 0, kind: input, shape index: {}]
  %s1 = inlined_call_operand.vmem [shape: f32[2,256,4], index: 1, kind: input, shape index: {}, may-alias: {1,2,3}]
  %s2 = inlined_call_operand.vmem [shape: f32[2,16,16,4], index: 2, kind: input, shape index: {}, may-alias: {1,2,3}]
  %s3 = inlined_call_operand.vmem [shape: f32[2,16,16,4], index: 3, kind: input, shape index: {}, may-alias: {1,2,3}]
  %s4 = inlined_call_operand.vmem [shape: f32[2,8,8,16], index: 4, kind: input, shape index: {}, may-alias: {4,5,6}]
  %s5 = inlined_call_operand.vmem [shape: f32[2,8,8,16], index: 5, kind: input, shape index: {}, may-alias: {4,5,6}]
  %s6 = inlined_call_operand.vmem [shape: f32[2,8,8,16], index: 6, kind: input, shape index: {}, may-alias: {4,5,6}]
  %s7 = inlined_call_operand.vmem [shape: f32[4,16], index: 7, kind: input, shape index: {}]
  %s8 = inlined_call_operand.vmem [shape: f32[1,16], index: 8, kind: input, shape index: {}]
  %s9 = inlined_call_operand.vmem [shape: f32[1,16], index: 9, kind: input, shape index: {}]
  %s10 = inlined_call_operand.vmem [shape: f32[2,16], index: 10, kind: input, shape index: {}]
  %s11 = inlined_call_operand.vmem [shape: f32[2,16], index: 11, kind: input, shape index: {}]
  %s12 = inlined_call_operand.vmem [shape: f32[1,2], index: 12, kind: input, shape index: {}]
  %s13 = inlined_call_operand.vmem [shape: f32[3,16,24], index: 13, kind: input, shape index: {}]
  %s14 = inlined_call_operand.vmem [shape: f32[1,8], index: 14, kind: input, shape index: {}]
  %s15 = inlined_call_operand.vmem [shape: f32[1,8], index: 15, kind: input, shape index: {}]
  %s16 = inlined_call_operand.vmem [shape: f32[2,16,16,8], index: 16, kind: output, shape index: {0}]
  %s17 = inlined_call_operand.vmem [shape: f32[2,16,16,16], index: 17, kind: output, shape index: {1}]
  %18 = xla_tuple %s16, %s17
  %s19 = sld [smem:[#allocation0]]
  $region101: #{_lambda_.1} parent=0
    _
  %s21 = ssub.s32 1, %s19
  %s22 = scalar_select 0, %s21, %s19
  %s23 = sshll.u32 %s0, 4
  %s24 = int_to_ptr.vmem [resolvable:$true] %s23
  %26 = dma.vmem_to_smem %s24, 32, [#allocation5], [#allocation4]
  %27 = dma.done [#allocation4], 32
  %28 = sfence
  loop: start=0, step=1, limit=6
  $region2: #{_lambda_.1} parent=0 // loop_pre_header
    _
  $region3: #{_lambda_.1} parent=0 // loop_header
    %s30 = sphi 0, %s34
    %p31 = scmp.ge.s32.totalorder %s30, 6
    %s37 = sphi 0, %s49
    %s38 = sphi 0, %s45
    %s39 = sphi 0, %s37
    %s40 = sphi 0, %s38
    %s41 = sphi 0, %s39
    %s42 = sphi 0, %s40
    %s54 = sphi 0, %s56
    %s57 = sphi 0, %s54
    %s58 = sphi 0, %s57
    %s74 = sphi 0, %s58
    %s86 = sphi 0, %s88
    %s89 = sphi 0, %s86
    %s90 = sphi 0, %s89
    %s106 = sphi 0, %s90
    %s120 = sphi 0, %s122
    %s123 = sphi 0, %s120
    %s124 = sphi 0, %s123
    %s140 = sphi 0, %s124
    %s148 = sphi 0, %s150
    %s151 = sphi 0, %s148
    %s152 = sphi 0, %s151
    %s168 = sphi 0, %s152
    %s182 = sphi 0, %s184
    %s185 = sphi 0, %s182
    %s186 = sphi 0, %s185
    %s202 = sphi 0, %s186
    %s216 = sphi 0, %s218
    %s219 = sphi 0, %s216
    %s220 = sphi 0, %s219
    %s236 = sphi 0, %s220
    %s240 = sphi 0, %s240
    %s242 = sphi 0, %s240
    %s243 = sphi 0, %s242
    %s257 = sphi 0, %s243
    %s261 = sphi 0, %s261
    %s263 = sphi 0, %s261
    %s264 = sphi 0, %s263
    %s278 = sphi 0, %s264
    %s282 = sphi 0, %s282
    %s284 = sphi 0, %s282
    %s285 = sphi 0, %s284
    %s299 = sphi 0, %s285
    %s303 = sphi 0, %s303
    %s305 = sphi 0, %s303
    %s306 = sphi 0, %s305
    %s320 = sphi 0, %s306
    %s324 = sphi 0, %s324
    %s326 = sphi 0, %s324
    %s327 = sphi 0, %s326
    %s341 = sphi 0, %s327
    %s345 = sphi 0, %s345
    %s347 = sphi 0, %s345
    %s348 = sphi 0, %s347
    %s362 = sphi 0, %s348
    %s366 = sphi 0, %s366
    %s368 = sphi 0, %s366
    %s369 = sphi 0, %s368
    %s383 = sphi 0, %s369
    %s387 = sphi 0, %s387
    %s389 = sphi 0, %s387
    %s390 = sphi 0, %s389
    %s404 = sphi 0, %s390
    %s408 = sphi 0, %s408
    %s410 = sphi 0, %s408
    %s411 = sphi 0, %s410
    %s425 = sphi 0, %s411
    %s433 = sphi 0, %s435
    %s436 = sphi 0, %s433
    %s437 = sphi 0, %s436
    %s453 = sphi 0, %s437
    %s461 = sphi 0, %s463
    %s464 = sphi 0, %s461
    %s465 = sphi 0, %s464
    %s481 = sphi 0, %s465
  $region4: #{_lambda_.1} parent=0 // loop_header_branch
    %33 = sbr.rel (%p31) target = $region8
  $region5: #{_lambda_.1} parent=0 // loop_body
    %s35 = ssub.s32 %s30, 1
    %s36 = ssub.s32 %s30, 2
    %s43 = sadd.s32 1, %s38
    %p44 = scmp.ge.s32.totalorder %s43, 2
    %s45 = scalar_select %p44, 0, %s43
    %s46 = sadd.s32 1, %s37
    %s47 = scalar_select %p44, %s46, %s37
    %p48 = scmp.ge.s32.totalorder %s47, 2
    %s49 = scalar_select %p48, 0, %s47
    %s50 = ssub.s32 %s37, %s49
    %s51 = ssub.s32 %s38, %s45
    %s52 = sor.u32 %s50, %s51
    %p53 = scmp.eq.s32.totalorder %s52, 0
    %s55 = sadd.s32 %s54, 1
    %s56 = scalar_select %p53, %s54, %s55
    %p59 = pneg %p53
    %p60 = scmp.eq.s32.totalorder %s30, 3
    %p61 = por %p59, %p60
    %p62 = scmp.ne.s32.totalorder %s54, %s57
    %p63 = scmp.eq.s32.totalorder %s30, 0
    %p64 = por %p62, %p63
    %p65 = scmp.ne.s32.totalorder %s54, %s57
    %p66 = scmp.eq.s32.totalorder %s35, 3
    %p67 = por %p65, %p66
    %p68 = scmp.ne.s32.totalorder %s57, %s58
    %p69 = scmp.eq.s32.totalorder %s35, 0
    %p70 = por %p68, %p69
    %p71 = scmp.ne.s32.totalorder %s57, %s58
    %p72 = scmp.eq.s32.totalorder %s36, 3
    %p73 = por %p71, %p72
    %p75 = scmp.ne.s32.totalorder %s58, %s74
    %p76 = scmp.eq.s32.totalorder %s36, 0
    %p77 = por %p75, %p76
    %s78 = smul.u32 %s38, 128
    %s79 = sld [smem:[#allocation5 + %s78]]
    %s80 = smul.u32 %s45, 128
    %s81 = sld [smem:[#allocation5 + %s80]]
    %s82 = ssub.s32 %s37, %s49
    %s83 = ssub.s32 %s79, %s81
    %s84 = sor.u32 %s82, %s83
    %p85 = scmp.eq.s32.totalorder %s84, 0
    %s87 = sadd.s32 %s86, 1
    %s88 = scalar_select %p85, %s86, %s87
    %p91 = pneg %p85
    %p92 = scmp.eq.s32.totalorder %s30, 3
    %p93 = por %p91, %p92
    %p94 = scmp.ne.s32.totalorder %s86, %s89
    %p95 = scmp.eq.s32.totalorder %s30, 0
    %p96 = por %p94, %p95
    %p97 = scmp.ne.s32.totalorder %s86, %s89
    %p98 = scmp.eq.s32.totalorder %s35, 3
    %p99 = por %p97, %p98
    %p100 = scmp.ne.s32.totalorder %s89, %s90
    %p101 = scmp.eq.s32.totalorder %s35, 0
    %p102 = por %p100, %p101
    %p103 = scmp.ne.s32.totalorder %s89, %s90
    %p104 = scmp.eq.s32.totalorder %s36, 3
    %p105 = por %p103, %p104
    %p107 = scmp.ne.s32.totalorder %s90, %s106
    %p108 = scmp.eq.s32.totalorder %s36, 0
    %p109 = por %p107, %p108
    %s110 = smul.u32 %s38, 128
    %s111 = sadd.s32 %s110, 1
    %s112 = sld [smem:[#allocation5 + %s111]]
    %s113 = smul.u32 %s45, 128
    %s114 = sadd.s32 %s113, 1
    %s115 = sld [smem:[#allocation5 + %s114]]
    %s116 = ssub.s32 %s37, %s49
    %s117 = ssub.s32 %s112, %s115
    %s118 = sor.u32 %s116, %s117
    %p119 = scmp.eq.s32.totalorder %s118, 0
    %s121 = sadd.s32 %s120, 1
    %s122 = scalar_select %p119, %s120, %s121
    %p125 = pneg %p119
    %p126 = scmp.eq.s32.totalorder %s30, 3
    %p127 = por %p125, %p126
    %p128 = scmp.ne.s32.totalorder %s120, %s123
    %p129 = scmp.eq.s32.totalorder %s30, 0
    %p130 = por %p128, %p129
    %p131 = scmp.ne.s32.totalorder %s120, %s123
    %p132 = scmp.eq.s32.totalorder %s35, 3
    %p133 = por %p131, %p132
    %p134 = scmp.ne.s32.totalorder %s123, %s124
    %p135 = scmp.eq.s32.totalorder %s35, 0
    %p136 = por %p134, %p135
    %p137 = scmp.ne.s32.totalorder %s123, %s124
    %p138 = scmp.eq.s32.totalorder %s36, 3
    %p139 = por %p137, %p138
    %p141 = scmp.ne.s32.totalorder %s124, %s140
    %p142 = scmp.eq.s32.totalorder %s36, 0
    %p143 = por %p141, %p142
    %s144 = ssub.s32 %s37, %s49
    %s145 = ssub.s32 %s38, %s45
    %s146 = sor.u32 %s144, %s145
    %p147 = scmp.eq.s32.totalorder %s146, 0
    %s149 = sadd.s32 %s148, 1
    %s150 = scalar_select %p147, %s148, %s149
    %p153 = pneg %p147
    %p154 = scmp.eq.s32.totalorder %s30, 3
    %p155 = por %p153, %p154
    %p156 = scmp.ne.s32.totalorder %s148, %s151
    %p157 = scmp.eq.s32.totalorder %s30, 0
    %p158 = por %p156, %p157
    %p159 = scmp.ne.s32.totalorder %s148, %s151
    %p160 = scmp.eq.s32.totalorder %s35, 3
    %p161 = por %p159, %p160
    %p162 = scmp.ne.s32.totalorder %s151, %s152
    %p163 = scmp.eq.s32.totalorder %s35, 0
    %p164 = por %p162, %p163
    %p165 = scmp.ne.s32.totalorder %s151, %s152
    %p166 = scmp.eq.s32.totalorder %s36, 3
    %p167 = por %p165, %p166
    %p169 = scmp.ne.s32.totalorder %s152, %s168
    %p170 = scmp.eq.s32.totalorder %s36, 0
    %p171 = por %p169, %p170
    %s172 = smul.u32 %s38, 128
    %s173 = sadd.s32 %s172, 2
    %s174 = sld [smem:[#allocation5 + %s173]]
    %s175 = smul.u32 %s45, 128
    %s176 = sadd.s32 %s175, 2
    %s177 = sld [smem:[#allocation5 + %s176]]
    %s178 = ssub.s32 %s37, %s49
    %s179 = ssub.s32 %s174, %s177
    %s180 = sor.u32 %s178, %s179
    %p181 = scmp.eq.s32.totalorder %s180, 0
    %s183 = sadd.s32 %s182, 1
    %s184 = scalar_select %p181, %s182, %s183
    %p187 = pneg %p181
    %p188 = scmp.eq.s32.totalorder %s30, 3
    %p189 = por %p187, %p188
    %p190 = scmp.ne.s32.totalorder %s182, %s185
    %p191 = scmp.eq.s32.totalorder %s30, 0
    %p192 = por %p190, %p191
    %p193 = scmp.ne.s32.totalorder %s182, %s185
    %p194 = scmp.eq.s32.totalorder %s35, 3
    %p195 = por %p193, %p194
    %p196 = scmp.ne.s32.totalorder %s185, %s186
    %p197 = scmp.eq.s32.totalorder %s35, 0
    %p198 = por %p196, %p197
    %p199 = scmp.ne.s32.totalorder %s185, %s186
    %p200 = scmp.eq.s32.totalorder %s36, 3
    %p201 = por %p199, %p200
    %p203 = scmp.ne.s32.totalorder %s186, %s202
    %p204 = scmp.eq.s32.totalorder %s36, 0
    %p205 = por %p203, %p204
    %s206 = smul.u32 %s38, 128
    %s207 = sadd.s32 %s206, 3
    %s208 = sld [smem:[#allocation5 + %s207]]
    %s209 = smul.u32 %s45, 128
    %s210 = sadd.s32 %s209, 3
    %s211 = sld [smem:[#allocation5 + %s210]]
    %s212 = ssub.s32 %s37, %s49
    %s213 = ssub.s32 %s208, %s211
    %s214 = sor.u32 %s212, %s213
    %p215 = scmp.eq.s32.totalorder %s214, 0
    %s217 = sadd.s32 %s216, 1
    %s218 = scalar_select %p215, %s216, %s217
    %p221 = pneg %p215
    %p222 = scmp.eq.s32.totalorder %s30, 3
    %p223 = por %p221, %p222
    %p224 = scmp.ne.s32.totalorder %s216, %s219
    %p225 = scmp.eq.s32.totalorder %s30, 0
    %p226 = por %p224, %p225
    %p227 = scmp.ne.s32.totalorder %s216, %s219
    %p228 = scmp.eq.s32.totalorder %s35, 3
    %p229 = por %p227, %p228
    %p230 = scmp.ne.s32.totalorder %s219, %s220
    %p231 = scmp.eq.s32.totalorder %s35, 0
    %p232 = por %p230, %p231
    %p233 = scmp.ne.s32.totalorder %s219, %s220
    %p234 = scmp.eq.s32.totalorder %s36, 3
    %p235 = por %p233, %p234
    %p237 = scmp.ne.s32.totalorder %s220, %s236
    %p238 = scmp.eq.s32.totalorder %s36, 0
    %p239 = por %p237, %p238
    %s241 = sadd.s32 %s240, 1
    %p244 = scmp.eq.s32.totalorder %s30, 3
    %p245 = scmp.ne.s32.totalorder %s240, %s242
    %p246 = scmp.eq.s32.totalorder %s30, 0
    %p247 = por %p245, %p246
    %p248 = scmp.ne.s32.totalorder %s240, %s242
    %p249 = scmp.eq.s32.totalorder %s35, 3
    %p250 = por %p248, %p249
    %p251 = scmp.ne.s32.totalorder %s242, %s243
    %p252 = scmp.eq.s32.totalorder %s35, 0
    %p253 = por %p251, %p252
    %p254 = scmp.ne.s32.totalorder %s242, %s243
    %p255 = scmp.eq.s32.totalorder %s36, 3
    %p256 = por %p254, %p255
    %p258 = scmp.ne.s32.totalorder %s243, %s257
    %p259 = scmp.eq.s32.totalorder %s36, 0
    %p260 = por %p258, %p259
    %s262 = sadd.s32 %s261, 1
    %p265 = scmp.eq.s32.totalorder %s30, 3
    %p266 = scmp.ne.s32.totalorder %s261, %s263
    %p267 = scmp.eq.s32.totalorder %s30, 0
    %p268 = por %p266, %p267
    %p269 = scmp.ne.s32.totalorder %s261, %s263
    %p270 = scmp.eq.s32.totalorder %s35, 3
    %p271 = por %p269, %p270
    %p272 = scmp.ne.s32.totalorder %s263, %s264
    %p273 = scmp.eq.s32.totalorder %s35, 0
    %p274 = por %p272, %p273
    %p275 = scmp.ne.s32.totalorder %s263, %s264
    %p276 = scmp.eq.s32.totalorder %s36, 3
    %p277 = por %p275, %p276
    %p279 = scmp.ne.s32.totalorder %s264, %s278
    %p280 = scmp.eq.s32.totalorder %s36, 0
    %p281 = por %p279, %p280
    %s283 = sadd.s32 %s282, 1
    %p286 = scmp.eq.s32.totalorder %s30, 3
    %p287 = scmp.ne.s32.totalorder %s282, %s284
    %p288 = scmp.eq.s32.totalorder %s30, 0
    %p289 = por %p287, %p288
    %p290 = scmp.ne.s32.totalorder %s282, %s284
    %p291 = scmp.eq.s32.totalorder %s35, 3
    %p292 = por %p290, %p291
    %p293 = scmp.ne.s32.totalorder %s284, %s285
    %p294 = scmp.eq.s32.totalorder %s35, 0
    %p295 = por %p293, %p294
    %p296 = scmp.ne.s32.totalorder %s284, %s285
    %p297 = scmp.eq.s32.totalorder %s36, 3
    %p298 = por %p296, %p297
    %p300 = scmp.ne.s32.totalorder %s285, %s299
    %p301 = scmp.eq.s32.totalorder %s36, 0
    %p302 = por %p300, %p301
    %s304 = sadd.s32 %s303, 1
    %p307 = scmp.eq.s32.totalorder %s30, 3
    %p308 = scmp.ne.s32.totalorder %s303, %s305
    %p309 = scmp.eq.s32.totalorder %s30, 0
    %p310 = por %p308, %p309
    %p311 = scmp.ne.s32.totalorder %s303, %s305
    %p312 = scmp.eq.s32.totalorder %s35, 3
    %p313 = por %p311, %p312
    %p314 = scmp.ne.s32.totalorder %s305, %s306
    %p315 = scmp.eq.s32.totalorder %s35, 0
    %p316 = por %p314, %p315
    %p317 = scmp.ne.s32.totalorder %s305, %s306
    %p318 = scmp.eq.s32.totalorder %s36, 3
    %p319 = por %p317, %p318
    %p321 = scmp.ne.s32.totalorder %s306, %s320
    %p322 = scmp.eq.s32.totalorder %s36, 0
    %p323 = por %p321, %p322
    %s325 = sadd.s32 %s324, 1
    %p328 = scmp.eq.s32.totalorder %s30, 3
    %p329 = scmp.ne.s32.totalorder %s324, %s326
    %p330 = scmp.eq.s32.totalorder %s30, 0
    %p331 = por %p329, %p330
    %p332 = scmp.ne.s32.totalorder %s324, %s326
    %p333 = scmp.eq.s32.totalorder %s35, 3
    %p334 = por %p332, %p333
    %p335 = scmp.ne.s32.totalorder %s326, %s327
    %p336 = scmp.eq.s32.totalorder %s35, 0
    %p337 = por %p335, %p336
    %p338 = scmp.ne.s32.totalorder %s326, %s327
    %p339 = scmp.eq.s32.totalorder %s36, 3
    %p340 = por %p338, %p339
    %p342 = scmp.ne.s32.totalorder %s327, %s341
    %p343 = scmp.eq.s32.totalorder %s36, 0
    %p344 = por %p342, %p343
    %s346 = sadd.s32 %s345, 1
    %p349 = scmp.eq.s32.totalorder %s30, 3
    %p350 = scmp.ne.s32.totalorder %s345, %s347
    %p351 = scmp.eq.s32.totalorder %s30, 0
    %p352 = por %p350, %p351
    %p353 = scmp.ne.s32.totalorder %s345, %s347
    %p354 = scmp.eq.s32.totalorder %s35, 3
    %p355 = por %p353, %p354
    %p356 = scmp.ne.s32.totalorder %s347, %s348
    %p357 = scmp.eq.s32.totalorder %s35, 0
    %p358 = por %p356, %p357
    %p359 = scmp.ne.s32.totalorder %s347, %s348
    %p360 = scmp.eq.s32.totalorder %s36, 3
    %p361 = por %p359, %p360
    %p363 = scmp.ne.s32.totalorder %s348, %s362
    %p364 = scmp.eq.s32.totalorder %s36, 0
    %p365 = por %p363, %p364
    %s367 = sadd.s32 %s366, 1
    %p370 = scmp.eq.s32.totalorder %s30, 3
    %p371 = scmp.ne.s32.totalorder %s366, %s368
    %p372 = scmp.eq.s32.totalorder %s30, 0
    %p373 = por %p371, %p372
    %p374 = scmp.ne.s32.totalorder %s366, %s368
    %p375 = scmp.eq.s32.totalorder %s35, 3
    %p376 = por %p374, %p375
    %p377 = scmp.ne.s32.totalorder %s368, %s369
    %p378 = scmp.eq.s32.totalorder %s35, 0
    %p379 = por %p377, %p378
    %p380 = scmp.ne.s32.totalorder %s368, %s369
    %p381 = scmp.eq.s32.totalorder %s36, 3
    %p382 = por %p380, %p381
    %p384 = scmp.ne.s32.totalorder %s369, %s383
    %p385 = scmp.eq.s32.totalorder %s36, 0
    %p386 = por %p384, %p385
    %s388 = sadd.s32 %s387, 1
    %p391 = scmp.eq.s32.totalorder %s30, 3
    %p392 = scmp.ne.s32.totalorder %s387, %s389
    %p393 = scmp.eq.s32.totalorder %s30, 0
    %p394 = por %p392, %p393
    %p395 = scmp.ne.s32.totalorder %s387, %s389
    %p396 = scmp.eq.s32.totalorder %s35, 3
    %p397 = por %p395, %p396
    %p398 = scmp.ne.s32.totalorder %s389, %s390
    %p399 = scmp.eq.s32.totalorder %s35, 0
    %p400 = por %p398, %p399
    %p401 = scmp.ne.s32.totalorder %s389, %s390
    %p402 = scmp.eq.s32.totalorder %s36, 3
    %p403 = por %p401, %p402
    %p405 = scmp.ne.s32.totalorder %s390, %s404
    %p406 = scmp.eq.s32.totalorder %s36, 0
    %p407 = por %p405, %p406
    %s409 = sadd.s32 %s408, 1
    %p412 = scmp.eq.s32.totalorder %s30, 3
    %p413 = scmp.ne.s32.totalorder %s408, %s410
    %p414 = scmp.eq.s32.totalorder %s30, 0
    %p415 = por %p413, %p414
    %p416 = scmp.ne.s32.totalorder %s408, %s410
    %p417 = scmp.eq.s32.totalorder %s35, 3
    %p418 = por %p416, %p417
    %p419 = scmp.ne.s32.totalorder %s410, %s411
    %p420 = scmp.eq.s32.totalorder %s35, 0
    %p421 = por %p419, %p420
    %p422 = scmp.ne.s32.totalorder %s410, %s411
    %p423 = scmp.eq.s32.totalorder %s36, 3
    %p424 = por %p422, %p423
    %p426 = scmp.ne.s32.totalorder %s411, %s425
    %p427 = scmp.eq.s32.totalorder %s36, 0
    %p428 = por %p426, %p427
    %s429 = ssub.s32 %s37, %s49
    %s430 = ssub.s32 %s38, %s45
    %s431 = sor.u32 %s429, %s430
    %p432 = scmp.eq.s32.totalorder %s431, 0
    %s434 = sadd.s32 %s433, 1
    %s435 = scalar_select %p432, %s433, %s434
    %p438 = pneg %p432
    %p439 = scmp.eq.s32.totalorder %s30, 3
    %p440 = por %p438, %p439
    %p441 = scmp.ne.s32.totalorder %s433, %s436
    %p442 = scmp.eq.s32.totalorder %s30, 0
    %p443 = por %p441, %p442
    %p444 = scmp.ne.s32.totalorder %s433, %s436
    %p445 = scmp.eq.s32.totalorder %s35, 3
    %p446 = por %p444, %p445
    %p447 = scmp.ne.s32.totalorder %s436, %s437
    %p448 = scmp.eq.s32.totalorder %s35, 0
    %p449 = por %p447, %p448
    %p450 = scmp.ne.s32.totalorder %s436, %s437
    %p451 = scmp.eq.s32.totalorder %s36, 3
    %p452 = por %p450, %p451
    %p454 = scmp.ne.s32.totalorder %s437, %s453
    %p455 = scmp.eq.s32.totalorder %s36, 0
    %p456 = por %p454, %p455
    %s457 = ssub.s32 %s37, %s49
    %s458 = ssub.s32 %s38, %s45
    %s459 = sor.u32 %s457, %s458
    %p460 = scmp.eq.s32.totalorder %s459, 0
    %s462 = sadd.s32 %s461, 1
    %s463 = scalar_select %p460, %s461, %s462
    %p466 = pneg %p460
    %p467 = scmp.eq.s32.totalorder %s30, 3
    %p468 = por %p466, %p467
    %p469 = scmp.ne.s32.totalorder %s461, %s464
    %p470 = scmp.eq.s32.totalorder %s30, 0
    %p471 = por %p469, %p470
    %p472 = scmp.ne.s32.totalorder %s461, %s464
    %p473 = scmp.eq.s32.totalorder %s35, 3
    %p474 = por %p472, %p473
    %p475 = scmp.ne.s32.totalorder %s464, %s465
    %p476 = scmp.eq.s32.totalorder %s35, 0
    %p477 = por %p475, %p476
    %p478 = scmp.ne.s32.totalorder %s464, %s465
    %p479 = scmp.eq.s32.totalorder %s36, 3
    %p480 = por %p478, %p479
    %p482 = scmp.ne.s32.totalorder %s465, %s481
    %p483 = scmp.eq.s32.totalorder %s36, 0
    %p484 = por %p482, %p483
    %p485 = scmp.le.s32.totalorder 1, %s30
    %p486 = scmp.lt.s32.totalorder %s30, 5
    %p487 = pnand %p485, %p486
    %p488 = pneg %p487
    // Predicated region
    $region9: #{_lambda_.1} parent=5 // pred_check
      _
    $region10: #{_lambda_.1} parent=5 // pred_check_branch
      %490 = sbr.rel (%p487) target = $region12
    $region11: #{_lambda_.1} parent=5 // pred_region
      %s491 = ssub.s32 %s30, 1
      // Predicated region
      $region13: #{_lambda_.1} parent=11 // pred_check
        %p492 = pneg %p253
      $region14: #{_lambda_.1} parent=11 // pred_check_branch
        %494 = sbr.rel (%p492) target = $region16
      $region15: #{_lambda_.1} parent=11 // pred_region
        _
      $region16: #{_lambda_.1} parent=11 // pred_fallthru
        _
      // Predicated region
      $region17: #{_lambda_.1} parent=11 // pred_check
        %p495 = pneg %p274
      $region18: #{_lambda_.1} parent=11 // pred_check_branch
        %497 = sbr.rel (%p495) target = $region20
      $region19: #{_lambda_.1} parent=11 // pred_region
        _
      $region20: #{_lambda_.1} parent=11 // pred_fallthru
        _
      // Predicated region
      $region21: #{_lambda_.1} parent=11 // pred_check
        %p498 = pneg %p295
      $region22: #{_lambda_.1} parent=11 // pred_check_branch
        %500 = sbr.rel (%p498) target = $region24
      $region23: #{_lambda_.1} parent=11 // pred_region
        _
      $region24: #{_lambda_.1} parent=11 // pred_fallthru
        _
      // Predicated region
      $region25: #{_lambda_.1} parent=11 // pred_check
        %p501 = pneg %p316
      $region26: #{_lambda_.1} parent=11 // pred_check_branch
        %503 = sbr.rel (%p501) target = $region28
      $region27: #{_lambda_.1} parent=11 // pred_region
        _
      $region28: #{_lambda_.1} parent=11 // pred_fallthru
        _
      // Predicated region
      $region29: #{_lambda_.1} parent=11 // pred_check
        %p504 = pneg %p337
      $region30: #{_lambda_.1} parent=11 // pred_check_branch
        %506 = sbr.rel (%p504) target = $region32
      $region31: #{_lambda_.1} parent=11 // pred_region
        _
      $region32: #{_lambda_.1} parent=11 // pred_fallthru
        _
      // Predicated region
      $region33: #{_lambda_.1} parent=11 // pred_check
        %p507 = pneg %p358
      $region34: #{_lambda_.1} parent=11 // pred_check_branch
        %509 = sbr.rel (%p507) target = $region36
      $region35: #{_lambda_.1} parent=11 // pred_region
        _
      $region36: #{_lambda_.1} parent=11 // pred_fallthru
        _
      // Predicated region
      $region37: #{_lambda_.1} parent=11 // pred_check
        %p510 = pneg %p379
      $region38: #{_lambda_.1} parent=11 // pred_check_branch
        %512 = sbr.rel (%p510) target = $region40
      $region39: #{_lambda_.1} parent=11 // pred_region
        _
      $region40: #{_lambda_.1} parent=11 // pred_fallthru
        _
      // Predicated region
      $region41: #{_lambda_.1} parent=11 // pred_check
        %p513 = pneg %p400
      $region42: #{_lambda_.1} parent=11 // pred_check_branch
        %515 = sbr.rel (%p513) target = $region44
      $region43: #{_lambda_.1} parent=11 // pred_region
        _
      $region44: #{_lambda_.1} parent=11 // pred_fallthru
        _
      // Predicated region
      $region45: #{_lambda_.1} parent=11 // pred_check
        %p516 = pneg %p421
      $region46: #{_lambda_.1} parent=11 // pred_check_branch
        %518 = sbr.rel (%p516) target = $region48
      $region47: #{_lambda_.1} parent=11 // pred_region
        _
      $region48: #{_lambda_.1} parent=11 // pred_fallthru
        _
    $region12: #{_lambda_.1} parent=5 // pred_fallthru
      _
    %p519 = scmp.lt.s32.totalorder %s30, 4
    // Predicated region
    $region49: #{_lambda_.1} parent=5 // pred_check
      %p520 = pneg %p519
    $region50: #{_lambda_.1} parent=5 // pred_check_branch
      %522 = sbr.rel (%p520) target = $region52
    $region51: #{_lambda_.1} parent=5 // pred_region
      // Predicated region
      $region53: #{_lambda_.1} parent=51 // pred_check
        %p523 = pneg %p64
      $region54: #{_lambda_.1} parent=51 // pred_check_branch
        %525 = sbr.rel (%p523) target = $region56
      $region55: #{_lambda_.1} parent=51 // pred_region
        %s526 = smul.u32 16, %s38
        %p527 = scmp.lt.s32.totalorder %s37, 1
        %s528 = scalar_select %p527, %s37, 1
        %p529 = scmp.lt.s32.totalorder %s526, 31
        %s530 = scalar_select %p529, %s526, 31
        %s531 = smul.addr %s528, 32
        %s532 = sadd.s32 %s530, %s531
        %s533 = smul.addr %s532, 8
        %s534 = scalar_lea.vmem %s1, %s533
        %s535 = smul.u32 16, %s38
      $region56: #{_lambda_.1} parent=51 // pred_fallthru
        _
      // Predicated region
      $region57: #{_lambda_.1} parent=51 // pred_check
        %p536 = pneg %p96
      $region58: #{_lambda_.1} parent=51 // pred_check_branch
        %538 = sbr.rel (%p536) target = $region60
      $region59: #{_lambda_.1} parent=51 // pred_region
        %s539 = smul.u32 %s38, 128
        %s540 = sld [smem:[#allocation5 + %s539]]
        %p541 = scmp.lt.s32.totalorder %s37, 1
        %s542 = scalar_select %p541, %s37, 1
        %p543 = scmp.lt.s32.totalorder %s540, 15
        %s544 = scalar_select %p543, %s540, 15
        %s545 = smul.addr %s544, 2
        %s546 = smul.addr %s542, 32
        %s547 = sadd.s32 %s545, %s546
        %s548 = smul.addr %s547, 8
        %s549 = scalar_lea.vmem %s2, %s548
        %s550 = smul.u32 %s38, 128
        %s551 = sld [smem:[#allocation5 + %s550]]
      $region60: #{_lambda_.1} parent=51 // pred_fallthru
        _
      // Predicated region
      $region61: #{_lambda_.1} parent=51 // pred_check
        %p552 = pneg %p130
      $region62: #{_lambda_.1} parent=51 // pred_check_branch
        %554 = sbr.rel (%p552) target = $region64
      $region63: #{_lambda_.1} parent=51 // pred_region
        %s555 = smul.u32 %s38, 128
        %s556 = sadd.s32 %s555, 1
        %s557 = sld [smem:[#allocation5 + %s556]]
        %p558 = scmp.lt.s32.totalorder %s37, 1
        %s559 = scalar_select %p558, %s37, 1
        %p560 = scmp.lt.s32.totalorder %s557, 15
        %s561 = scalar_select %p560, %s557, 15
        %s562 = smul.addr %s561, 2
        %s563 = smul.addr %s559, 32
        %s564 = sadd.s32 %s562, %s563
        %s565 = smul.addr %s564, 8
        %s566 = scalar_lea.vmem %s3, %s565
        %s567 = smul.u32 %s38, 128
        %s568 = sadd.s32 %s567, 1
        %s569 = sld [smem:[#allocation5 + %s568]]
      $region64: #{_lambda_.1} parent=51 // pred_fallthru
        _
      // Predicated region
      $region65: #{_lambda_.1} parent=51 // pred_check
        %p570 = pneg %p158
      $region66: #{_lambda_.1} parent=51 // pred_check_branch
        %572 = sbr.rel (%p570) target = $region68
      $region67: #{_lambda_.1} parent=51 // pred_region
        %s573 = smul.u32 4, %s38
        %p574 = scmp.lt.s32.totalorder %s37, 1
        %s575 = scalar_select %p574, %s37, 1
        %p576 = scmp.lt.s32.totalorder %s573, 7
        %s577 = scalar_select %p576, %s573, 7
        %s578 = smul.addr %s575, 8
        %s579 = sadd.s32 %s577, %s578
        %s580 = smul.addr %s579, 8
        %s581 = scalar_lea.vmem %s4, %s580
        %s582 = smul.u32 4, %s38
      $region68: #{_lambda_.1} parent=51 // pred_fallthru
        _
      // Predicated region
      $region69: #{_lambda_.1} parent=51 // pred_check
        %p583 = pneg %p192
      $region70: #{_lambda_.1} parent=51 // pred_check_branch
        %585 = sbr.rel (%p583) target = $region72
      $region71: #{_lambda_.1} parent=51 // pred_region
        %s586 = smul.u32 %s38, 128
        %s587 = sadd.s32 %s586, 2
        %s588 = sld [smem:[#allocation5 + %s587]]
        %p589 = scmp.lt.s32.totalorder %s37, 1
        %s590 = scalar_select %p589, %s37, 1
        %p591 = scmp.lt.s32.totalorder %s588, 7
        %s592 = scalar_select %p591, %s588, 7
        %s593 = smul.addr %s590, 8
        %s594 = sadd.s32 %s592, %s593
        %s595 = smul.addr %s594, 8
        %s596 = scalar_lea.vmem %s5, %s595
        %s597 = smul.u32 %s38, 128
        %s598 = sadd.s32 %s597, 2
        %s599 = sld [smem:[#allocation5 + %s598]]
      $region72: #{_lambda_.1} parent=51 // pred_fallthru
        _
      // Predicated region
      $region73: #{_lambda_.1} parent=51 // pred_check
        %p600 = pneg %p226
      $region74: #{_lambda_.1} parent=51 // pred_check_branch
        %602 = sbr.rel (%p600) target = $region76
      $region75: #{_lambda_.1} parent=51 // pred_region
        %s603 = smul.u32 %s38, 128
        %s604 = sadd.s32 %s603, 3
        %s605 = sld [smem:[#allocation5 + %s604]]
        %p606 = scmp.lt.s32.totalorder %s37, 1
        %s607 = scalar_select %p606, %s37, 1
        %p608 = scmp.lt.s32.totalorder %s605, 7
        %s609 = scalar_select %p608, %s605, 7
        %s610 = smul.addr %s607, 8
        %s611 = sadd.s32 %s609, %s610
        %s612 = smul.addr %s611, 8
        %s613 = scalar_lea.vmem %s6, %s612
        %s614 = smul.u32 %s38, 128
        %s615 = sadd.s32 %s614, 3
        %s616 = sld [smem:[#allocation5 + %s615]]
      $region76: #{_lambda_.1} parent=51 // pred_fallthru
        _
    $region52: #{_lambda_.1} parent=5 // pred_fallthru
      _
    %p617 = scmp.le.s32.totalorder 1, %s30
    %p618 = scmp.lt.s32.totalorder %s30, 5
    %p619 = pnand %p617, %p618
    %p620 = pneg %p619
    // Predicated region
    $region77: #{_lambda_.1} parent=5 // pred_check
      _
    $region78: #{_lambda_.1} parent=5 // pred_check_branch
      %622 = sbr.rel (%p619) target = $region80
    $region79: #{_lambda_.1} parent=5 // pred_region
      %s623 = ssub.s32 %s30, 1
      %s624 = smul.u32 16, %s40
      %p625 = scmp.lt.s32.totalorder %s39, 1
      %s626 = scalar_select %p625, %s39, 1
      %p627 = scmp.lt.s32.totalorder %s624, 31
      %s628 = scalar_select %p627, %s624, 31
      %s629 = smul.addr %s626, 32
      %s630 = sadd.s32 %s628, %s629
      %s631 = smul.addr %s630, 8
      %s632 = scalar_lea.vmem %s1, %s631
      %p633 = pneg %p70
      %p634 = pneg %p67
      %s635 = smul.u32 %s40, 128
      %s636 = sld [smem:[#allocation5 + %s635]]
      %p637 = scmp.lt.s32.totalorder %s39, 1
      %s638 = scalar_select %p637, %s39, 1
      %p639 = scmp.lt.s32.totalorder %s636, 15
      %s640 = scalar_select %p639, %s636, 15
      %s641 = smul.addr %s640, 2
      %s642 = smul.addr %s638, 32
      %s643 = sadd.s32 %s641, %s642
      %s644 = smul.addr %s643, 8
      %s645 = scalar_lea.vmem %s2, %s644
      %p646 = pneg %p102
      %p647 = pneg %p99
      %s648 = smul.u32 %s40, 128
      %s649 = sadd.s32 %s648, 1
      %s650 = sld [smem:[#allocation5 + %s649]]
      %p651 = scmp.lt.s32.totalorder %s39, 1
      %s652 = scalar_select %p651, %s39, 1
      %p653 = scmp.lt.s32.totalorder %s650, 15
      %s654 = scalar_select %p653, %s650, 15
      %s655 = smul.addr %s654, 2
      %s656 = smul.addr %s652, 32
      %s657 = sadd.s32 %s655, %s656
      %s658 = smul.addr %s657, 8
      %s659 = scalar_lea.vmem %s3, %s658
      %p660 = pneg %p136
      %p661 = pneg %p133
      %s662 = smul.u32 4, %s40
      %p663 = scmp.lt.s32.totalorder %s39, 1
      %s664 = scalar_select %p663, %s39, 1
      %p665 = scmp.lt.s32.totalorder %s662, 7
      %s666 = scalar_select %p665, %s662, 7
      %s667 = smul.addr %s664, 8
      %s668 = sadd.s32 %s666, %s667
      %s669 = smul.addr %s668, 8
      %s670 = scalar_lea.vmem %s4, %s669
      %p671 = pneg %p164
      %p672 = pneg %p161
      %s673 = smul.u32 %s40, 128
      %s674 = sadd.s32 %s673, 2
      %s675 = sld [smem:[#allocation5 + %s674]]
      %p676 = scmp.lt.s32.totalorder %s39, 1
      %s677 = scalar_select %p676, %s39, 1
      %p678 = scmp.lt.s32.totalorder %s675, 7
      %s679 = scalar_select %p678, %s675, 7
      %s680 = smul.addr %s677, 8
      %s681 = sadd.s32 %s679, %s680
      %s682 = smul.addr %s681, 8
      %s683 = scalar_lea.vmem %s5, %s682
      %p684 = pneg %p198
      %p685 = pneg %p195
      %s686 = smul.u32 %s40, 128
      %s687 = sadd.s32 %s686, 3
      %s688 = sld [smem:[#allocation5 + %s687]]
      %p689 = scmp.lt.s32.totalorder %s39, 1
      %s690 = scalar_select %p689, %s39, 1
      %p691 = scmp.lt.s32.totalorder %s688, 7
      %s692 = scalar_select %p691, %s688, 7
      %s693 = smul.addr %s690, 8
      %s694 = sadd.s32 %s692, %s693
      %s695 = smul.addr %s694, 8
      %s696 = scalar_lea.vmem %s6, %s695
      %p697 = pneg %p232
      %p698 = pneg %p229
      %p699 = pneg %p253
      %p700 = pneg %p250
      %p701 = pneg %p274
      %p702 = pneg %p271
      %p703 = pneg %p295
      %p704 = pneg %p292
      %p705 = pneg %p316
      %p706 = pneg %p313
      %p707 = pneg %p337
      %p708 = pneg %p334
      %p709 = pneg %p358
      %p710 = pneg %p355
      %p711 = pneg %p379
      %p712 = pneg %p376
      %p713 = pneg %p400
      %p714 = pneg %p397
      %p715 = pneg %p421
      %p716 = pneg %p418
      %p717 = pneg %p449
      %p718 = pneg %p446
      %s719 = smul.u32 8, %s40
      %p720 = scmp.lt.s32.totalorder %s39, 1
      %s721 = scalar_select %p720, %s39, 1
      %p722 = scmp.lt.s32.totalorder %s719, 15
      %s723 = scalar_select %p722, %s719, 15
      %s724 = smul.addr %s723, 2
      %s725 = smul.addr %s721, 32
      %s726 = sadd.s32 %s724, %s725
      %s727 = smul.addr %s726, 8
      %s728 = scalar_lea.vmem %s16, %s727
      %p729 = pneg %p477
      %p730 = pneg %p474
      %s731 = smul.u32 8, %s40
      %p732 = scmp.lt.s32.totalorder %s39, 1
      %s733 = scalar_select %p732, %s39, 1
      %p734 = scmp.lt.s32.totalorder %s731, 15
      %s735 = scalar_select %p734, %s731, 15
      %s736 = smul.addr %s735, 2
      %s737 = smul.addr %s733, 32
      %s738 = sadd.s32 %s736, %s737
      %s739 = smul.addr %s738, 8
      %s740 = scalar_lea.vmem %s17, %s739
      %s741 = smul.u32 16, %s40
      %p742 = scmp.lt.s32.totalorder %s39, 1
      %s743 = scalar_select %p742, %s39, 1
      %p744 = scmp.lt.s32.totalorder %s741, 31
      %s745 = scalar_select %p744, %s741, 31
      %s746 = smul.addr %s743, 32
      %s747 = sadd.s32 %s745, %s746
      %s748 = smul.addr %s747, 8
      %s749 = scalar_lea.vmem %s1, %s748
      %s750 = smul.u32 16, %s40
      %s751 = smul.u32 %s40, 128
      %s752 = sld [smem:[#allocation5 + %s751]]
      %p753 = scmp.lt.s32.totalorder %s39, 1
      %s754 = scalar_select %p753, %s39, 1
      %p755 = scmp.lt.s32.totalorder %s752, 15
      %s756 = scalar_select %p755, %s752, 15
      %s757 = smul.addr %s756, 2
      %s758 = smul.addr %s754, 32
      %s759 = sadd.s32 %s757, %s758
      %s760 = smul.addr %s759, 8
      %s761 = scalar_lea.vmem %s2, %s760
      %s762 = smul.u32 %s40, 128
      %s763 = sld [smem:[#allocation5 + %s762]]
      %s764 = smul.u32 %s40, 128
      %s765 = sadd.s32 %s764, 1
      %s766 = sld [smem:[#allocation5 + %s765]]
      %p767 = scmp.lt.s32.totalorder %s39, 1
      %s768 = scalar_select %p767, %s39, 1
      %p769 = scmp.lt.s32.totalorder %s766, 15
      %s770 = scalar_select %p769, %s766, 15
      %s771 = smul.addr %s770, 2
      %s772 = smul.addr %s768, 32
      %s773 = sadd.s32 %s771, %s772
      %s774 = smul.addr %s773, 8
      %s775 = scalar_lea.vmem %s3, %s774
      %s776 = smul.u32 %s40, 128
      %s777 = sadd.s32 %s776, 1
      %s778 = sld [smem:[#allocation5 + %s777]]
      %s779 = smul.u32 4, %s40
      %p780 = scmp.lt.s32.totalorder %s39, 1
      %s781 = scalar_select %p780, %s39, 1
      %p782 = scmp.lt.s32.totalorder %s779, 7
      %s783 = scalar_select %p782, %s779, 7
      %s784 = smul.addr %s781, 8
      %s785 = sadd.s32 %s783, %s784
      %s786 = smul.addr %s785, 8
      %s787 = scalar_lea.vmem %s4, %s786
      %s788 = smul.u32 4, %s40
      %s789 = smul.u32 %s40, 128
      %s790 = sadd.s32 %s789, 2
      %s791 = sld [smem:[#allocation5 + %s790]]
      %p792 = scmp.lt.s32.totalorder %s39, 1
      %s793 = scalar_select %p792, %s39, 1
      %p794 = scmp.lt.s32.totalorder %s791, 7
      %s795 = scalar_select %p794, %s791, 7
      %s796 = smul.addr %s793, 8
      %s797 = sadd.s32 %s795, %s796
      %s798 = smul.addr %s797, 8
      %s799 = scalar_lea.vmem %s5, %s798
      %s800 = smul.u32 %s40, 128
      %s801 = sadd.s32 %s800, 2
      %s802 = sld [smem:[#allocation5 + %s801]]
      %s803 = smul.u32 %s40, 128
      %s804 = sadd.s32 %s803, 3
      %s805 = sld [smem:[#allocation5 + %s804]]
      %p806 = scmp.lt.s32.totalorder %s39, 1
      %s807 = scalar_select %p806, %s39, 1
      %p808 = scmp.lt.s32.totalorder %s805, 7
      %s809 = scalar_select %p808, %s805, 7
      %s810 = smul.addr %s807, 8
      %s811 = sadd.s32 %s809, %s810
      %s812 = smul.addr %s811, 8
      %s813 = scalar_lea.vmem %s6, %s812
      %s814 = smul.u32 %s40, 128
      %s815 = sadd.s32 %s814, 3
      %s816 = sld [smem:[#allocation5 + %s815]]
      %s817 = smul.u32 8, %s40
      %p818 = scmp.lt.s32.totalorder %s39, 1
      %s819 = scalar_select %p818, %s39, 1
      %p820 = scmp.lt.s32.totalorder %s817, 15
      %s821 = scalar_select %p820, %s817, 15
      %s822 = smul.addr %s821, 2
      %s823 = smul.addr %s819, 32
      %s824 = sadd.s32 %s822, %s823
      %s825 = smul.addr %s824, 8
      %s826 = scalar_lea.vmem %s16, %s825
      %s827 = smul.u32 8, %s40
      %s828 = smul.u32 8, %s40
      %p829 = scmp.lt.s32.totalorder %s39, 1
      %s830 = scalar_select %p829, %s39, 1
      %p831 = scmp.lt.s32.totalorder %s828, 15
      %s832 = scalar_select %p831, %s828, 15
      %s833 = smul.addr %s832, 2
      %s834 = smul.addr %s830, 32
      %s835 = sadd.s32 %s833, %s834
      %s836 = smul.addr %s835, 8
      %s837 = scalar_lea.vmem %s17, %s836
      %s838 = smul.u32 8, %s40
      %v839 = vld [vmem:[%s7] sm:$0xf]
      %v840 = vld [vmem:[%s8] sm:$0x1]
      %v841 = vld [vmem:[%s9] sm:$0x1]
      %v842 = vld [vmem:[%s10] sm:$0x1]
      %v843 = vld [vmem:[%s10 + $0x1] sm:$0x1]
      %v844 = vld [vmem:[%s11] sm:$0x1]
      %v845 = vld [vmem:[%s11 + $0x1] sm:$0x1]
      %v846 = vld [vmem:[%s12] sm:$0x1]
      %v847 = vld [vmem:[%s14] sm:$0x1]
      %v848 = vld [vmem:[%s15] sm:$0x1]
      %v849 = vld [vmem:[%s787] sm:$0xff]
      %v850 = vld [vmem:[%s787 + $0x8] sm:$0xff]
      %v851 = vld [vmem:[%s787 + $0x10] sm:$0xff]
      %v852 = vld [vmem:[%s787 + $0x18] sm:$0xff]
      %v853 = vld [vmem:[%s799] sm:$0xff]
      %v854 = vld [vmem:[%s813] sm:$0xff]
      %v855 = vlaneseq
      %v856 = vshrl.u32 %v855, 7
      %v857 = vsub.s32 0, %v856
      %v858 = vrot.slane %v853, %v857
      %v859 = vlaneseq
      %v860 = vshrl.u32 %v859, 7
      %v861 = vsub.s32 0, %v860
      %v862 = vrot.slane %v849, %v861
      %v863 = vlaneseq
      %v864 = vshrl.u32 %v863, 7
      %v865 = vsub.s32 0, %v864
      %v866 = vrot.slane %v850, %v865
      %v867 = vlaneseq
      %v868 = vshrl.u32 %v867, 7
      %v869 = vsub.s32 0, %v868
      %v870 = vrot.slane %v851, %v869
      %v871 = vlaneseq
      %v872 = vshrl.u32 %v871, 7
      %v873 = vsub.s32 0, %v872
      %v874 = vrot.slane %v852, %v873
      %v875 = vlaneseq
      %v876 = vshrl.u32 %v875, 7
      %v877 = vsub.s32 0, %v876
      %v878 = vrot.slane %v854, %v877
      %vm879 = vcmask 123904
      %880 = vst.msk [vmem:[#allocation2] sm:$0x3] %vm879, %v858
      %881 = vst.msk [vmem:[#allocation2 + $0x10] sm:$0x3] %vm879, %v862
      %882 = vst.msk [vmem:[#allocation2 + $0x20] sm:$0x3] %vm879, %v862
      %883 = vst.msk [vmem:[#allocation2 + $0x30] sm:$0x3] %vm879, %v866
      %884 = vst.msk [vmem:[#allocation2 + $0x40] sm:$0x3] %vm879, %v866
      %885 = vst.msk [vmem:[#allocation2 + $0x50] sm:$0x3] %vm879, %v870
      %886 = vst.msk [vmem:[#allocation2 + $0x60] sm:$0x3] %vm879, %v870
      %887 = vst.msk [vmem:[#allocation2 + $0x70] sm:$0x3] %vm879, %v874
      %888 = vst.msk [vmem:[#allocation2 + $0x80] sm:$0x3] %vm879, %v874
      %889 = vst.msk [vmem:[#allocation2 + $0x90] sm:$0x3] %vm879, %v878
      %v890 = vlaneseq
      %v891 = vshrl.u32 %v890, 7
      %v892 = vsub.s32 1, %v891
      %v893 = vrot.slane %v853, %v892
      %v894 = vlaneseq
      %v895 = vshrl.u32 %v894, 7
      %v896 = vsub.s32 1, %v895
      %v897 = vrot.slane %v849, %v896
      %v898 = vlaneseq
      %v899 = vshrl.u32 %v898, 7
      %v900 = vsub.s32 1, %v899
      %v901 = vrot.slane %v850, %v900
      %v902 = vlaneseq
      %v903 = vshrl.u32 %v902, 7
      %v904 = vsub.s32 1, %v903
      %v905 = vrot.slane %v851, %v904
      %v906 = vlaneseq
      %v907 = vshrl.u32 %v906, 7
      %v908 = vsub.s32 1, %v907
      %v909 = vrot.slane %v852, %v908
      %v910 = vlaneseq
      %v911 = vshrl.u32 %v910, 7
      %v912 = vsub.s32 1, %v911
      %v913 = vrot.slane %v854, %v912
      %914 = vst.msk [vmem:[#allocation2 + $0x2] sm:$0x3] %vm879, %v893
      %915 = vst.msk [vmem:[#allocation2 + $0x12] sm:$0x3] %vm879, %v897
      %916 = vst.msk [vmem:[#allocation2 + $0x22] sm:$0x3] %vm879, %v897
      %917 = vst.msk [vmem:[#allocation2 + $0x32] sm:$0x3] %vm879, %v901
      %918 = vst.msk [vmem:[#allocation2 + $0x42] sm:$0x3] %vm879, %v901
      %919 = vst.msk [vmem:[#allocation2 + $0x52] sm:$0x3] %vm879, %v905
      %920 = vst.msk [vmem:[#allocation2 + $0x62] sm:$0x3] %vm879, %v905
      %921 = vst.msk [vmem:[#allocation2 + $0x72] sm:$0x3] %vm879, %v909
      %922 = vst.msk [vmem:[#allocation2 + $0x82] sm:$0x3] %vm879, %v909
      %923 = vst.msk [vmem:[#allocation2 + $0x92] sm:$0x3] %vm879, %v913
      %v924 = vlaneseq
      %v925 = vshrl.u32 %v924, 7
      %v926 = vsub.s32 2, %v925
      %v927 = vrot.slane %v853, %v926
      %v928 = vlaneseq
      %v929 = vshrl.u32 %v928, 7
      %v930 = vsub.s32 2, %v929
      %v931 = vrot.slane %v849, %v930
      %v932 = vlaneseq
      %v933 = vshrl.u32 %v932, 7
      %v934 = vsub.s32 2, %v933
      %v935 = vrot.slane %v850, %v934
      %v936 = vlaneseq
      %v937 = vshrl.u32 %v936, 7
      %v938 = vsub.s32 2, %v937
      %v939 = vrot.slane %v851, %v938
      %v940 = vlaneseq
      %v941 = vshrl.u32 %v940, 7
      %v942 = vsub.s32 2, %v941
      %v943 = vrot.slane %v852, %v942
      %v944 = vlaneseq
      %v945 = vshrl.u32 %v944, 7
      %v946 = vsub.s32 2, %v945
      %v947 = vrot.slane %v854, %v946
      %948 = vst.msk [vmem:[#allocation2 + $0x4] sm:$0x3] %vm879, %v927
      %949 = vst.msk [vmem:[#allocation2 + $0x14] sm:$0x3] %vm879, %v931
      %950 = vst.msk [vmem:[#allocation2 + $0x24] sm:$0x3] %vm879, %v931
      %951 = vst.msk [vmem:[#allocation2 + $0x34] sm:$0x3] %vm879, %v935
      %952 = vst.msk [vmem:[#allocation2 + $0x44] sm:$0x3] %vm879, %v935
      %953 = vst.msk [vmem:[#allocation2 + $0x54] sm:$0x3] %vm879, %v939
      %954 = vst.msk [vmem:[#allocation2 + $0x64] sm:$0x3] %vm879, %v939
      %955 = vst.msk [vmem:[#allocation2 + $0x74] sm:$0x3] %vm879, %v943
      %956 = vst.msk [vmem:[#allocation2 + $0x84] sm:$0x3] %vm879, %v943
      %957 = vst.msk [vmem:[#allocation2 + $0x94] sm:$0x3] %vm879, %v947
      %v958 = vlaneseq
      %v959 = vshrl.u32 %v958, 7
      %v960 = vsub.s32 3, %v959
      %v961 = vrot.slane %v853, %v960
      %v962 = vlaneseq
      %v963 = vshrl.u32 %v962, 7
      %v964 = vsub.s32 3, %v963
      %v965 = vrot.slane %v849, %v964
      %v966 = vlaneseq
      %v967 = vshrl.u32 %v966, 7
      %v968 = vsub.s32 3, %v967
      %v969 = vrot.slane %v850, %v968
      %v970 = vlaneseq
      %v971 = vshrl.u32 %v970, 7
      %v972 = vsub.s32 3, %v971
      %v973 = vrot.slane %v851, %v972
      %v974 = vlaneseq
      %v975 = vshrl.u32 %v974, 7
      %v976 = vsub.s32 3, %v975
      %v977 = vrot.slane %v852, %v976
      %v978 = vlaneseq
      %v979 = vshrl.u32 %v978, 7
      %v980 = vsub.s32 3, %v979
      %v981 = vrot.slane %v854, %v980
      %982 = vst.msk [vmem:[#allocation2 + $0x6] sm:$0x3] %vm879, %v961
      %983 = vst.msk [vmem:[#allocation2 + $0x16] sm:$0x3] %vm879, %v965
      %984 = vst.msk [vmem:[#allocation2 + $0x26] sm:$0x3] %vm879, %v965
      %985 = vst.msk [vmem:[#allocation2 + $0x36] sm:$0x3] %vm879, %v969
      %986 = vst.msk [vmem:[#allocation2 + $0x46] sm:$0x3] %vm879, %v969
      %987 = vst.msk [vmem:[#allocation2 + $0x56] sm:$0x3] %vm879, %v973
      %988 = vst.msk [vmem:[#allocation2 + $0x66] sm:$0x3] %vm879, %v973
      %989 = vst.msk [vmem:[#allocation2 + $0x76] sm:$0x3] %vm879, %v977
      %990 = vst.msk [vmem:[#allocation2 + $0x86] sm:$0x3] %vm879, %v977
      %991 = vst.msk [vmem:[#allocation2 + $0x96] sm:$0x3] %vm879, %v981
      %v992 = vlaneseq
      %v993 = vshrl.u32 %v992, 7
      %v994 = vsub.s32 4, %v993
      %v995 = vrot.slane %v853, %v994
      %v996 = vlaneseq
      %v997 = vshrl.u32 %v996, 7
      %v998 = vsub.s32 4, %v997
      %v999 = vrot.slane %v849, %v998
      %v1000 = vlaneseq
      %v1001 = vshrl.u32 %v1000, 7
      %v1002 = vsub.s32 4, %v1001
      %v1003 = vrot.slane %v850, %v1002
      %v1004 = vlaneseq
      %v1005 = vshrl.u32 %v1004, 7
      %v1006 = vsub.s32 4, %v1005
      %v1007 = vrot.slane %v851, %v1006
      %v1008 = vlaneseq
      %v1009 = vshrl.u32 %v1008, 7
      %v1010 = vsub.s32 4, %v1009
      %v1011 = vrot.slane %v852, %v1010
      %v1012 = vlaneseq
      %v1013 = vshrl.u32 %v1012, 7
      %v1014 = vsub.s32 4, %v1013
      %v1015 = vrot.slane %v854, %v1014
      %1016 = vst.msk [vmem:[#allocation2 + $0x8] sm:$0x3] %vm879, %v995
      %1017 = vst.msk [vmem:[#allocation2 + $0x18] sm:$0x3] %vm879, %v999
      %1018 = vst.msk [vmem:[#allocation2 + $0x28] sm:$0x3] %vm879, %v999
      %1019 = vst.msk [vmem:[#allocation2 + $0x38] sm:$0x3] %vm879, %v1003
      %1020 = vst.msk [vmem:[#allocation2 + $0x48] sm:$0x3] %vm879, %v1003
      %1021 = vst.msk [vmem:[#allocation2 + $0x58] sm:$0x3] %vm879, %v1007
      %1022 = vst.msk [vmem:[#allocation2 + $0x68] sm:$0x3] %vm879, %v1007
      %1023 = vst.msk [vmem:[#allocation2 + $0x78] sm:$0x3] %vm879, %v1011
      %1024 = vst.msk [vmem:[#allocation2 + $0x88] sm:$0x3] %vm879, %v1011
      %1025 = vst.msk [vmem:[#allocation2 + $0x98] sm:$0x3] %vm879, %v1015
      %v1026 = vlaneseq
      %v1027 = vshrl.u32 %v1026, 7
      %v1028 = vsub.s32 5, %v1027
      %v1029 = vrot.slane %v853, %v1028
      %v1030 = vlaneseq
      %v1031 = vshrl.u32 %v1030, 7
      %v1032 = vsub.s32 5, %v1031
      %v1033 = vrot.slane %v849, %v1032
      %v1034 = vlaneseq
      %v1035 = vshrl.u32 %v1034, 7
      %v1036 = vsub.s32 5, %v1035
      %v1037 = vrot.slane %v850, %v1036
      %v1038 = vlaneseq
      %v1039 = vshrl.u32 %v1038, 7
      %v1040 = vsub.s32 5, %v1039
      %v1041 = vrot.slane %v851, %v1040
      %v1042 = vlaneseq
      %v1043 = vshrl.u32 %v1042, 7
      %v1044 = vsub.s32 5, %v1043
      %v1045 = vrot.slane %v852, %v1044
      %v1046 = vlaneseq
      %v1047 = vshrl.u32 %v1046, 7
      %v1048 = vsub.s32 5, %v1047
      %v1049 = vrot.slane %v854, %v1048
      %1050 = vst.msk [vmem:[#allocation2 + $0xa] sm:$0x3] %vm879, %v1029
      %1051 = vst.msk [vmem:[#allocation2 + $0x1a] sm:$0x3] %vm879, %v1033
      %1052 = vst.msk [vmem:[#allocation2 + $0x2a] sm:$0x3] %vm879, %v1033
      %1053 = vst.msk [vmem:[#allocation2 + $0x3a] sm:$0x3] %vm879, %v1037
      %1054 = vst.msk [vmem:[#allocation2 + $0x4a] sm:$0x3] %vm879, %v1037
      %1055 = vst.msk [vmem:[#allocation2 + $0x5a] sm:$0x3] %vm879, %v1041
      %1056 = vst.msk [vmem:[#allocation2 + $0x6a] sm:$0x3] %vm879, %v1041
      %1057 = vst.msk [vmem:[#allocation2 + $0x7a] sm:$0x3] %vm879, %v1045
      %1058 = vst.msk [vmem:[#allocation2 + $0x8a] sm:$0x3] %vm879, %v1045
      %1059 = vst.msk [vmem:[#allocation2 + $0x9a] sm:$0x3] %vm879, %v1049
      %v1060 = vlaneseq
      %v1061 = vshrl.u32 %v1060, 7
      %v1062 = vsub.s32 6, %v1061
      %v1063 = vrot.slane %v853, %v1062
      %v1064 = vlaneseq
      %v1065 = vshrl.u32 %v1064, 7
      %v1066 = vsub.s32 6, %v1065
      %v1067 = vrot.slane %v849, %v1066
      %v1068 = vlaneseq
      %v1069 = vshrl.u32 %v1068, 7
      %v1070 = vsub.s32 6, %v1069
      %v1071 = vrot.slane %v850, %v1070
      %v1072 = vlaneseq
      %v1073 = vshrl.u32 %v1072, 7
      %v1074 = vsub.s32 6, %v1073
      %v1075 = vrot.slane %v851, %v1074
      %v1076 = vlaneseq
      %v1077 = vshrl.u32 %v1076, 7
      %v1078 = vsub.s32 6, %v1077
      %v1079 = vrot.slane %v852, %v1078
      %v1080 = vlaneseq
      %v1081 = vshrl.u32 %v1080, 7
      %v1082 = vsub.s32 6, %v1081
      %v1083 = vrot.slane %v854, %v1082
      %1084 = vst.msk [vmem:[#allocation2 + $0xc] sm:$0x3] %vm879, %v1063
      %1085 = vst.msk [vmem:[#allocation2 + $0x1c] sm:$0x3] %vm879, %v1067
      %1086 = vst.msk [vmem:[#allocation2 + $0x2c] sm:$0x3] %vm879, %v1067
      %1087 = vst.msk [vmem:[#allocation2 + $0x3c] sm:$0x3] %vm879, %v1071
      %1088 = vst.msk [vmem:[#allocation2 + $0x4c] sm:$0x3] %vm879, %v1071
      %1089 = vst.msk [vmem:[#allocation2 + $0x5c] sm:$0x3] %vm879, %v1075
      %1090 = vst.msk [vmem:[#allocation2 + $0x6c] sm:$0x3] %vm879, %v1075
      %1091 = vst.msk [vmem:[#allocation2 + $0x7c] sm:$0x3] %vm879, %v1079
      %1092 = vst.msk [vmem:[#allocation2 + $0x8c] sm:$0x3] %vm879, %v1079
      %1093 = vst.msk [vmem:[#allocation2 + $0x9c] sm:$0x3] %vm879, %v1083
      %v1094 = vlaneseq
      %v1095 = vshrl.u32 %v1094, 7
      %v1096 = vsub.s32 7, %v1095
      %v1097 = vrot.slane %v853, %v1096
      %v1098 = vlaneseq
      %v1099 = vshrl.u32 %v1098, 7
      %v1100 = vsub.s32 7, %v1099
      %v1101 = vrot.slane %v849, %v1100
      %v1102 = vlaneseq
      %v1103 = vshrl.u32 %v1102, 7
      %v1104 = vsub.s32 7, %v1103
      %v1105 = vrot.slane %v850, %v1104
      %v1106 = vlaneseq
      %v1107 = vshrl.u32 %v1106, 7
      %v1108 = vsub.s32 7, %v1107
      %v1109 = vrot.slane %v851, %v1108
      %v1110 = vlaneseq
      %v1111 = vshrl.u32 %v1110, 7
      %v1112 = vsub.s32 7, %v1111
      %v1113 = vrot.slane %v852, %v1112
      %v1114 = vlaneseq
      %v1115 = vshrl.u32 %v1114, 7
      %v1116 = vsub.s32 7, %v1115
      %v1117 = vrot.slane %v854, %v1116
      %1118 = vst.msk [vmem:[#allocation2 + $0xe] sm:$0x3] %vm879, %v1097
      %1119 = vst.msk [vmem:[#allocation2 + $0x1e] sm:$0x3] %vm879, %v1101
      %1120 = vst.msk [vmem:[#allocation2 + $0x2e] sm:$0x3] %vm879, %v1101
      %1121 = vst.msk [vmem:[#allocation2 + $0x3e] sm:$0x3] %vm879, %v1105
      %1122 = vst.msk [vmem:[#allocation2 + $0x4e] sm:$0x3] %vm879, %v1105
      %1123 = vst.msk [vmem:[#allocation2 + $0x5e] sm:$0x3] %vm879, %v1109
      %1124 = vst.msk [vmem:[#allocation2 + $0x6e] sm:$0x3] %vm879, %v1109
      %1125 = vst.msk [vmem:[#allocation2 + $0x7e] sm:$0x3] %vm879, %v1113
      %1126 = vst.msk [vmem:[#allocation2 + $0x8e] sm:$0x3] %vm879, %v1113
      %1127 = vst.msk [vmem:[#allocation2 + $0x9e] sm:$0x3] %vm879, %v1117
      %s1128 = scalar_lea.vmem [#allocation2], 16
      %v1129 = vld [vmem:[%s1128] sm:$0xff]
      %v1130 = vld [vmem:[%s1128 + $0x8] sm:$0xff]
      %v1131 = vld [vmem:[%s1128 + $0x10] sm:$0xff]
      %v1132 = vld [vmem:[%s1128 + $0x18] sm:$0xff]
      %v1133 = vld [vmem:[%s1128 + $0x20] sm:$0xff]
      %v1134 = vld [vmem:[%s1128 + $0x28] sm:$0xff]
      %v1135 = vld [vmem:[%s1128 + $0x30] sm:$0xff]
      %v1136 = vld [vmem:[%s1128 + $0x38] sm:$0xff]
      %v1137 = vld [vmem:[%s1128 + $0x40] sm:$0xff]
      %v1138 = vld [vmem:[%s1128 + $0x48] sm:$0xff]
      %v1139 = vld [vmem:[%s1128 + $0x50] sm:$0xff]
      %v1140 = vld [vmem:[%s1128 + $0x58] sm:$0xff]
      %v1141 = vld [vmem:[%s1128 + $0x60] sm:$0xff]
      %v1142 = vld [vmem:[%s1128 + $0x68] sm:$0xff]
      %v1143 = vld [vmem:[%s1128 + $0x70] sm:$0xff]
      %v1144 = vld [vmem:[%s1128 + $0x78] sm:$0xff]
      %v1145 = vld [vmem:[#allocation2] sm:$0xff]
      %v1146 = vld [vmem:[#allocation2 + $0x8] sm:$0xff]
      %s1147 = scalar_lea.vmem [#allocation2], 144
      %v1148 = vld [vmem:[%s1147] sm:$0xff]
      %v1149 = vld [vmem:[%s1147 + $0x8] sm:$0xff]
      %v1150 = vld [vmem:[%s749] sm:$0xff]
      %v1151 = vld [vmem:[%s749 + $0x8] sm:$0xff]
      %v1152 = vld [vmem:[%s749 + $0x10] sm:$0xff]
      %v1153 = vld [vmem:[%s749 + $0x18] sm:$0xff]
      %v1154 = vld [vmem:[%s749 + $0x20] sm:$0xff]
      %v1155 = vld [vmem:[%s749 + $0x28] sm:$0xff]
      %v1156 = vld [vmem:[%s749 + $0x30] sm:$0xff]
      %v1157 = vld [vmem:[%s749 + $0x38] sm:$0xff]
      %v1158 = vld [vmem:[%s749 + $0x40] sm:$0xff]
      %v1159 = vld [vmem:[%s749 + $0x48] sm:$0xff]
      %v1160 = vld [vmem:[%s749 + $0x50] sm:$0xff]
      %v1161 = vld [vmem:[%s749 + $0x58] sm:$0xff]
      %v1162 = vld [vmem:[%s749 + $0x60] sm:$0xff]
      %v1163 = vld [vmem:[%s749 + $0x68] sm:$0xff]
      %v1164 = vld [vmem:[%s749 + $0x70] sm:$0xff]
      %v1165 = vld [vmem:[%s749 + $0x78] sm:$0xff]
      %vm1166 = vcmask 31744
      %v1168 = vsel %vm1166, %v1150, 0
      %v1171 = vsel %vm1166, %v1151, 0
      %v1174 = vsel %vm1166, %v1152, 0
      %v1177 = vsel %vm1166, %v1153, 0
      %v1180 = vsel %vm1166, %v1154, 0
      %v1183 = vsel %vm1166, %v1155, 0
      %v1186 = vsel %vm1166, %v1156, 0
      %v1189 = vsel %vm1166, %v1157, 0
      %v1192 = vsel %vm1166, %v1158, 0
      %v1195 = vsel %vm1166, %v1159, 0
      %v1198 = vsel %vm1166, %v1160, 0
      %v1201 = vsel %vm1166, %v1161, 0
      %v1204 = vsel %vm1166, %v1162, 0
      %v1207 = vsel %vm1166, %v1163, 0
      %v1210 = vsel %vm1166, %v1164, 0
      %v1213 = vsel %vm1166, %v1165, 0
      %vm1215 = vcmask 1043456
      %v1217 = vsel %vm1215, %v839, 0
      %1219 = vmatprep.subr.mxu0 0.0
      %1220 = vmatpush1.msra.mxu0 0.0
      %1221 = vmatprep.subr.mxu0 0.0
      %1222 = vmatpush1.msra.mxu0 0.0
      %1223 = vmatprep.subr.mxu0 0.0
      %1224 = vmatpush1.msra.mxu0 0.0
      %1225 = vmatprep.subr.mxu0 0.0
      %1226 = vmatpush1.msra.mxu0 0.0
      %1227 = vmatprep.subr.mxu0 0.0
      %1228 = vmatpush1.msra.mxu0 0.0
      %1229 = vmatprep.subr.mxu0 0.0
      %1230 = vmatpush1.msra.mxu0 0.0
      %1231 = vmatprep.subr.mxu0 0.0
      %1232 = vmatpush1.msra.mxu0 0.0
      %1233 = vmatprep.subr.mxu0 0.0
      %1234 = vmatpush1.msra.mxu0 0.0
      %1235 = vmatprep.subr.mxu0 0.0
      %1236 = vmatpush1.msra.mxu0 0.0
      %1237 = vmatprep.subr.mxu0 0.0
      %1238 = vmatpush1.msra.mxu0 0.0
      %1239 = vmatprep.subr.mxu0 0.0
      %1240 = vmatpush1.msra.mxu0 0.0
      %1241 = vmatprep.subr.mxu0 0.0
      %1242 = vmatpush1.msra.mxu0 0.0
      %1243 = vmatprep.subr.mxu0 0.0
      %1244 = vmatpush1.msra.mxu0 0.0
      %1245 = vmatprep.subr.mxu0 0.0
      %1246 = vmatpush1.msra.mxu0 0.0
      %1247 = vmatprep.subr.mxu0 0.0
      %1248 = vmatpush1.msra.mxu0 0.0
      %1249 = vmatprep.subr.mxu0 0.0
      %1250 = vmatpush1.msra.mxu0 %v1217
      %1251 = vmatprep.subr.mxu0 0.0
      %1252 = vmatpush2.msra.mxu0 0.0
      %1253 = vmatprep.subr.mxu0 0.0
      %1254 = vmatpush2.msra.mxu0 0.0
      %1255 = vmatprep.subr.mxu0 0.0
      %1256 = vmatpush2.msra.mxu0 0.0
      %1257 = vmatprep.subr.mxu0 0.0
      %1258 = vmatpush2.msra.mxu0 0.0
      %1259 = vmatprep.subr.mxu0 0.0
      %1260 = vmatpush2.msra.mxu0 0.0
      %1261 = vmatprep.subr.mxu0 0.0
      %1262 = vmatpush2.msra.mxu0 0.0
      %1263 = vmatprep.subr.mxu0 0.0
      %1264 = vmatpush2.msra.mxu0 0.0
      %1265 = vmatprep.subr.mxu0 0.0
      %1266 = vmatpush2.msra.mxu0 0.0
      %1267 = vmatprep.subr.mxu0 0.0
      %1268 = vmatpush2.msra.mxu0 0.0
      %1269 = vmatprep.subr.mxu0 0.0
      %1270 = vmatpush2.msra.mxu0 0.0
      %1271 = vmatprep.subr.mxu0 0.0
      %1272 = vmatpush2.msra.mxu0 0.0
      %1273 = vmatprep.subr.mxu0 0.0
      %1274 = vmatpush2.msra.mxu0 0.0
      %1275 = vmatprep.subr.mxu0 0.0
      %1276 = vmatpush2.msra.mxu0 0.0
      %1277 = vmatprep.subr.mxu0 0.0
      %1278 = vmatpush2.msra.mxu0 0.0
      %1279 = vmatprep.subr.mxu0 0.0
      %1280 = vmatpush2.msra.mxu0 0.0
      %1281 = vmatprep.subr.mxu0 0.0
      %1282 = vmatpush2.msra.mxu0 0.0
      %1283 = vmatprep.mubr.f32.mxu0 0.0
      %1284 = vmatmul.mubr.f32.gmra.mxu0 %v1168
      %v1285 = vpop.f32.mrf.mxu0
      %v1286 = vadd.f32 0.0, %v1285
      %v1287 = vpop.f32.mrf.mxu0
      %1288 = vmatprep.mubr.f32.mxu0 0.0
      %1289 = vmatmul.mubr.f32.gmra.mxu0 %v1171
      %v1290 = vpop.f32.mrf.mxu0
      %v1291 = vadd.f32 0.0, %v1290
      %v1292 = vpop.f32.mrf.mxu0
      %1293 = vmatprep.mubr.f32.mxu0 0.0
      %1294 = vmatmul.mubr.f32.gmra.mxu0 %v1174
      %v1295 = vpop.f32.mrf.mxu0
      %v1296 = vadd.f32 0.0, %v1295
      %v1297 = vpop.f32.mrf.mxu0
      %1298 = vmatprep.mubr.f32.mxu0 0.0
      %1299 = vmatmul.mubr.f32.gmra.mxu0 %v1177
      %v1300 = vpop.f32.mrf.mxu0
      %v1301 = vadd.f32 0.0, %v1300
      %v1302 = vpop.f32.mrf.mxu0
      %1303 = vmatprep.mubr.f32.mxu0 0.0
      %1304 = vmatmul.mubr.f32.gmra.mxu0 %v1180
      %v1305 = vpop.f32.mrf.mxu0
      %v1306 = vadd.f32 0.0, %v1305
      %v1307 = vpop.f32.mrf.mxu0
      %1308 = vmatprep.mubr.f32.mxu0 0.0
      %1309 = vmatmul.mubr.f32.gmra.mxu0 %v1183
      %v1310 = vpop.f32.mrf.mxu0
      %v1311 = vadd.f32 0.0, %v1310
      %v1312 = vpop.f32.mrf.mxu0
      %1313 = vmatprep.mubr.f32.mxu0 0.0
      %1314 = vmatmul.mubr.f32.gmra.mxu0 %v1186
      %v1315 = vpop.f32.mrf.mxu0
      %v1316 = vadd.f32 0.0, %v1315
      %v1317 = vpop.f32.mrf.mxu0
      %1318 = vmatprep.mubr.f32.mxu0 0.0
      %1319 = vmatmul.mubr.f32.gmra.mxu0 %v1189
      %v1320 = vpop.f32.mrf.mxu0
      %v1321 = vadd.f32 0.0, %v1320
      %v1322 = vpop.f32.mrf.mxu0
      %1323 = vmatprep.mubr.f32.mxu0 0.0
      %1324 = vmatmul.mubr.f32.gmra.mxu0 %v1192
      %v1325 = vpop.f32.mrf.mxu0
      %v1326 = vadd.f32 0.0, %v1325
      %v1327 = vpop.f32.mrf.mxu0
      %1328 = vmatprep.mubr.f32.mxu0 0.0
      %1329 = vmatmul.mubr.f32.gmra.mxu0 %v1195
      %v1330 = vpop.f32.mrf.mxu0
      %v1331 = vadd.f32 0.0, %v1330
      %v1332 = vpop.f32.mrf.mxu0
      %1333 = vmatprep.mubr.f32.mxu0 0.0
      %1334 = vmatmul.mubr.f32.gmra.mxu0 %v1198
      %v1335 = vpop.f32.mrf.mxu0
      %v1336 = vadd.f32 0.0, %v1335
      %v1337 = vpop.f32.mrf.mxu0
      %1338 = vmatprep.mubr.f32.mxu0 0.0
      %1339 = vmatmul.mubr.f32.gmra.mxu0 %v1201
      %v1340 = vpop.f32.mrf.mxu0
      %v1341 = vadd.f32 0.0, %v1340
      %v1342 = vpop.f32.mrf.mxu0
      %1343 = vmatprep.mubr.f32.mxu0 0.0
      %1344 = vmatmul.mubr.f32.gmra.mxu0 %v1204
      %v1345 = vpop.f32.mrf.mxu0
      %v1346 = vadd.f32 0.0, %v1345
      %v1347 = vpop.f32.mrf.mxu0
      %1348 = vmatprep.mubr.f32.mxu0 0.0
      %1349 = vmatmul.mubr.f32.gmra.mxu0 %v1207
      %v1350 = vpop.f32.mrf.mxu0
      %v1351 = vadd.f32 0.0, %v1350
      %v1352 = vpop.f32.mrf.mxu0
      %1353 = vmatprep.mubr.f32.mxu0 0.0
      %1354 = vmatmul.mubr.f32.gmra.mxu0 %v1210
      %v1355 = vpop.f32.mrf.mxu0
      %v1356 = vadd.f32 0.0, %v1355
      %v1357 = vpop.f32.mrf.mxu0
      %1358 = vmatprep.mubr.f32.mxu0 0.0
      %1359 = vmatmul.mubr.f32.gmra.mxu0 %v1213
      %v1360 = vpop.f32.mrf.mxu0
      %v1361 = vadd.f32 0.0, %v1360
      %v1362 = vpop.f32.mrf.mxu0
      %1363 = vdwg.mxu0
      %v1365 = vlaneseq
      %v1366 = vshrl.u32 %v1365, 7
      %v1367 = vsub.s32 0, %v1366
      %v1368 = vrot.slane %v840, %v1367
      %v1370 = vmul.f32 %v1286, %v1368
      %v1371 = vmul.f32 %v1291, %v1368
      %v1372 = vmul.f32 %v1296, %v1368
      %v1373 = vmul.f32 %v1301, %v1368
      %v1374 = vmul.f32 %v1306, %v1368
      %v1375 = vmul.f32 %v1311, %v1368
      %v1376 = vmul.f32 %v1316, %v1368
      %v1377 = vmul.f32 %v1321, %v1368
      %v1378 = vmul.f32 %v1326, %v1368
      %v1379 = vmul.f32 %v1331, %v1368
      %v1380 = vmul.f32 %v1336, %v1368
      %v1381 = vmul.f32 %v1341, %v1368
      %v1382 = vmul.f32 %v1346, %v1368
      %v1383 = vmul.f32 %v1351, %v1368
      %v1384 = vmul.f32 %v1356, %v1368
      %v1385 = vmul.f32 %v1361, %v1368
      %v1387 = vlaneseq
      %v1388 = vshrl.u32 %v1387, 7
      %v1389 = vsub.s32 0, %v1388
      %v1390 = vrot.slane %v841, %v1389
      %v1392 = vadd.f32 %v1370, %v1390
      %v1393 = vadd.f32 %v1371, %v1390
      %v1394 = vadd.f32 %v1372, %v1390
      %v1395 = vadd.f32 %v1373, %v1390
      %v1396 = vadd.f32 %v1374, %v1390
      %v1397 = vadd.f32 %v1375, %v1390
      %v1398 = vadd.f32 %v1376, %v1390
      %v1399 = vadd.f32 %v1377, %v1390
      %v1400 = vadd.f32 %v1378, %v1390
      %v1401 = vadd.f32 %v1379, %v1390
      %v1402 = vadd.f32 %v1380, %v1390
      %v1403 = vadd.f32 %v1381, %v1390
      %v1404 = vadd.f32 %v1382, %v1390
      %v1405 = vadd.f32 %v1383, %v1390
      %v1406 = vadd.f32 %v1384, %v1390
      %v1407 = vadd.f32 %v1385, %v1390
      %v1408 = vlaneseq
      %v1409 = vshrl.u32 %v1408, 7
      %v1410 = vsub.s32 0, %v1409
      %v1411 = vrot.slane %v842, %v1410
      %v1412 = vmul.f32 %v1392, %v1411
      %v1413 = vmul.f32 %v1393, %v1411
      %v1414 = vmul.f32 %v1394, %v1411
      %v1415 = vmul.f32 %v1395, %v1411
      %v1416 = vmul.f32 %v1396, %v1411
      %v1417 = vmul.f32 %v1397, %v1411
      %v1418 = vmul.f32 %v1398, %v1411
      %v1419 = vmul.f32 %v1399, %v1411
      %v1420 = vmul.f32 %v1400, %v1411
      %v1421 = vmul.f32 %v1401, %v1411
      %v1422 = vmul.f32 %v1402, %v1411
      %v1423 = vmul.f32 %v1403, %v1411
      %v1424 = vmul.f32 %v1404, %v1411
      %v1425 = vmul.f32 %v1405, %v1411
      %v1426 = vmul.f32 %v1406, %v1411
      %v1427 = vmul.f32 %v1407, %v1411
      %vm1428 = vcmask 130048
      %v1429 = vsel %vm1428, %v1412, 0.0
      %1430 = vadd.xlane.f32.xlu0 %v1429
      %v1431 = vpop.xlane.xlu0 %1430
      %v1432 = vsel %vm1428, %v1413, 0.0
      %1433 = vadd.xlane.f32.xlu0 %v1432
      %v1434 = vpop.xlane.xlu0 %1433
      %v1435 = vsel %vm1428, %v1414, 0.0
      %1436 = vadd.xlane.f32.xlu0 %v1435
      %v1437 = vpop.xlane.xlu0 %1436
      %v1438 = vsel %vm1428, %v1415, 0.0
      %1439 = vadd.xlane.f32.xlu0 %v1438
      %v1440 = vpop.xlane.xlu0 %1439
      %v1441 = vsel %vm1428, %v1416, 0.0
      %1442 = vadd.xlane.f32.xlu0 %v1441
      %v1443 = vpop.xlane.xlu0 %1442
      %v1444 = vsel %vm1428, %v1417, 0.0
      %1445 = vadd.xlane.f32.xlu0 %v1444
      %v1446 = vpop.xlane.xlu0 %1445
      %v1447 = vsel %vm1428, %v1418, 0.0
      %1448 = vadd.xlane.f32.xlu0 %v1447
      %v1449 = vpop.xlane.xlu0 %1448
      %v1450 = vsel %vm1428, %v1419, 0.0
      %1451 = vadd.xlane.f32.xlu0 %v1450
      %v1452 = vpop.xlane.xlu0 %1451
      %v1453 = vsel %vm1428, %v1420, 0.0
      %1454 = vadd.xlane.f32.xlu0 %v1453
      %v1455 = vpop.xlane.xlu0 %1454
      %v1456 = vsel %vm1428, %v1421, 0.0
      %1457 = vadd.xlane.f32.xlu0 %v1456
      %v1458 = vpop.xlane.xlu0 %1457
      %v1459 = vsel %vm1428, %v1422, 0.0
      %1460 = vadd.xlane.f32.xlu0 %v1459
      %v1461 = vpop.xlane.xlu0 %1460
      %v1462 = vsel %vm1428, %v1423, 0.0
      %1463 = vadd.xlane.f32.xlu0 %v1462
      %v1464 = vpop.xlane.xlu0 %1463
      %v1465 = vsel %vm1428, %v1424, 0.0
      %1466 = vadd.xlane.f32.xlu0 %v1465
      %v1467 = vpop.xlane.xlu0 %1466
      %v1468 = vsel %vm1428, %v1425, 0.0
      %1469 = vadd.xlane.f32.xlu0 %v1468
      %v1470 = vpop.xlane.xlu0 %1469
      %v1471 = vsel %vm1428, %v1426, 0.0
      %1472 = vadd.xlane.f32.xlu0 %v1471
      %v1473 = vpop.xlane.xlu0 %1472
      %v1474 = vsel %vm1428, %v1427, 0.0
      %1475 = vadd.xlane.f32.xlu0 %v1474
      %v1476 = vpop.xlane.xlu0 %1475
      %v1477 = vlaneseq
      %v1478 = vshrl.u32 %v1477, 7
      %v1479 = vsub.s32 0, %v1478
      %v1480 = vrot.slane %v844, %v1479
      %v1481 = vmul.f32 %v1129, %v1480
      %v1482 = vmul.f32 %v1130, %v1480
      %v1483 = vmul.f32 %v1131, %v1480
      %v1484 = vmul.f32 %v1132, %v1480
      %v1485 = vmul.f32 %v1133, %v1480
      %v1486 = vmul.f32 %v1134, %v1480
      %v1487 = vmul.f32 %v1135, %v1480
      %v1488 = vmul.f32 %v1136, %v1480
      %v1489 = vmul.f32 %v1137, %v1480
      %v1490 = vmul.f32 %v1138, %v1480
      %v1491 = vmul.f32 %v1139, %v1480
      %v1492 = vmul.f32 %v1140, %v1480
      %v1493 = vmul.f32 %v1141, %v1480
      %v1494 = vmul.f32 %v1142, %v1480
      %v1495 = vmul.f32 %v1143, %v1480
      %v1496 = vmul.f32 %v1144, %v1480
      %v1497 = vsel %vm1428, %v1481, 0.0
      %1498 = vadd.xlane.f32.xlu0 %v1497
      %v1499 = vpop.xlane.xlu0 %1498
      %v1500 = vsel %vm1428, %v1482, 0.0
      %1501 = vadd.xlane.f32.xlu0 %v1500
      %v1502 = vpop.xlane.xlu0 %1501
      %v1503 = vsel %vm1428, %v1483, 0.0
      %1504 = vadd.xlane.f32.xlu0 %v1503
      %v1505 = vpop.xlane.xlu0 %1504
      %v1506 = vsel %vm1428, %v1484, 0.0
      %1507 = vadd.xlane.f32.xlu0 %v1506
      %v1508 = vpop.xlane.xlu0 %1507
      %v1509 = vsel %vm1428, %v1485, 0.0
      %1510 = vadd.xlane.f32.xlu0 %v1509
      %v1511 = vpop.xlane.xlu0 %1510
      %v1512 = vsel %vm1428, %v1486, 0.0
      %1513 = vadd.xlane.f32.xlu0 %v1512
      %v1514 = vpop.xlane.xlu0 %1513
      %v1515 = vsel %vm1428, %v1487, 0.0
      %1516 = vadd.xlane.f32.xlu0 %v1515
      %v1517 = vpop.xlane.xlu0 %1516
      %v1518 = vsel %vm1428, %v1488, 0.0
      %1519 = vadd.xlane.f32.xlu0 %v1518
      %v1520 = vpop.xlane.xlu0 %1519
      %v1521 = vsel %vm1428, %v1489, 0.0
      %1522 = vadd.xlane.f32.xlu0 %v1521
      %v1523 = vpop.xlane.xlu0 %1522
      %v1524 = vsel %vm1428, %v1490, 0.0
      %1525 = vadd.xlane.f32.xlu0 %v1524
      %v1526 = vpop.xlane.xlu0 %1525
      %v1527 = vsel %vm1428, %v1491, 0.0
      %1528 = vadd.xlane.f32.xlu0 %v1527
      %v1529 = vpop.xlane.xlu0 %1528
      %v1530 = vsel %vm1428, %v1492, 0.0
      %1531 = vadd.xlane.f32.xlu0 %v1530
      %v1532 = vpop.xlane.xlu0 %1531
      %v1533 = vsel %vm1428, %v1493, 0.0
      %1534 = vadd.xlane.f32.xlu0 %v1533
      %v1535 = vpop.xlane.xlu0 %1534
      %v1536 = vsel %vm1428, %v1494, 0.0
      %1537 = vadd.xlane.f32.xlu0 %v1536
      %v1538 = vpop.xlane.xlu0 %1537
      %v1539 = vsel %vm1428, %v1495, 0.0
      %1540 = vadd.xlane.f32.xlu0 %v1539
      %v1541 = vpop.xlane.xlu0 %1540
      %v1542 = vsel %vm1428, %v1496, 0.0
      %1543 = vadd.xlane.f32.xlu0 %v1542
      %v1544 = vpop.xlane.xlu0 %1543
      %v1545 = vadd.f32 %v1431, %v1499
      %v1546 = vadd.f32 %v1434, %v1502
      %v1547 = vadd.f32 %v1437, %v1505
      %v1548 = vadd.f32 %v1440, %v1508
      %v1549 = vadd.f32 %v1443, %v1511
      %v1550 = vadd.f32 %v1446, %v1514
      %v1551 = vadd.f32 %v1449, %v1517
      %v1552 = vadd.f32 %v1452, %v1520
      %v1553 = vadd.f32 %v1455, %v1523
      %v1554 = vadd.f32 %v1458, %v1526
      %v1555 = vadd.f32 %v1461, %v1529
      %v1556 = vadd.f32 %v1464, %v1532
      %v1557 = vadd.f32 %v1467, %v1535
      %v1558 = vadd.f32 %v1470, %v1538
      %v1559 = vadd.f32 %v1473, %v1541
      %v1560 = vadd.f32 %v1476, %v1544
      %v1562 = vlaneseq
      %v1563 = vshrl.u32 %v1562, 7
      %v1564 = vsub.s32 0, %v1563
      %v1565 = vrot.slane %v846, %v1564
      %v1567 = vadd.f32 %v1545, %v1565
      %v1568 = vadd.f32 %v1546, %v1565
      %v1569 = vadd.f32 %v1547, %v1565
      %v1570 = vadd.f32 %v1548, %v1565
      %v1571 = vadd.f32 %v1549, %v1565
      %v1572 = vadd.f32 %v1550, %v1565
      %v1573 = vadd.f32 %v1551, %v1565
      %v1574 = vadd.f32 %v1552, %v1565
      %v1575 = vadd.f32 %v1553, %v1565
      %v1576 = vadd.f32 %v1554, %v1565
      %v1577 = vadd.f32 %v1555, %v1565
      %v1578 = vadd.f32 %v1556, %v1565
      %v1579 = vadd.f32 %v1557, %v1565
      %v1580 = vadd.f32 %v1558, %v1565
      %v1581 = vadd.f32 %v1559, %v1565
      %v1582 = vadd.f32 %v1560, %v1565
      %v1583 = vlaneseq
      %v1584 = vshrl.u32 %v1583, 7
      %v1585 = vsub.s32 0, %v1584
      %v1586 = vrot.slane %v843, %v1585
      %v1587 = vmul.f32 %v1392, %v1586
      %v1588 = vmul.f32 %v1393, %v1586
      %v1589 = vmul.f32 %v1394, %v1586
      %v1590 = vmul.f32 %v1395, %v1586
      %v1591 = vmul.f32 %v1396, %v1586
      %v1592 = vmul.f32 %v1397, %v1586
      %v1593 = vmul.f32 %v1398, %v1586
      %v1594 = vmul.f32 %v1399, %v1586
      %v1595 = vmul.f32 %v1400, %v1586
      %v1596 = vmul.f32 %v1401, %v1586
      %v1597 = vmul.f32 %v1402, %v1586
      %v1598 = vmul.f32 %v1403, %v1586
      %v1599 = vmul.f32 %v1404, %v1586
      %v1600 = vmul.f32 %v1405, %v1586
      %v1601 = vmul.f32 %v1406, %v1586
      %v1602 = vmul.f32 %v1407, %v1586
      %v1603 = vsel %vm1428, %v1587, 0.0
      %1604 = vadd.xlane.f32.xlu0 %v1603
      %v1605 = vpop.xlane.xlu0 %1604
      %v1606 = vsel %vm1428, %v1588, 0.0
      %1607 = vadd.xlane.f32.xlu0 %v1606
      %v1608 = vpop.xlane.xlu0 %1607
      %v1609 = vsel %vm1428, %v1589, 0.0
      %1610 = vadd.xlane.f32.xlu0 %v1609
      %v1611 = vpop.xlane.xlu0 %1610
      %v1612 = vsel %vm1428, %v1590, 0.0
      %1613 = vadd.xlane.f32.xlu0 %v1612
      %v1614 = vpop.xlane.xlu0 %1613
      %v1615 = vsel %vm1428, %v1591, 0.0
      %1616 = vadd.xlane.f32.xlu0 %v1615
      %v1617 = vpop.xlane.xlu0 %1616
      %v1618 = vsel %vm1428, %v1592, 0.0
      %1619 = vadd.xlane.f32.xlu0 %v1618
      %v1620 = vpop.xlane.xlu0 %1619
      %v1621 = vsel %vm1428, %v1593, 0.0
      %1622 = vadd.xlane.f32.xlu0 %v1621
      %v1623 = vpop.xlane.xlu0 %1622
      %v1624 = vsel %vm1428, %v1594, 0.0
      %1625 = vadd.xlane.f32.xlu0 %v1624
      %v1626 = vpop.xlane.xlu0 %1625
      %v1627 = vsel %vm1428, %v1595, 0.0
      %1628 = vadd.xlane.f32.xlu0 %v1627
      %v1629 = vpop.xlane.xlu0 %1628
      %v1630 = vsel %vm1428, %v1596, 0.0
      %1631 = vadd.xlane.f32.xlu0 %v1630
      %v1632 = vpop.xlane.xlu0 %1631
      %v1633 = vsel %vm1428, %v1597, 0.0
      %1634 = vadd.xlane.f32.xlu0 %v1633
      %v1635 = vpop.xlane.xlu0 %1634
      %v1636 = vsel %vm1428, %v1598, 0.0
      %1637 = vadd.xlane.f32.xlu0 %v1636
      %v1638 = vpop.xlane.xlu0 %1637
      %v1639 = vsel %vm1428, %v1599, 0.0
      %1640 = vadd.xlane.f32.xlu0 %v1639
      %v1641 = vpop.xlane.xlu0 %1640
      %v1642 = vsel %vm1428, %v1600, 0.0
      %1643 = vadd.xlane.f32.xlu0 %v1642
      %v1644 = vpop.xlane.xlu0 %1643
      %v1645 = vsel %vm1428, %v1601, 0.0
      %1646 = vadd.xlane.f32.xlu0 %v1645
      %v1647 = vpop.xlane.xlu0 %1646
      %v1648 = vsel %vm1428, %v1602, 0.0
      %1649 = vadd.xlane.f32.xlu0 %v1648
      %v1650 = vpop.xlane.xlu0 %1649
      %v1651 = vlaneseq
      %v1652 = vshrl.u32 %v1651, 7
      %v1653 = vsub.s32 0, %v1652
      %v1654 = vrot.slane %v845, %v1653
      %v1655 = vmul.f32 %v1129, %v1654
      %v1656 = vmul.f32 %v1130, %v1654
      %v1657 = vmul.f32 %v1131, %v1654
      %v1658 = vmul.f32 %v1132, %v1654
      %v1659 = vmul.f32 %v1133, %v1654
      %v1660 = vmul.f32 %v1134, %v1654
      %v1661 = vmul.f32 %v1135, %v1654
      %v1662 = vmul.f32 %v1136, %v1654
      %v1663 = vmul.f32 %v1137, %v1654
      %v1664 = vmul.f32 %v1138, %v1654
      %v1665 = vmul.f32 %v1139, %v1654
      %v1666 = vmul.f32 %v1140, %v1654
      %v1667 = vmul.f32 %v1141, %v1654
      %v1668 = vmul.f32 %v1142, %v1654
      %v1669 = vmul.f32 %v1143, %v1654
      %v1670 = vmul.f32 %v1144, %v1654
      %v1671 = vsel %vm1428, %v1655, 0.0
      %1672 = vadd.xlane.f32.xlu0 %v1671
      %v1673 = vpop.xlane.xlu0 %1672
      %v1674 = vsel %vm1428, %v1656, 0.0
      %1675 = vadd.xlane.f32.xlu0 %v1674
      %v1676 = vpop.xlane.xlu0 %1675
      %v1677 = vsel %vm1428, %v1657, 0.0
      %1678 = vadd.xlane.f32.xlu0 %v1677
      %v1679 = vpop.xlane.xlu0 %1678
      %v1680 = vsel %vm1428, %v1658, 0.0
      %1681 = vadd.xlane.f32.xlu0 %v1680
      %v1682 = vpop.xlane.xlu0 %1681
      %v1683 = vsel %vm1428, %v1659, 0.0
      %1684 = vadd.xlane.f32.xlu0 %v1683
      %v1685 = vpop.xlane.xlu0 %1684
      %v1686 = vsel %vm1428, %v1660, 0.0
      %1687 = vadd.xlane.f32.xlu0 %v1686
      %v1688 = vpop.xlane.xlu0 %1687
      %v1689 = vsel %vm1428, %v1661, 0.0
      %1690 = vadd.xlane.f32.xlu0 %v1689
      %v1691 = vpop.xlane.xlu0 %1690
      %v1692 = vsel %vm1428, %v1662, 0.0
      %1693 = vadd.xlane.f32.xlu0 %v1692
      %v1694 = vpop.xlane.xlu0 %1693
      %v1695 = vsel %vm1428, %v1663, 0.0
      %1696 = vadd.xlane.f32.xlu0 %v1695
      %v1697 = vpop.xlane.xlu0 %1696
      %v1698 = vsel %vm1428, %v1664, 0.0
      %1699 = vadd.xlane.f32.xlu0 %v1698
      %v1700 = vpop.xlane.xlu0 %1699
      %v1701 = vsel %vm1428, %v1665, 0.0
      %1702 = vadd.xlane.f32.xlu0 %v1701
      %v1703 = vpop.xlane.xlu0 %1702
      %v1704 = vsel %vm1428, %v1666, 0.0
      %1705 = vadd.xlane.f32.xlu0 %v1704
      %v1706 = vpop.xlane.xlu0 %1705
      %v1707 = vsel %vm1428, %v1667, 0.0
      %1708 = vadd.xlane.f32.xlu0 %v1707
      %v1709 = vpop.xlane.xlu0 %1708
      %v1710 = vsel %vm1428, %v1668, 0.0
      %1711 = vadd.xlane.f32.xlu0 %v1710
      %v1712 = vpop.xlane.xlu0 %1711
      %v1713 = vsel %vm1428, %v1669, 0.0
      %1714 = vadd.xlane.f32.xlu0 %v1713
      %v1715 = vpop.xlane.xlu0 %1714
      %v1716 = vsel %vm1428, %v1670, 0.0
      %1717 = vadd.xlane.f32.xlu0 %v1716
      %v1718 = vpop.xlane.xlu0 %1717
      %v1719 = vadd.f32 %v1605, %v1673
      %v1720 = vadd.f32 %v1608, %v1676
      %v1721 = vadd.f32 %v1611, %v1679
      %v1722 = vadd.f32 %v1614, %v1682
      %v1723 = vadd.f32 %v1617, %v1685
      %v1724 = vadd.f32 %v1620, %v1688
      %v1725 = vadd.f32 %v1623, %v1691
      %v1726 = vadd.f32 %v1626, %v1694
      %v1727 = vadd.f32 %v1629, %v1697
      %v1728 = vadd.f32 %v1632, %v1700
      %v1729 = vadd.f32 %v1635, %v1703
      %v1730 = vadd.f32 %v1638, %v1706
      %v1731 = vadd.f32 %v1641, %v1709
      %v1732 = vadd.f32 %v1644, %v1712
      %v1733 = vadd.f32 %v1647, %v1715
      %v1734 = vadd.f32 %v1650, %v1718
      %v1735 = vadd.f32 %v1719, %v1565
      %v1736 = vadd.f32 %v1720, %v1565
      %v1737 = vadd.f32 %v1721, %v1565
      %v1738 = vadd.f32 %v1722, %v1565
      %v1739 = vadd.f32 %v1723, %v1565
      %v1740 = vadd.f32 %v1724, %v1565
      %v1741 = vadd.f32 %v1725, %v1565
      %v1742 = vadd.f32 %v1726, %v1565
      %v1743 = vadd.f32 %v1727, %v1565
      %v1744 = vadd.f32 %v1728, %v1565
      %v1745 = vadd.f32 %v1729, %v1565
      %v1746 = vadd.f32 %v1730, %v1565
      %v1747 = vadd.f32 %v1731, %v1565
      %v1748 = vadd.f32 %v1732, %v1565
      %v1749 = vadd.f32 %v1733, %v1565
      %v1750 = vadd.f32 %v1734, %v1565
      %v1751 = vxor.u32 %v1567, 2147483648
      %v1752 = vxor.u32 %v1568, 2147483648
      %v1753 = vxor.u32 %v1569, 2147483648
      %v1754 = vxor.u32 %v1570, 2147483648
      %v1755 = vxor.u32 %v1571, 2147483648
      %v1756 = vxor.u32 %v1572, 2147483648
      %v1757 = vxor.u32 %v1573, 2147483648
      %v1758 = vxor.u32 %v1574, 2147483648
      %v1759 = vxor.u32 %v1575, 2147483648
      %v1760 = vxor.u32 %v1576, 2147483648
      %v1761 = vxor.u32 %v1577, 2147483648
      %v1762 = vxor.u32 %v1578, 2147483648
      %v1763 = vxor.u32 %v1579, 2147483648
      %v1764 = vxor.u32 %v1580, 2147483648
      %v1765 = vxor.u32 %v1581, 2147483648
      %v1766 = vxor.u32 %v1582, 2147483648
      %v1767 = vmul.f32 %v1751, 1.442695
      %v1768 = vpow.pop %v1767
      %v1769 = vmul.f32 %v1752, 1.442695
      %v1770 = vpow.pop %v1769
      %v1771 = vmul.f32 %v1753, 1.442695
      %v1772 = vpow.pop %v1771
      %v1773 = vmul.f32 %v1754, 1.442695
      %v1774 = vpow.pop %v1773
      %v1775 = vmul.f32 %v1755, 1.442695
      %v1776 = vpow.pop %v1775
      %v1777 = vmul.f32 %v1756, 1.442695
      %v1778 = vpow.pop %v1777
      %v1779 = vmul.f32 %v1757, 1.442695
      %v1780 = vpow.pop %v1779
      %v1781 = vmul.f32 %v1758, 1.442695
      %v1782 = vpow.pop %v1781
      %v1783 = vmul.f32 %v1759, 1.442695
      %v1784 = vpow.pop %v1783
      %v1785 = vmul.f32 %v1760, 1.442695
      %v1786 = vpow.pop %v1785
      %v1787 = vmul.f32 %v1761, 1.442695
      %v1788 = vpow.pop %v1787
      %v1789 = vmul.f32 %v1762, 1.442695
      %v1790 = vpow.pop %v1789
      %v1791 = vmul.f32 %v1763, 1.442695
      %v1792 = vpow.pop %v1791
      %v1793 = vmul.f32 %v1764, 1.442695
      %v1794 = vpow.pop %v1793
      %v1795 = vmul.f32 %v1765, 1.442695
      %v1796 = vpow.pop %v1795
      %v1797 = vmul.f32 %v1766, 1.442695
      %v1798 = vpow.pop %v1797
      %v1799 = vadd.f32 %v1768, 1.0
      %v1800 = vadd.f32 %v1770, 1.0
      %v1801 = vadd.f32 %v1772, 1.0
      %v1802 = vadd.f32 %v1774, 1.0
      %v1803 = vadd.f32 %v1776, 1.0
      %v1804 = vadd.f32 %v1778, 1.0
      %v1805 = vadd.f32 %v1780, 1.0
      %v1806 = vadd.f32 %v1782, 1.0
      %v1807 = vadd.f32 %v1784, 1.0
      %v1808 = vadd.f32 %v1786, 1.0
      %v1809 = vadd.f32 %v1788, 1.0
      %v1810 = vadd.f32 %v1790, 1.0
      %v1811 = vadd.f32 %v1792, 1.0
      %v1812 = vadd.f32 %v1794, 1.0
      %v1813 = vadd.f32 %v1796, 1.0
      %v1814 = vadd.f32 %v1798, 1.0
      %v1815 = vrcp.pop %v1799
      %v1816 = vmul.f32 1.0, %v1815
      %v1817 = vrcp.pop %v1800
      %v1818 = vmul.f32 1.0, %v1817
      %v1819 = vrcp.pop %v1801
      %v1820 = vmul.f32 1.0, %v1819
      %v1821 = vrcp.pop %v1802
      %v1822 = vmul.f32 1.0, %v1821
      %v1823 = vrcp.pop %v1803
      %v1824 = vmul.f32 1.0, %v1823
      %v1825 = vrcp.pop %v1804
      %v1826 = vmul.f32 1.0, %v1825
      %v1827 = vrcp.pop %v1805
      %v1828 = vmul.f32 1.0, %v1827
      %v1829 = vrcp.pop %v1806
      %v1830 = vmul.f32 1.0, %v1829
      %v1831 = vrcp.pop %v1807
      %v1832 = vmul.f32 1.0, %v1831
      %v1833 = vrcp.pop %v1808
      %v1834 = vmul.f32 1.0, %v1833
      %v1835 = vrcp.pop %v1809
      %v1836 = vmul.f32 1.0, %v1835
      %v1837 = vrcp.pop %v1810
      %v1838 = vmul.f32 1.0, %v1837
      %v1839 = vrcp.pop %v1811
      %v1840 = vmul.f32 1.0, %v1839
      %v1841 = vrcp.pop %v1812
      %v1842 = vmul.f32 1.0, %v1841
      %v1843 = vrcp.pop %v1813
      %v1844 = vmul.f32 1.0, %v1843
      %v1845 = vrcp.pop %v1814
      %v1846 = vmul.f32 1.0, %v1845
      %1848 = vset.pattern.permute.xlu0 0
      %1849 = vperm.xlu0 %1848, %v1816
      %v1850 = vpop.permute.xlu0 %1849
      %1853 = vset.pattern.permute.xlu0 0
      %1854 = vperm.xlu0 %1853, %v1818
      %v1855 = vpop.permute.xlu0 %1854
      %1858 = vset.pattern.permute.xlu0 0
      %1859 = vperm.xlu0 %1858, %v1820
      %v1860 = vpop.permute.xlu0 %1859
      %1863 = vset.pattern.permute.xlu0 0
      %1864 = vperm.xlu0 %1863, %v1822
      %v1865 = vpop.permute.xlu0 %1864
      %1868 = vset.pattern.permute.xlu0 0
      %1869 = vperm.xlu0 %1868, %v1824
      %v1870 = vpop.permute.xlu0 %1869
      %1873 = vset.pattern.permute.xlu0 0
      %1874 = vperm.xlu0 %1873, %v1826
      %v1875 = vpop.permute.xlu0 %1874
      %1878 = vset.pattern.permute.xlu0 0
      %1879 = vperm.xlu0 %1878, %v1828
      %v1880 = vpop.permute.xlu0 %1879
      %1883 = vset.pattern.permute.xlu0 0
      %1884 = vperm.xlu0 %1883, %v1830
      %v1885 = vpop.permute.xlu0 %1884
      %1888 = vset.pattern.permute.xlu0 0
      %1889 = vperm.xlu0 %1888, %v1832
      %v1890 = vpop.permute.xlu0 %1889
      %1893 = vset.pattern.permute.xlu0 0
      %1894 = vperm.xlu0 %1893, %v1834
      %v1895 = vpop.permute.xlu0 %1894
      %1898 = vset.pattern.permute.xlu0 0
      %1899 = vperm.xlu0 %1898, %v1836
      %v1900 = vpop.permute.xlu0 %1899
      %1903 = vset.pattern.permute.xlu0 0
      %1904 = vperm.xlu0 %1903, %v1838
      %v1905 = vpop.permute.xlu0 %1904
      %1908 = vset.pattern.permute.xlu0 0
      %1909 = vperm.xlu0 %1908, %v1840
      %v1910 = vpop.permute.xlu0 %1909
      %1913 = vset.pattern.permute.xlu0 0
      %1914 = vperm.xlu0 %1913, %v1842
      %v1915 = vpop.permute.xlu0 %1914
      %1918 = vset.pattern.permute.xlu0 0
      %1919 = vperm.xlu0 %1918, %v1844
      %v1920 = vpop.permute.xlu0 %1919
      %1923 = vset.pattern.permute.xlu0 0
      %1924 = vperm.xlu0 %1923, %v1846
      %v1925 = vpop.permute.xlu0 %1924
      %v1927 = vmul.f32 %v1392, %v1850
      %v1928 = vmul.f32 %v1393, %v1855
      %v1929 = vmul.f32 %v1394, %v1860
      %v1930 = vmul.f32 %v1395, %v1865
      %v1931 = vmul.f32 %v1396, %v1870
      %v1932 = vmul.f32 %v1397, %v1875
      %v1933 = vmul.f32 %v1398, %v1880
      %v1934 = vmul.f32 %v1399, %v1885
      %v1935 = vmul.f32 %v1400, %v1890
      %v1936 = vmul.f32 %v1401, %v1895
      %v1937 = vmul.f32 %v1402, %v1900
      %v1938 = vmul.f32 %v1403, %v1905
      %v1939 = vmul.f32 %v1404, %v1910
      %v1940 = vmul.f32 %v1405, %v1915
      %v1941 = vmul.f32 %v1406, %v1920
      %v1942 = vmul.f32 %v1407, %v1925
      %v1943 = vxor.u32 %v1735, 2147483648
      %v1944 = vxor.u32 %v1736, 2147483648
      %v1945 = vxor.u32 %v1737, 2147483648
      %v1946 = vxor.u32 %v1738, 2147483648
      %v1947 = vxor.u32 %v1739, 2147483648
      %v1948 = vxor.u32 %v1740, 2147483648
      %v1949 = vxor.u32 %v1741, 2147483648
      %v1950 = vxor.u32 %v1742, 2147483648
      %v1951 = vxor.u32 %v1743, 2147483648
      %v1952 = vxor.u32 %v1744, 2147483648
      %v1953 = vxor.u32 %v1745, 2147483648
      %v1954 = vxor.u32 %v1746, 2147483648
      %v1955 = vxor.u32 %v1747, 2147483648
      %v1956 = vxor.u32 %v1748, 2147483648
      %v1957 = vxor.u32 %v1749, 2147483648
      %v1958 = vxor.u32 %v1750, 2147483648
      %v1959 = vmul.f32 %v1943, 1.442695
      %v1960 = vpow.pop %v1959
      %v1961 = vmul.f32 %v1944, 1.442695
      %v1962 = vpow.pop %v1961
      %v1963 = vmul.f32 %v1945, 1.442695
      %v1964 = vpow.pop %v1963
      %v1965 = vmul.f32 %v1946, 1.442695
      %v1966 = vpow.pop %v1965
      %v1967 = vmul.f32 %v1947, 1.442695
      %v1968 = vpow.pop %v1967
      %v1969 = vmul.f32 %v1948, 1.442695
      %v1970 = vpow.pop %v1969
      %v1971 = vmul.f32 %v1949, 1.442695
      %v1972 = vpow.pop %v1971
      %v1973 = vmul.f32 %v1950, 1.442695
      %v1974 = vpow.pop %v1973
      %v1975 = vmul.f32 %v1951, 1.442695
      %v1976 = vpow.pop %v1975
      %v1977 = vmul.f32 %v1952, 1.442695
      %v1978 = vpow.pop %v1977
      %v1979 = vmul.f32 %v1953, 1.442695
      %v1980 = vpow.pop %v1979
      %v1981 = vmul.f32 %v1954, 1.442695
      %v1982 = vpow.pop %v1981
      %v1983 = vmul.f32 %v1955, 1.442695
      %v1984 = vpow.pop %v1983
      %v1985 = vmul.f32 %v1956, 1.442695
      %v1986 = vpow.pop %v1985
      %v1987 = vmul.f32 %v1957, 1.442695
      %v1988 = vpow.pop %v1987
      %v1989 = vmul.f32 %v1958, 1.442695
      %v1990 = vpow.pop %v1989
      %v1991 = vadd.f32 %v1960, 1.0
      %v1992 = vadd.f32 %v1962, 1.0
      %v1993 = vadd.f32 %v1964, 1.0
      %v1994 = vadd.f32 %v1966, 1.0
      %v1995 = vadd.f32 %v1968, 1.0
      %v1996 = vadd.f32 %v1970, 1.0
      %v1997 = vadd.f32 %v1972, 1.0
      %v1998 = vadd.f32 %v1974, 1.0
      %v1999 = vadd.f32 %v1976, 1.0
      %v2000 = vadd.f32 %v1978, 1.0
      %v2001 = vadd.f32 %v1980, 1.0
      %v2002 = vadd.f32 %v1982, 1.0
      %v2003 = vadd.f32 %v1984, 1.0
      %v2004 = vadd.f32 %v1986, 1.0
      %v2005 = vadd.f32 %v1988, 1.0
      %v2006 = vadd.f32 %v1990, 1.0
      %v2007 = vrcp.pop %v1991
      %v2008 = vmul.f32 1.0, %v2007
      %v2009 = vrcp.pop %v1992
      %v2010 = vmul.f32 1.0, %v2009
      %v2011 = vrcp.pop %v1993
      %v2012 = vmul.f32 1.0, %v2011
      %v2013 = vrcp.pop %v1994
      %v2014 = vmul.f32 1.0, %v2013
      %v2015 = vrcp.pop %v1995
      %v2016 = vmul.f32 1.0, %v2015
      %v2017 = vrcp.pop %v1996
      %v2018 = vmul.f32 1.0, %v2017
      %v2019 = vrcp.pop %v1997
      %v2020 = vmul.f32 1.0, %v2019
      %v2021 = vrcp.pop %v1998
      %v2022 = vmul.f32 1.0, %v2021
      %v2023 = vrcp.pop %v1999
      %v2024 = vmul.f32 1.0, %v2023
      %v2025 = vrcp.pop %v2000
      %v2026 = vmul.f32 1.0, %v2025
      %v2027 = vrcp.pop %v2001
      %v2028 = vmul.f32 1.0, %v2027
      %v2029 = vrcp.pop %v2002
      %v2030 = vmul.f32 1.0, %v2029
      %v2031 = vrcp.pop %v2003
      %v2032 = vmul.f32 1.0, %v2031
      %v2033 = vrcp.pop %v2004
      %v2034 = vmul.f32 1.0, %v2033
      %v2035 = vrcp.pop %v2005
      %v2036 = vmul.f32 1.0, %v2035
      %v2037 = vrcp.pop %v2006
      %v2038 = vmul.f32 1.0, %v2037
      %2040 = vset.pattern.permute.xlu0 1
      %2041 = vperm.xlu0 %2040, %v2008
      %v2042 = vpop.permute.xlu0 %2041
      %2045 = vset.pattern.permute.xlu0 1
      %2046 = vperm.xlu0 %2045, %v2010
      %v2047 = vpop.permute.xlu0 %2046
      %2050 = vset.pattern.permute.xlu0 1
      %2051 = vperm.xlu0 %2050, %v2012
      %v2052 = vpop.permute.xlu0 %2051
      %2055 = vset.pattern.permute.xlu0 1
      %2056 = vperm.xlu0 %2055, %v2014
      %v2057 = vpop.permute.xlu0 %2056
      %2060 = vset.pattern.permute.xlu0 1
      %2061 = vperm.xlu0 %2060, %v2016
      %v2062 = vpop.permute.xlu0 %2061
      %2065 = vset.pattern.permute.xlu0 1
      %2066 = vperm.xlu0 %2065, %v2018
      %v2067 = vpop.permute.xlu0 %2066
      %2070 = vset.pattern.permute.xlu0 1
      %2071 = vperm.xlu0 %2070, %v2020
      %v2072 = vpop.permute.xlu0 %2071
      %2075 = vset.pattern.permute.xlu0 1
      %2076 = vperm.xlu0 %2075, %v2022
      %v2077 = vpop.permute.xlu0 %2076
      %2080 = vset.pattern.permute.xlu0 1
      %2081 = vperm.xlu0 %2080, %v2024
      %v2082 = vpop.permute.xlu0 %2081
      %2085 = vset.pattern.permute.xlu0 1
      %2086 = vperm.xlu0 %2085, %v2026
      %v2087 = vpop.permute.xlu0 %2086
      %2090 = vset.pattern.permute.xlu0 1
      %2091 = vperm.xlu0 %2090, %v2028
      %v2092 = vpop.permute.xlu0 %2091
      %2095 = vset.pattern.permute.xlu0 1
      %2096 = vperm.xlu0 %2095, %v2030
      %v2097 = vpop.permute.xlu0 %2096
      %2100 = vset.pattern.permute.xlu0 1
      %2101 = vperm.xlu0 %2100, %v2032
      %v2102 = vpop.permute.xlu0 %2101
      %2105 = vset.pattern.permute.xlu0 1
      %2106 = vperm.xlu0 %2105, %v2034
      %v2107 = vpop.permute.xlu0 %2106
      %2110 = vset.pattern.permute.xlu0 1
      %2111 = vperm.xlu0 %2110, %v2036
      %v2112 = vpop.permute.xlu0 %2111
      %2115 = vset.pattern.permute.xlu0 1
      %2116 = vperm.xlu0 %2115, %v2038
      %v2117 = vpop.permute.xlu0 %2116
      %v2119 = vmul.f32 %v1129, %v2042
      %v2120 = vmul.f32 %v1130, %v2047
      %v2121 = vmul.f32 %v1131, %v2052
      %v2122 = vmul.f32 %v1132, %v2057
      %v2123 = vmul.f32 %v1133, %v2062
      %v2124 = vmul.f32 %v1134, %v2067
      %v2125 = vmul.f32 %v1135, %v2072
      %v2126 = vmul.f32 %v1136, %v2077
      %v2127 = vmul.f32 %v1137, %v2082
      %v2128 = vmul.f32 %v1138, %v2087
      %v2129 = vmul.f32 %v1139, %v2092
      %v2130 = vmul.f32 %v1140, %v2097
      %v2131 = vmul.f32 %v1141, %v2102
      %v2132 = vmul.f32 %v1142, %v2107
      %v2133 = vmul.f32 %v1143, %v2112
      %v2134 = vmul.f32 %v1144, %v2117
      %v2135 = vadd.f32 %v1927, %v2119
      %v2136 = vadd.f32 %v1928, %v2120
      %v2137 = vadd.f32 %v1929, %v2121
      %v2138 = vadd.f32 %v1930, %v2122
      %v2139 = vadd.f32 %v1931, %v2123
      %v2140 = vadd.f32 %v1932, %v2124
      %v2141 = vadd.f32 %v1933, %v2125
      %v2142 = vadd.f32 %v1934, %v2126
      %v2143 = vadd.f32 %v1935, %v2127
      %v2144 = vadd.f32 %v1936, %v2128
      %v2145 = vadd.f32 %v1937, %v2129
      %v2146 = vadd.f32 %v1938, %v2130
      %v2147 = vadd.f32 %v1939, %v2131
      %v2148 = vadd.f32 %v1940, %v2132
      %v2149 = vadd.f32 %v1941, %v2133
      %v2150 = vadd.f32 %v1942, %v2134
      %2151 = vst.msk [vmem:[%s837] sm:$0xff] %vm1428, %v2135
      %2152 = vst.msk [vmem:[%s837 + $0x8] sm:$0xff] %vm1428, %v2136
      %2153 = vst.msk [vmem:[%s837 + $0x10] sm:$0xff] %vm1428, %v2137
      %2154 = vst.msk [vmem:[%s837 + $0x18] sm:$0xff] %vm1428, %v2138
      %2155 = vst.msk [vmem:[%s837 + $0x20] sm:$0xff] %vm1428, %v2139
      %2156 = vst.msk [vmem:[%s837 + $0x28] sm:$0xff] %vm1428, %v2140
      %2157 = vst.msk [vmem:[%s837 + $0x30] sm:$0xff] %vm1428, %v2141
      %2158 = vst.msk [vmem:[%s837 + $0x38] sm:$0xff] %vm1428, %v2142
      %2159 = vst.msk [vmem:[%s837 + $0x40] sm:$0xff] %vm1428, %v2143
      %2160 = vst.msk [vmem:[%s837 + $0x48] sm:$0xff] %vm1428, %v2144
      %2161 = vst.msk [vmem:[%s837 + $0x50] sm:$0xff] %vm1428, %v2145
      %2162 = vst.msk [vmem:[%s837 + $0x58] sm:$0xff] %vm1428, %v2146
      %2163 = vst.msk [vmem:[%s837 + $0x60] sm:$0xff] %vm1428, %v2147
      %2164 = vst.msk [vmem:[%s837 + $0x68] sm:$0xff] %vm1428, %v2148
      %2165 = vst.msk [vmem:[%s837 + $0x70] sm:$0xff] %vm1428, %v2149
      %2166 = vst.msk [vmem:[%s837 + $0x78] sm:$0xff] %vm1428, %v2150
      %v2167 = vld [vmem:[%s761] sm:$0xff]
      %v2168 = vld [vmem:[%s761 + $0x8] sm:$0xff]
      %v2170 = vsel %vm1166, %v2167, 0
      %v2173 = vsel %vm1166, %v2168, 0
      %2175 = vmatprep.subr.mxu0 0.0
      %2176 = vmatpush1.msra.mxu0 0.0
      %2177 = vmatprep.subr.mxu0 0.0
      %2178 = vmatpush1.msra.mxu0 0.0
      %2179 = vmatprep.subr.mxu0 0.0
      %2180 = vmatpush1.msra.mxu0 0.0
      %2181 = vmatprep.subr.mxu0 0.0
      %2182 = vmatpush1.msra.mxu0 0.0
      %2183 = vmatprep.subr.mxu0 0.0
      %2184 = vmatpush1.msra.mxu0 0.0
      %2185 = vmatprep.subr.mxu0 0.0
      %2186 = vmatpush1.msra.mxu0 0.0
      %2187 = vmatprep.subr.mxu0 0.0
      %2188 = vmatpush1.msra.mxu0 0.0
      %2189 = vmatprep.subr.mxu0 0.0
      %2190 = vmatpush1.msra.mxu0 0.0
      %2191 = vmatprep.subr.mxu0 0.0
      %2192 = vmatpush1.msra.mxu0 0.0
      %2193 = vmatprep.subr.mxu0 0.0
      %2194 = vmatpush1.msra.mxu0 0.0
      %2195 = vmatprep.subr.mxu0 0.0
      %2196 = vmatpush1.msra.mxu0 0.0
      %2197 = vmatprep.subr.mxu0 0.0
      %2198 = vmatpush1.msra.mxu0 0.0
      %2199 = vmatprep.subr.mxu0 0.0
      %2200 = vmatpush1.msra.mxu0 0.0
      %2201 = vmatprep.subr.mxu0 0.0
      %2202 = vmatpush1.msra.mxu0 0.0
      %2203 = vmatprep.subr.mxu0 0.0
      %2204 = vmatpush1.msra.mxu0 0.0
      %2205 = vmatprep.subr.mxu0 0.0
      %2206 = vmatpush1.msra.mxu0 %v1217
      %2207 = vmatprep.subr.mxu0 0.0
      %2208 = vmatpush2.msra.mxu0 0.0
      %2209 = vmatprep.subr.mxu0 0.0
      %2210 = vmatpush2.msra.mxu0 0.0
      %2211 = vmatprep.subr.mxu0 0.0
      %2212 = vmatpush2.msra.mxu0 0.0
      %2213 = vmatprep.subr.mxu0 0.0
      %2214 = vmatpush2.msra.mxu0 0.0
      %2215 = vmatprep.subr.mxu0 0.0
      %2216 = vmatpush2.msra.mxu0 0.0
      %2217 = vmatprep.subr.mxu0 0.0
      %2218 = vmatpush2.msra.mxu0 0.0
      %2219 = vmatprep.subr.mxu0 0.0
      %2220 = vmatpush2.msra.mxu0 0.0
      %2221 = vmatprep.subr.mxu0 0.0
      %2222 = vmatpush2.msra.mxu0 0.0
      %2223 = vmatprep.subr.mxu0 0.0
      %2224 = vmatpush2.msra.mxu0 0.0
      %2225 = vmatprep.subr.mxu0 0.0
      %2226 = vmatpush2.msra.mxu0 0.0
      %2227 = vmatprep.subr.mxu0 0.0
      %2228 = vmatpush2.msra.mxu0 0.0
      %2229 = vmatprep.subr.mxu0 0.0
      %2230 = vmatpush2.msra.mxu0 0.0
      %2231 = vmatprep.subr.mxu0 0.0
      %2232 = vmatpush2.msra.mxu0 0.0
      %2233 = vmatprep.subr.mxu0 0.0
      %2234 = vmatpush2.msra.mxu0 0.0
      %2235 = vmatprep.subr.mxu0 0.0
      %2236 = vmatpush2.msra.mxu0 0.0
      %2237 = vmatprep.subr.mxu0 0.0
      %2238 = vmatpush2.msra.mxu0 0.0
      %2239 = vmatprep.mubr.f32.mxu0 0.0
      %2240 = vmatmul.mubr.f32.gmra.mxu0 %v2170
      %v2241 = vpop.f32.mrf.mxu0
      %v2242 = vadd.f32 0.0, %v2241
      %v2243 = vpop.f32.mrf.mxu0
      %2244 = vmatprep.mubr.f32.mxu0 0.0
      %2245 = vmatmul.mubr.f32.gmra.mxu0 %v2173
      %v2246 = vpop.f32.mrf.mxu0
      %v2247 = vadd.f32 0.0, %v2246
      %v2248 = vpop.f32.mrf.mxu0
      %2249 = vdwg.mxu0
      %v2250 = vmul.f32 %v2242, %v1368
      %v2251 = vmul.f32 %v2247, %v1368
      %v2252 = vadd.f32 %v2250, %v1390
      %v2253 = vadd.f32 %v2251, %v1390
      %v2254 = vmul.f32 %v2252, %v1411
      %v2255 = vmul.f32 %v2253, %v1411
      %v2256 = vsel %vm1428, %v2254, 0.0
      %2257 = vadd.xlane.f32.xlu0 %v2256
      %v2258 = vpop.xlane.xlu0 %2257
      %v2259 = vsel %vm1428, %v2255, 0.0
      %2260 = vadd.xlane.f32.xlu0 %v2259
      %v2261 = vpop.xlane.xlu0 %2260
      %v2262 = vmul.f32 %v1145, %v1480
      %v2263 = vmul.f32 %v1146, %v1480
      %v2264 = vsel %vm1428, %v2262, 0.0
      %2265 = vadd.xlane.f32.xlu0 %v2264
      %v2266 = vpop.xlane.xlu0 %2265
      %v2267 = vsel %vm1428, %v2263, 0.0
      %2268 = vadd.xlane.f32.xlu0 %v2267
      %v2269 = vpop.xlane.xlu0 %2268
      %v2270 = vadd.f32 %v2258, %v2266
      %v2271 = vadd.f32 %v2261, %v2269
      %v2272 = vadd.f32 %v2270, %v1565
      %v2273 = vadd.f32 %v2271, %v1565
      %v2274 = vmul.f32 %v2252, %v1586
      %v2275 = vmul.f32 %v2253, %v1586
      %v2276 = vsel %vm1428, %v2274, 0.0
      %2277 = vadd.xlane.f32.xlu0 %v2276
      %v2278 = vpop.xlane.xlu0 %2277
      %v2279 = vsel %vm1428, %v2275, 0.0
      %2280 = vadd.xlane.f32.xlu0 %v2279
      %v2281 = vpop.xlane.xlu0 %2280
      %v2282 = vmul.f32 %v1145, %v1654
      %v2283 = vmul.f32 %v1146, %v1654
      %v2284 = vsel %vm1428, %v2282, 0.0
      %2285 = vadd.xlane.f32.xlu0 %v2284
      %v2286 = vpop.xlane.xlu0 %2285
      %v2287 = vsel %vm1428, %v2283, 0.0
      %2288 = vadd.xlane.f32.xlu0 %v2287
      %v2289 = vpop.xlane.xlu0 %2288
      %v2290 = vadd.f32 %v2278, %v2286
      %v2291 = vadd.f32 %v2281, %v2289
      %v2292 = vadd.f32 %v2290, %v1565
      %v2293 = vadd.f32 %v2291, %v1565
      %v2294 = vxor.u32 %v2272, 2147483648
      %v2295 = vxor.u32 %v2273, 2147483648
      %v2296 = vmul.f32 %v2294, 1.442695
      %v2297 = vpow.pop %v2296
      %v2298 = vmul.f32 %v2295, 1.442695
      %v2299 = vpow.pop %v2298
      %v2300 = vadd.f32 %v2297, 1.0
      %v2301 = vadd.f32 %v2299, 1.0
      %v2302 = vrcp.pop %v2300
      %v2303 = vmul.f32 1.0, %v2302
      %v2304 = vrcp.pop %v2301
      %v2305 = vmul.f32 1.0, %v2304
      %2307 = vset.pattern.permute.xlu0 0
      %2308 = vperm.xlu0 %2307, %v2303
      %v2309 = vpop.permute.xlu0 %2308
      %2312 = vset.pattern.permute.xlu0 0
      %2313 = vperm.xlu0 %2312, %v2305
      %v2314 = vpop.permute.xlu0 %2313
      %v2316 = vmul.f32 %v2252, %v2309
      %v2317 = vmul.f32 %v2253, %v2314
      %v2318 = vxor.u32 %v2292, 2147483648
      %v2319 = vxor.u32 %v2293, 2147483648
      %v2320 = vmul.f32 %v2318, 1.442695
      %v2321 = vpow.pop %v2320
      %v2322 = vmul.f32 %v2319, 1.442695
      %v2323 = vpow.pop %v2322
      %v2324 = vadd.f32 %v2321, 1.0
      %v2325 = vadd.f32 %v2323, 1.0
      %v2326 = vrcp.pop %v2324
      %v2327 = vmul.f32 1.0, %v2326
      %v2328 = vrcp.pop %v2325
      %v2329 = vmul.f32 1.0, %v2328
      %2331 = vset.pattern.permute.xlu0 1
      %2332 = vperm.xlu0 %2331, %v2327
      %v2333 = vpop.permute.xlu0 %2332
      %2336 = vset.pattern.permute.xlu0 1
      %2337 = vperm.xlu0 %2336, %v2329
      %v2338 = vpop.permute.xlu0 %2337
      %v2340 = vmul.f32 %v1145, %v2333
      %v2341 = vmul.f32 %v1146, %v2338
      %v2342 = vadd.f32 %v2316, %v2340
      %v2343 = vadd.f32 %v2317, %v2341
      %v2344 = vld [vmem:[%s775] sm:$0xff]
      %v2345 = vld [vmem:[%s775 + $0x8] sm:$0xff]
      %v2347 = vsel %vm1166, %v2344, 0
      %v2350 = vsel %vm1166, %v2345, 0
      %2352 = vmatprep.subr.mxu0 0.0
      %2353 = vmatpush1.msra.mxu0 0.0
      %2354 = vmatprep.subr.mxu0 0.0
      %2355 = vmatpush1.msra.mxu0 0.0
      %2356 = vmatprep.subr.mxu0 0.0
      %2357 = vmatpush1.msra.mxu0 0.0
      %2358 = vmatprep.subr.mxu0 0.0
      %2359 = vmatpush1.msra.mxu0 0.0
      %2360 = vmatprep.subr.mxu0 0.0
      %2361 = vmatpush1.msra.mxu0 0.0
      %2362 = vmatprep.subr.mxu0 0.0
      %2363 = vmatpush1.msra.mxu0 0.0
      %2364 = vmatprep.subr.mxu0 0.0
      %2365 = vmatpush1.msra.mxu0 0.0
      %2366 = vmatprep.subr.mxu0 0.0
      %2367 = vmatpush1.msra.mxu0 0.0
      %2368 = vmatprep.subr.mxu0 0.0
      %2369 = vmatpush1.msra.mxu0 0.0
      %2370 = vmatprep.subr.mxu0 0.0
      %2371 = vmatpush1.msra.mxu0 0.0
      %2372 = vmatprep.subr.mxu0 0.0
      %2373 = vmatpush1.msra.mxu0 0.0
      %2374 = vmatprep.subr.mxu0 0.0
      %2375 = vmatpush1.msra.mxu0 0.0
      %2376 = vmatprep.subr.mxu0 0.0
      %2377 = vmatpush1.msra.mxu0 0.0
      %2378 = vmatprep.subr.mxu0 0.0
      %2379 = vmatpush1.msra.mxu0 0.0
      %2380 = vmatprep.subr.mxu0 0.0
      %2381 = vmatpush1.msra.mxu0 0.0
      %2382 = vmatprep.subr.mxu0 0.0
      %2383 = vmatpush1.msra.mxu0 %v1217
      %2384 = vmatprep.subr.mxu0 0.0
      %2385 = vmatpush2.msra.mxu0 0.0
      %2386 = vmatprep.subr.mxu0 0.0
      %2387 = vmatpush2.msra.mxu0 0.0
      %2388 = vmatprep.subr.mxu0 0.0
      %2389 = vmatpush2.msra.mxu0 0.0
      %2390 = vmatprep.subr.mxu0 0.0
      %2391 = vmatpush2.msra.mxu0 0.0
      %2392 = vmatprep.subr.mxu0 0.0
      %2393 = vmatpush2.msra.mxu0 0.0
      %2394 = vmatprep.subr.mxu0 0.0
      %2395 = vmatpush2.msra.mxu0 0.0
      %2396 = vmatprep.subr.mxu0 0.0
      %2397 = vmatpush2.msra.mxu0 0.0
      %2398 = vmatprep.subr.mxu0 0.0
      %2399 = vmatpush2.msra.mxu0 0.0
      %2400 = vmatprep.subr.mxu0 0.0
      %2401 = vmatpush2.msra.mxu0 0.0
      %2402 = vmatprep.subr.mxu0 0.0
      %2403 = vmatpush2.msra.mxu0 0.0
      %2404 = vmatprep.subr.mxu0 0.0
      %2405 = vmatpush2.msra.mxu0 0.0
      %2406 = vmatprep.subr.mxu0 0.0
      %2407 = vmatpush2.msra.mxu0 0.0
      %2408 = vmatprep.subr.mxu0 0.0
      %2409 = vmatpush2.msra.mxu0 0.0
      %2410 = vmatprep.subr.mxu0 0.0
      %2411 = vmatpush2.msra.mxu0 0.0
      %2412 = vmatprep.subr.mxu0 0.0
      %2413 = vmatpush2.msra.mxu0 0.0
      %2414 = vmatprep.subr.mxu0 0.0
      %2415 = vmatpush2.msra.mxu0 0.0
      %2416 = vmatprep.mubr.f32.mxu0 0.0
      %2417 = vmatmul.mubr.f32.gmra.mxu0 %v2347
      %v2418 = vpop.f32.mrf.mxu0
      %v2419 = vadd.f32 0.0, %v2418
      %v2420 = vpop.f32.mrf.mxu0
      %2421 = vmatprep.mubr.f32.mxu0 0.0
      %2422 = vmatmul.mubr.f32.gmra.mxu0 %v2350
      %v2423 = vpop.f32.mrf.mxu0
      %v2424 = vadd.f32 0.0, %v2423
      %v2425 = vpop.f32.mrf.mxu0
      %2426 = vdwg.mxu0
      %v2427 = vmul.f32 %v2419, %v1368
      %v2428 = vmul.f32 %v2424, %v1368
      %v2429 = vadd.f32 %v2427, %v1390
      %v2430 = vadd.f32 %v2428, %v1390
      %v2431 = vmul.f32 %v2429, %v1411
      %v2432 = vmul.f32 %v2430, %v1411
      %v2433 = vsel %vm1428, %v2431, 0.0
      %2434 = vadd.xlane.f32.xlu0 %v2433
      %v2435 = vpop.xlane.xlu0 %2434
      %v2436 = vsel %vm1428, %v2432, 0.0
      %2437 = vadd.xlane.f32.xlu0 %v2436
      %v2438 = vpop.xlane.xlu0 %2437
      %v2439 = vmul.f32 %v1148, %v1480
      %v2440 = vmul.f32 %v1149, %v1480
      %v2441 = vsel %vm1428, %v2439, 0.0
      %2442 = vadd.xlane.f32.xlu0 %v2441
      %v2443 = vpop.xlane.xlu0 %2442
      %v2444 = vsel %vm1428, %v2440, 0.0
      %2445 = vadd.xlane.f32.xlu0 %v2444
      %v2446 = vpop.xlane.xlu0 %2445
      %v2447 = vadd.f32 %v2435, %v2443
      %v2448 = vadd.f32 %v2438, %v2446
      %v2449 = vadd.f32 %v2447, %v1565
      %v2450 = vadd.f32 %v2448, %v1565
      %v2451 = vmul.f32 %v2429, %v1586
      %v2452 = vmul.f32 %v2430, %v1586
      %v2453 = vsel %vm1428, %v2451, 0.0
      %2454 = vadd.xlane.f32.xlu0 %v2453
      %v2455 = vpop.xlane.xlu0 %2454
      %v2456 = vsel %vm1428, %v2452, 0.0
      %2457 = vadd.xlane.f32.xlu0 %v2456
      %v2458 = vpop.xlane.xlu0 %2457
      %v2459 = vmul.f32 %v1148, %v1654
      %v2460 = vmul.f32 %v1149, %v1654
      %v2461 = vsel %vm1428, %v2459, 0.0
      %2462 = vadd.xlane.f32.xlu0 %v2461
      %v2463 = vpop.xlane.xlu0 %2462
      %v2464 = vsel %vm1428, %v2460, 0.0
      %2465 = vadd.xlane.f32.xlu0 %v2464
      %v2466 = vpop.xlane.xlu0 %2465
      %v2467 = vadd.f32 %v2455, %v2463
      %v2468 = vadd.f32 %v2458, %v2466
      %v2469 = vadd.f32 %v2467, %v1565
      %v2470 = vadd.f32 %v2468, %v1565
      %v2471 = vxor.u32 %v2449, 2147483648
      %v2472 = vxor.u32 %v2450, 2147483648
      %v2473 = vmul.f32 %v2471, 1.442695
      %v2474 = vpow.pop %v2473
      %v2475 = vmul.f32 %v2472, 1.442695
      %v2476 = vpow.pop %v2475
      %v2477 = vadd.f32 %v2474, 1.0
      %v2478 = vadd.f32 %v2476, 1.0
      %v2479 = vrcp.pop %v2477
      %v2480 = vmul.f32 1.0, %v2479
      %v2481 = vrcp.pop %v2478
      %v2482 = vmul.f32 1.0, %v2481
      %2484 = vset.pattern.permute.xlu0 0
      %2485 = vperm.xlu0 %2484, %v2480
      %v2486 = vpop.permute.xlu0 %2485
      %2489 = vset.pattern.permute.xlu0 0
      %2490 = vperm.xlu0 %2489, %v2482
      %v2491 = vpop.permute.xlu0 %2490
      %v2493 = vmul.f32 %v2429, %v2486
      %v2494 = vmul.f32 %v2430, %v2491
      %v2495 = vxor.u32 %v2469, 2147483648
      %v2496 = vxor.u32 %v2470, 2147483648
      %v2497 = vmul.f32 %v2495, 1.442695
      %v2498 = vpow.pop %v2497
      %v2499 = vmul.f32 %v2496, 1.442695
      %v2500 = vpow.pop %v2499
      %v2501 = vadd.f32 %v2498, 1.0
      %v2502 = vadd.f32 %v2500, 1.0
      %v2503 = vrcp.pop %v2501
      %v2504 = vmul.f32 1.0, %v2503
      %v2505 = vrcp.pop %v2502
      %v2506 = vmul.f32 1.0, %v2505
      %2508 = vset.pattern.permute.xlu0 1
      %2509 = vperm.xlu0 %2508, %v2504
      %v2510 = vpop.permute.xlu0 %2509
      %2513 = vset.pattern.permute.xlu0 1
      %2514 = vperm.xlu0 %2513, %v2506
      %v2515 = vpop.permute.xlu0 %2514
      %v2517 = vmul.f32 %v1148, %v2510
      %v2518 = vmul.f32 %v1149, %v2515
      %v2519 = vadd.f32 %v2493, %v2517
      %v2520 = vadd.f32 %v2494, %v2518
      %p2521 = scmp.eq.s32.totalorder %s40, 0
      %s2522 = scalar_select %p2521, 1, 0
      %v2523 = vstv %s2522
      %vm2524 = vcmp.eq.s32.totalorder %v2523, 1
      %v2525 = vsel %vm2524, 0.0, %v2342
      %v2526 = vsel %vm2524, 0.0, %v2343
      %p2527 = scmp.eq.s32.totalorder %s40, 1
      %s2528 = scalar_select %p2527, 1, 0
      %v2529 = vstv %s2528
      %vm2530 = vcmp.eq.s32.totalorder %v2529, 1
      %v2531 = vsel %vm2530, 0.0, %v2519
      %v2532 = vsel %vm2530, 0.0, %v2520
      %2533 = vst.msk [vmem:[#allocation3 + $0x10] sm:$0xff] %vm1428, 0.0
      %2534 = vst.msk [vmem:[#allocation3 + $0x18] sm:$0xff] %vm1428, 0.0
      %2535 = vst.msk [vmem:[#allocation3 + $0x30] sm:$0xff] %vm1428, 0.0
      %2536 = vst.msk [vmem:[#allocation3 + $0x38] sm:$0xff] %vm1428, 0.0
      %2537 = vst.msk [vmem:[#allocation3 + $0x50] sm:$0xff] %vm1428, 0.0
      %2538 = vst.msk [vmem:[#allocation3 + $0x58] sm:$0xff] %vm1428, 0.0
      %2539 = vst.msk [vmem:[#allocation3 + $0x70] sm:$0xff] %vm1428, 0.0
      %2540 = vst.msk [vmem:[#allocation3 + $0x78] sm:$0xff] %vm1428, 0.0
      %2541 = vst.msk [vmem:[#allocation3 + $0x90] sm:$0xff] %vm1428, 0.0
      %2542 = vst.msk [vmem:[#allocation3 + $0x98] sm:$0xff] %vm1428, 0.0
      %2543 = vst.msk [vmem:[#allocation3 + $0xb0] sm:$0xff] %vm1428, 0.0
      %2544 = vst.msk [vmem:[#allocation3 + $0xb8] sm:$0xff] %vm1428, 0.0
      %2545 = vst.msk [vmem:[#allocation3 + $0xd0] sm:$0xff] %vm1428, 0.0
      %2546 = vst.msk [vmem:[#allocation3 + $0xd8] sm:$0xff] %vm1428, 0.0
      %2547 = vst.msk [vmem:[#allocation3 + $0xf0] sm:$0xff] %vm1428, 0.0
      %2548 = vst.msk [vmem:[#allocation3 + $0xf8] sm:$0xff] %vm1428, 0.0
      %2549 = vst.msk [vmem:[#allocation3 + $0x110] sm:$0xff] %vm1428, 0.0
      %2550 = vst.msk [vmem:[#allocation3 + $0x118] sm:$0xff] %vm1428, 0.0
      %2551 = vst.msk [vmem:[#allocation3 + $0x130] sm:$0xff] %vm1428, 0.0
      %2552 = vst.msk [vmem:[#allocation3 + $0x138] sm:$0xff] %vm1428, 0.0
      %2553 = vst.msk [vmem:[#allocation3] sm:$0xff] %vm1428, %v2525
      %2554 = vst.msk [vmem:[#allocation3 + $0x8] sm:$0xff] %vm1428, %v2526
      %s2555 = scalar_lea.vmem [#allocation3], 32
      %2556 = vst.msk [vmem:[%s2555] sm:$0xff] %vm1428, %v2135
      %2557 = vst.msk [vmem:[%s2555 + $0x8] sm:$0xff] %vm1428, %v2136
      %2558 = vst.msk [vmem:[%s2555 + $0x20] sm:$0xff] %vm1428, %v2137
      %2559 = vst.msk [vmem:[%s2555 + $0x28] sm:$0xff] %vm1428, %v2138
      %2560 = vst.msk [vmem:[%s2555 + $0x40] sm:$0xff] %vm1428, %v2139
      %2561 = vst.msk [vmem:[%s2555 + $0x48] sm:$0xff] %vm1428, %v2140
      %2562 = vst.msk [vmem:[%s2555 + $0x60] sm:$0xff] %vm1428, %v2141
      %2563 = vst.msk [vmem:[%s2555 + $0x68] sm:$0xff] %vm1428, %v2142
      %2564 = vst.msk [vmem:[%s2555 + $0x80] sm:$0xff] %vm1428, %v2143
      %2565 = vst.msk [vmem:[%s2555 + $0x88] sm:$0xff] %vm1428, %v2144
      %2566 = vst.msk [vmem:[%s2555 + $0xa0] sm:$0xff] %vm1428, %v2145
      %2567 = vst.msk [vmem:[%s2555 + $0xa8] sm:$0xff] %vm1428, %v2146
      %2568 = vst.msk [vmem:[%s2555 + $0xc0] sm:$0xff] %vm1428, %v2147
      %2569 = vst.msk [vmem:[%s2555 + $0xc8] sm:$0xff] %vm1428, %v2148
      %2570 = vst.msk [vmem:[%s2555 + $0xe0] sm:$0xff] %vm1428, %v2149
      %2571 = vst.msk [vmem:[%s2555 + $0xe8] sm:$0xff] %vm1428, %v2150
      %s2572 = scalar_lea.vmem [#allocation3], 288
      %2573 = vst.msk [vmem:[%s2572] sm:$0xff] %vm1428, %v2531
      %2574 = vst.msk [vmem:[%s2572 + $0x8] sm:$0xff] %vm1428, %v2532
      %v2575 = vld [vmem:[#allocation3] sm:$0xff]
      %v2576 = vld [vmem:[#allocation3 + $0x8] sm:$0xff]
      %v2577 = vld [vmem:[#allocation3 + $0x10] sm:$0xff]
      %v2578 = vld [vmem:[#allocation3 + $0x18] sm:$0xff]
      %v2579 = vld [vmem:[#allocation3 + $0x20] sm:$0xff]
      %v2580 = vld [vmem:[#allocation3 + $0x28] sm:$0xff]
      %v2581 = vld [vmem:[#allocation3 + $0x30] sm:$0xff]
      %v2582 = vld [vmem:[#allocation3 + $0x38] sm:$0xff]
      %v2583 = vld [vmem:[#allocation3 + $0x40] sm:$0xff]
      %v2584 = vld [vmem:[#allocation3 + $0x48] sm:$0xff]
      %v2585 = vld [vmem:[#allocation3 + $0x50] sm:$0xff]
      %v2586 = vld [vmem:[#allocation3 + $0x58] sm:$0xff]
      %v2587 = vld [vmem:[#allocation3 + $0x60] sm:$0xff]
      %v2588 = vld [vmem:[#allocation3 + $0x68] sm:$0xff]
      %v2589 = vld [vmem:[#allocation3 + $0x70] sm:$0xff]
      %v2590 = vld [vmem:[#allocation3 + $0x78] sm:$0xff]
      %v2591 = vld [vmem:[#allocation3 + $0x80] sm:$0xff]
      %v2592 = vld [vmem:[#allocation3 + $0x88] sm:$0xff]
      %v2593 = vld [vmem:[#allocation3 + $0x90] sm:$0xff]
      %v2594 = vld [vmem:[#allocation3 + $0x98] sm:$0xff]
      %v2595 = vld [vmem:[#allocation3 + $0xa0] sm:$0xff]
      %v2596 = vld [vmem:[#allocation3 + $0xa8] sm:$0xff]
      %v2597 = vld [vmem:[#allocation3 + $0xb0] sm:$0xff]
      %v2598 = vld [vmem:[#allocation3 + $0xb8] sm:$0xff]
      %v2599 = vld [vmem:[#allocation3 + $0xc0] sm:$0xff]
      %v2600 = vld [vmem:[#allocation3 + $0xc8] sm:$0xff]
      %v2601 = vld [vmem:[#allocation3 + $0xd0] sm:$0xff]
      %v2602 = vld [vmem:[#allocation3 + $0xd8] sm:$0xff]
      %v2603 = vld [vmem:[#allocation3 + $0xe0] sm:$0xff]
      %v2604 = vld [vmem:[#allocation3 + $0xe8] sm:$0xff]
      %v2605 = vld [vmem:[#allocation3 + $0xf0] sm:$0xff]
      %v2606 = vld [vmem:[#allocation3 + $0xf8] sm:$0xff]
      %v2607 = vld [vmem:[%s13] sm:$0xff]
      %v2608 = vld [vmem:[%s13 + $0x8] sm:$0xff]
      %v2610 = vsel %vm1428, %v2575, 0
      %v2613 = vsel %vm1428, %v2576, 0
      %v2616 = vsel %vm1428, %v2577, 0
      %v2619 = vsel %vm1428, %v2578, 0
      %v2622 = vsel %vm1428, %v2579, 0
      %v2625 = vsel %vm1428, %v2580, 0
      %v2628 = vsel %vm1428, %v2581, 0
      %v2631 = vsel %vm1428, %v2582, 0
      %v2634 = vsel %vm1428, %v2583, 0
      %v2637 = vsel %vm1428, %v2584, 0
      %v2640 = vsel %vm1428, %v2585, 0
      %v2643 = vsel %vm1428, %v2586, 0
      %v2646 = vsel %vm1428, %v2587, 0
      %v2649 = vsel %vm1428, %v2588, 0
      %v2652 = vsel %vm1428, %v2589, 0
      %v2655 = vsel %vm1428, %v2590, 0
      %v2658 = vsel %vm1428, %v2591, 0
      %v2661 = vsel %vm1428, %v2592, 0
      %v2664 = vsel %vm1428, %v2593, 0
      %v2667 = vsel %vm1428, %v2594, 0
      %v2670 = vsel %vm1428, %v2595, 0
      %v2673 = vsel %vm1428, %v2596, 0
      %v2676 = vsel %vm1428, %v2597, 0
      %v2679 = vsel %vm1428, %v2598, 0
      %v2682 = vsel %vm1428, %v2599, 0
      %v2685 = vsel %vm1428, %v2600, 0
      %v2688 = vsel %vm1428, %v2601, 0
      %v2691 = vsel %vm1428, %v2602, 0
      %v2694 = vsel %vm1428, %v2603, 0
      %v2697 = vsel %vm1428, %v2604, 0
      %v2700 = vsel %vm1428, %v2605, 0
      %v2703 = vsel %vm1428, %v2606, 0
      %2705 = vmatprep.subr.mxu0 0.0
      %2706 = vmatpush1.msra.mxu0 0.0
      %2707 = vmatprep.subr.mxu0 0.0
      %2708 = vmatpush1.msra.mxu0 0.0
      %2709 = vmatprep.subr.mxu0 0.0
      %2710 = vmatpush1.msra.mxu0 0.0
      %2711 = vmatprep.subr.mxu0 0.0
      %2712 = vmatpush1.msra.mxu0 0.0
      %2713 = vmatprep.subr.mxu0 0.0
      %2714 = vmatpush1.msra.mxu0 0.0
      %2715 = vmatprep.subr.mxu0 0.0
      %2716 = vmatpush1.msra.mxu0 0.0
      %2717 = vmatprep.subr.mxu0 0.0
      %2718 = vmatpush1.msra.mxu0 0.0
      %2719 = vmatprep.subr.mxu0 0.0
      %2720 = vmatpush1.msra.mxu0 0.0
      %2721 = vmatprep.subr.mxu0 0.0
      %2722 = vmatpush1.msra.mxu0 0.0
      %2723 = vmatprep.subr.mxu0 0.0
      %2724 = vmatpush1.msra.mxu0 0.0
      %2725 = vmatprep.subr.mxu0 0.0
      %2726 = vmatpush1.msra.mxu0 0.0
      %2727 = vmatprep.subr.mxu0 0.0
      %2728 = vmatpush1.msra.mxu0 0.0
      %2729 = vmatprep.subr.mxu0 0.0
      %2730 = vmatpush1.msra.mxu0 0.0
      %2731 = vmatprep.subr.mxu0 0.0
      %2732 = vmatpush1.msra.mxu0 0.0
      %2733 = vmatprep.subr.mxu0 0.0
      %2734 = vmatpush1.msra.mxu0 %v2608
      %2735 = vmatprep.subr.mxu0 0.0
      %2736 = vmatpush1.msra.mxu0 %v2607
      %2737 = vmatprep.subr.mxu0 0.0
      %2738 = vmatpush2.msra.mxu0 0.0
      %2739 = vmatprep.subr.mxu0 0.0
      %2740 = vmatpush2.msra.mxu0 0.0
      %2741 = vmatprep.subr.mxu0 0.0
      %2742 = vmatpush2.msra.mxu0 0.0
      %2743 = vmatprep.subr.mxu0 0.0
      %2744 = vmatpush2.msra.mxu0 0.0
      %2745 = vmatprep.subr.mxu0 0.0
      %2746 = vmatpush2.msra.mxu0 0.0
      %2747 = vmatprep.subr.mxu0 0.0
      %2748 = vmatpush2.msra.mxu0 0.0
      %2749 = vmatprep.subr.mxu0 0.0
      %2750 = vmatpush2.msra.mxu0 0.0
      %2751 = vmatprep.subr.mxu0 0.0
      %2752 = vmatpush2.msra.mxu0 0.0
      %2753 = vmatprep.subr.mxu0 0.0
      %2754 = vmatpush2.msra.mxu0 0.0
      %2755 = vmatprep.subr.mxu0 0.0
      %2756 = vmatpush2.msra.mxu0 0.0
      %2757 = vmatprep.subr.mxu0 0.0
      %2758 = vmatpush2.msra.mxu0 0.0
      %2759 = vmatprep.subr.mxu0 0.0
      %2760 = vmatpush2.msra.mxu0 0.0
      %2761 = vmatprep.subr.mxu0 0.0
      %2762 = vmatpush2.msra.mxu0 0.0
      %2763 = vmatprep.subr.mxu0 0.0
      %2764 = vmatpush2.msra.mxu0 0.0
      %2765 = vmatprep.subr.mxu0 0.0
      %2766 = vmatpush2.msra.mxu0 0.0
      %2767 = vmatprep.subr.mxu0 0.0
      %2768 = vmatpush2.msra.mxu0 0.0
      %2769 = vmatprep.mubr.f32.mxu0 0.0
      %2770 = vmatmul.mubr.f32.gmra.mxu0 %v2610
      %v2771 = vpop.f32.mrf.mxu0
      %v2772 = vadd.f32 0.0, %v2771
      %v2773 = vpop.f32.mrf.mxu0
      %2774 = vmatprep.mubr.f32.mxu0 0.0
      %2775 = vmatmul.mubr.f32.gmra.mxu0 %v2613
      %v2776 = vpop.f32.mrf.mxu0
      %v2777 = vadd.f32 0.0, %v2776
      %v2778 = vpop.f32.mrf.mxu0
      %2779 = vmatprep.mubr.f32.mxu0 0.0
      %2780 = vmatmul.mubr.f32.gmra.mxu0 %v2616
      %v2781 = vpop.f32.mrf.mxu0
      %v2782 = vadd.f32 0.0, %v2781
      %v2783 = vpop.f32.mrf.mxu0
      %2784 = vmatprep.mubr.f32.mxu0 0.0
      %2785 = vmatmul.mubr.f32.gmra.mxu0 %v2619
      %v2786 = vpop.f32.mrf.mxu0
      %v2787 = vadd.f32 0.0, %v2786
      %v2788 = vpop.f32.mrf.mxu0
      %2789 = vmatprep.mubr.f32.mxu0 0.0
      %2790 = vmatmul.mubr.f32.gmra.mxu0 %v2622
      %v2791 = vpop.f32.mrf.mxu0
      %v2792 = vadd.f32 0.0, %v2791
      %v2793 = vpop.f32.mrf.mxu0
      %2794 = vmatprep.mubr.f32.mxu0 0.0
      %2795 = vmatmul.mubr.f32.gmra.mxu0 %v2625
      %v2796 = vpop.f32.mrf.mxu0
      %v2797 = vadd.f32 0.0, %v2796
      %v2798 = vpop.f32.mrf.mxu0
      %2799 = vmatprep.mubr.f32.mxu0 0.0
      %2800 = vmatmul.mubr.f32.gmra.mxu0 %v2628
      %v2801 = vpop.f32.mrf.mxu0
      %v2802 = vadd.f32 0.0, %v2801
      %v2803 = vpop.f32.mrf.mxu0
      %2804 = vmatprep.mubr.f32.mxu0 0.0
      %2805 = vmatmul.mubr.f32.gmra.mxu0 %v2631
      %v2806 = vpop.f32.mrf.mxu0
      %v2807 = vadd.f32 0.0, %v2806
      %v2808 = vpop.f32.mrf.mxu0
      %2809 = vmatprep.mubr.f32.mxu0 0.0
      %2810 = vmatmul.mubr.f32.gmra.mxu0 %v2634
      %v2811 = vpop.f32.mrf.mxu0
      %v2812 = vadd.f32 0.0, %v2811
      %v2813 = vpop.f32.mrf.mxu0
      %2814 = vmatprep.mubr.f32.mxu0 0.0
      %2815 = vmatmul.mubr.f32.gmra.mxu0 %v2637
      %v2816 = vpop.f32.mrf.mxu0
      %v2817 = vadd.f32 0.0, %v2816
      %v2818 = vpop.f32.mrf.mxu0
      %2819 = vmatprep.mubr.f32.mxu0 0.0
      %2820 = vmatmul.mubr.f32.gmra.mxu0 %v2640
      %v2821 = vpop.f32.mrf.mxu0
      %v2822 = vadd.f32 0.0, %v2821
      %v2823 = vpop.f32.mrf.mxu0
      %2824 = vmatprep.mubr.f32.mxu0 0.0
      %2825 = vmatmul.mubr.f32.gmra.mxu0 %v2643
      %v2826 = vpop.f32.mrf.mxu0
      %v2827 = vadd.f32 0.0, %v2826
      %v2828 = vpop.f32.mrf.mxu0
      %2829 = vmatprep.mubr.f32.mxu0 0.0
      %2830 = vmatmul.mubr.f32.gmra.mxu0 %v2646
      %v2831 = vpop.f32.mrf.mxu0
      %v2832 = vadd.f32 0.0, %v2831
      %v2833 = vpop.f32.mrf.mxu0
      %2834 = vmatprep.mubr.f32.mxu0 0.0
      %2835 = vmatmul.mubr.f32.gmra.mxu0 %v2649
      %v2836 = vpop.f32.mrf.mxu0
      %v2837 = vadd.f32 0.0, %v2836
      %v2838 = vpop.f32.mrf.mxu0
      %2839 = vmatprep.mubr.f32.mxu0 0.0
      %2840 = vmatmul.mubr.f32.gmra.mxu0 %v2652
      %v2841 = vpop.f32.mrf.mxu0
      %v2842 = vadd.f32 0.0, %v2841
      %v2843 = vpop.f32.mrf.mxu0
      %2844 = vmatprep.mubr.f32.mxu0 0.0
      %2845 = vmatmul.mubr.f32.gmra.mxu0 %v2655
      %v2846 = vpop.f32.mrf.mxu0
      %v2847 = vadd.f32 0.0, %v2846
      %v2848 = vpop.f32.mrf.mxu0
      %2849 = vmatprep.mubr.f32.mxu0 0.0
      %2850 = vmatmul.mubr.f32.gmra.mxu0 %v2658
      %v2851 = vpop.f32.mrf.mxu0
      %v2852 = vadd.f32 0.0, %v2851
      %v2853 = vpop.f32.mrf.mxu0
      %2854 = vmatprep.mubr.f32.mxu0 0.0
      %2855 = vmatmul.mubr.f32.gmra.mxu0 %v2661
      %v2856 = vpop.f32.mrf.mxu0
      %v2857 = vadd.f32 0.0, %v2856
      %v2858 = vpop.f32.mrf.mxu0
      %2859 = vmatprep.mubr.f32.mxu0 0.0
      %2860 = vmatmul.mubr.f32.gmra.mxu0 %v2664
      %v2861 = vpop.f32.mrf.mxu0
      %v2862 = vadd.f32 0.0, %v2861
      %v2863 = vpop.f32.mrf.mxu0
      %2864 = vmatprep.mubr.f32.mxu0 0.0
      %2865 = vmatmul.mubr.f32.gmra.mxu0 %v2667
      %v2866 = vpop.f32.mrf.mxu0
      %v2867 = vadd.f32 0.0, %v2866
      %v2868 = vpop.f32.mrf.mxu0
      %2869 = vmatprep.mubr.f32.mxu0 0.0
      %2870 = vmatmul.mubr.f32.gmra.mxu0 %v2670
      %v2871 = vpop.f32.mrf.mxu0
      %v2872 = vadd.f32 0.0, %v2871
      %v2873 = vpop.f32.mrf.mxu0
      %2874 = vmatprep.mubr.f32.mxu0 0.0
      %2875 = vmatmul.mubr.f32.gmra.mxu0 %v2673
      %v2876 = vpop.f32.mrf.mxu0
      %v2877 = vadd.f32 0.0, %v2876
      %v2878 = vpop.f32.mrf.mxu0
      %2879 = vmatprep.mubr.f32.mxu0 0.0
      %2880 = vmatmul.mubr.f32.gmra.mxu0 %v2676
      %v2881 = vpop.f32.mrf.mxu0
      %v2882 = vadd.f32 0.0, %v2881
      %v2883 = vpop.f32.mrf.mxu0
      %2884 = vmatprep.mubr.f32.mxu0 0.0
      %2885 = vmatmul.mubr.f32.gmra.mxu0 %v2679
      %v2886 = vpop.f32.mrf.mxu0
      %v2887 = vadd.f32 0.0, %v2886
      %v2888 = vpop.f32.mrf.mxu0
      %2889 = vmatprep.mubr.f32.mxu0 0.0
      %2890 = vmatmul.mubr.f32.gmra.mxu0 %v2682
      %v2891 = vpop.f32.mrf.mxu0
      %v2892 = vadd.f32 0.0, %v2891
      %v2893 = vpop.f32.mrf.mxu0
      %2894 = vmatprep.mubr.f32.mxu0 0.0
      %2895 = vmatmul.mubr.f32.gmra.mxu0 %v2685
      %v2896 = vpop.f32.mrf.mxu0
      %v2897 = vadd.f32 0.0, %v2896
      %v2898 = vpop.f32.mrf.mxu0
      %2899 = vmatprep.mubr.f32.mxu0 0.0
      %2900 = vmatmul.mubr.f32.gmra.mxu0 %v2688
      %v2901 = vpop.f32.mrf.mxu0
      %v2902 = vadd.f32 0.0, %v2901
      %v2903 = vpop.f32.mrf.mxu0
      %2904 = vmatprep.mubr.f32.mxu0 0.0
      %2905 = vmatmul.mubr.f32.gmra.mxu0 %v2691
      %v2906 = vpop.f32.mrf.mxu0
      %v2907 = vadd.f32 0.0, %v2906
      %v2908 = vpop.f32.mrf.mxu0
      %2909 = vmatprep.mubr.f32.mxu0 0.0
      %2910 = vmatmul.mubr.f32.gmra.mxu0 %v2694
      %v2911 = vpop.f32.mrf.mxu0
      %v2912 = vadd.f32 0.0, %v2911
      %v2913 = vpop.f32.mrf.mxu0
      %2914 = vmatprep.mubr.f32.mxu0 0.0
      %2915 = vmatmul.mubr.f32.gmra.mxu0 %v2697
      %v2916 = vpop.f32.mrf.mxu0
      %v2917 = vadd.f32 0.0, %v2916
      %v2918 = vpop.f32.mrf.mxu0
      %2919 = vmatprep.mubr.f32.mxu0 0.0
      %2920 = vmatmul.mubr.f32.gmra.mxu0 %v2700
      %v2921 = vpop.f32.mrf.mxu0
      %v2922 = vadd.f32 0.0, %v2921
      %v2923 = vpop.f32.mrf.mxu0
      %2924 = vmatprep.mubr.f32.mxu0 0.0
      %2925 = vmatmul.mubr.f32.gmra.mxu0 %v2703
      %v2926 = vpop.f32.mrf.mxu0
      %v2927 = vadd.f32 0.0, %v2926
      %v2928 = vpop.f32.mrf.mxu0
      %2929 = vdwg.mxu0
      %v2930 = vrot.slane %v2772, 7
      %v2931 = vrot.slane %v2777, 7
      %v2932 = vrot.slane %v2787, 7
      %v2933 = vrot.slane %v2792, 7
      %v2934 = vrot.slane %v2797, 7
      %v2935 = vrot.slane %v2807, 7
      %v2936 = vrot.slane %v2812, 7
      %v2937 = vrot.slane %v2817, 7
      %v2938 = vrot.slane %v2827, 7
      %v2939 = vrot.slane %v2832, 7
      %v2940 = vrot.slane %v2837, 7
      %v2941 = vrot.slane %v2847, 7
      %v2942 = vrot.slane %v2852, 7
      %v2943 = vrot.slane %v2857, 7
      %v2944 = vrot.slane %v2867, 7
      %v2945 = vrot.slane %v2872, 7
      %v2946 = vrot.slane %v2877, 7
      %v2947 = vrot.slane %v2887, 7
      %v2948 = vrot.slane %v2892, 7
      %v2949 = vrot.slane %v2897, 7
      %v2950 = vrot.slane %v2907, 7
      %v2951 = vrot.slane %v2912, 7
      %v2952 = vrot.slane %v2917, 7
      %v2953 = vrot.slane %v2927, 7
      %v2954 = vlaneseq
      %v2955 = vshrl.u32 %v2954, 7
      %vm2956 = vcmp.lt.s32.totalorder %v2955, 1
      %v2957 = vsel %vm2956, %v2951, %v2952
      %v2958 = vsel %vm2956, %v2950, %v2951
      %v2959 = vsel %vm2956, %v2948, %v2949
      %v2960 = vsel %vm2956, %v2947, %v2948
      %v2961 = vsel %vm2956, %v2945, %v2946
      %v2962 = vsel %vm2956, %v2944, %v2945
      %v2963 = vsel %vm2956, %v2942, %v2943
      %v2964 = vsel %vm2956, %v2941, %v2942
      %v2965 = vsel %vm2956, %v2939, %v2940
      %v2966 = vsel %vm2956, %v2938, %v2939
      %v2967 = vsel %vm2956, %v2936, %v2937
      %v2968 = vsel %vm2956, %v2935, %v2936
      %v2969 = vsel %vm2956, %v2933, %v2934
      %v2970 = vsel %vm2956, %v2932, %v2933
      %v2971 = vsel %vm2956, %v2930, %v2931
      %v2972 = vsel %vm2956, %v2953, %v2930
      %v2973 = vadd.f32 %v2972, 0.0
      %v2974 = vadd.f32 %v2971, 0.0
      %v2975 = vadd.f32 %v2970, 0.0
      %v2976 = vadd.f32 %v2969, 0.0
      %v2977 = vadd.f32 %v2968, 0.0
      %v2978 = vadd.f32 %v2967, 0.0
      %v2979 = vadd.f32 %v2966, 0.0
      %v2980 = vadd.f32 %v2965, 0.0
      %v2981 = vadd.f32 %v2964, 0.0
      %v2982 = vadd.f32 %v2963, 0.0
      %v2983 = vadd.f32 %v2962, 0.0
      %v2984 = vadd.f32 %v2961, 0.0
      %v2985 = vadd.f32 %v2960, 0.0
      %v2986 = vadd.f32 %v2959, 0.0
      %v2987 = vadd.f32 %v2958, 0.0
      %v2988 = vadd.f32 %v2957, 0.0
      %3005 = vrot.lane.b32.xlu0 %v2772, 120
      %v3006 = vpop.permute.xlu0 %3005
      %3007 = vrot.lane.b32.xlu0 %v2777, 120
      %v3008 = vpop.permute.xlu0 %3007
      %3009 = vrot.lane.b32.xlu0 %v2792, 120
      %v3010 = vpop.permute.xlu0 %3009
      %3011 = vrot.lane.b32.xlu0 %v2797, 120
      %v3012 = vpop.permute.xlu0 %3011
      %3013 = vrot.lane.b32.xlu0 %v2812, 120
      %v3014 = vpop.permute.xlu0 %3013
      %3015 = vrot.lane.b32.xlu0 %v2817, 120
      %v3016 = vpop.permute.xlu0 %3015
      %3017 = vrot.lane.b32.xlu0 %v2832, 120
      %v3018 = vpop.permute.xlu0 %3017
      %3019 = vrot.lane.b32.xlu0 %v2837, 120
      %v3020 = vpop.permute.xlu0 %3019
      %3021 = vrot.lane.b32.xlu0 %v2852, 120
      %v3022 = vpop.permute.xlu0 %3021
      %3023 = vrot.lane.b32.xlu0 %v2857, 120
      %v3024 = vpop.permute.xlu0 %3023
      %3025 = vrot.lane.b32.xlu0 %v2872, 120
      %v3026 = vpop.permute.xlu0 %3025
      %3027 = vrot.lane.b32.xlu0 %v2877, 120
      %v3028 = vpop.permute.xlu0 %3027
      %3029 = vrot.lane.b32.xlu0 %v2892, 120
      %v3030 = vpop.permute.xlu0 %3029
      %3031 = vrot.lane.b32.xlu0 %v2897, 120
      %v3032 = vpop.permute.xlu0 %3031
      %3033 = vrot.lane.b32.xlu0 %v2912, 120
      %v3034 = vpop.permute.xlu0 %3033
      %3035 = vrot.lane.b32.xlu0 %v2917, 120
      %v3036 = vpop.permute.xlu0 %3035
      %v3053 = vadd.f32 %v2973, %v3006
      %v3054 = vadd.f32 %v2974, %v3008
      %v3055 = vadd.f32 %v2975, %v3010
      %v3056 = vadd.f32 %v2976, %v3012
      %v3057 = vadd.f32 %v2977, %v3014
      %v3058 = vadd.f32 %v2978, %v3016
      %v3059 = vadd.f32 %v2979, %v3018
      %v3060 = vadd.f32 %v2980, %v3020
      %v3061 = vadd.f32 %v2981, %v3022
      %v3062 = vadd.f32 %v2982, %v3024
      %v3063 = vadd.f32 %v2983, %v3026
      %v3064 = vadd.f32 %v2984, %v3028
      %v3065 = vadd.f32 %v2985, %v3030
      %v3066 = vadd.f32 %v2986, %v3032
      %v3067 = vadd.f32 %v2987, %v3034
      %v3068 = vadd.f32 %v2988, %v3036
      %3077 = vrot.lane.b32.xlu0 %v2772, 112
      %v3078 = vpop.permute.xlu0 %3077
      %3079 = vrot.lane.b32.xlu0 %v2777, 112
      %v3080 = vpop.permute.xlu0 %3079
      %3081 = vrot.lane.b32.xlu0 %v2782, 112
      %v3082 = vpop.permute.xlu0 %3081
      %3083 = vrot.lane.b32.xlu0 %v2792, 112
      %v3084 = vpop.permute.xlu0 %3083
      %3085 = vrot.lane.b32.xlu0 %v2797, 112
      %v3086 = vpop.permute.xlu0 %3085
      %3087 = vrot.lane.b32.xlu0 %v2802, 112
      %v3088 = vpop.permute.xlu0 %3087
      %3089 = vrot.lane.b32.xlu0 %v2812, 112
      %v3090 = vpop.permute.xlu0 %3089
      %3091 = vrot.lane.b32.xlu0 %v2817, 112
      %v3092 = vpop.permute.xlu0 %3091
      %3093 = vrot.lane.b32.xlu0 %v2822, 112
      %v3094 = vpop.permute.xlu0 %3093
      %3095 = vrot.lane.b32.xlu0 %v2832, 112
      %v3096 = vpop.permute.xlu0 %3095
      %3097 = vrot.lane.b32.xlu0 %v2837, 112
      %v3098 = vpop.permute.xlu0 %3097
      %3099 = vrot.lane.b32.xlu0 %v2842, 112
      %v3100 = vpop.permute.xlu0 %3099
      %3101 = vrot.lane.b32.xlu0 %v2852, 112
      %v3102 = vpop.permute.xlu0 %3101
      %3103 = vrot.lane.b32.xlu0 %v2857, 112
      %v3104 = vpop.permute.xlu0 %3103
      %3105 = vrot.lane.b32.xlu0 %v2862, 112
      %v3106 = vpop.permute.xlu0 %3105
      %3107 = vrot.lane.b32.xlu0 %v2872, 112
      %v3108 = vpop.permute.xlu0 %3107
      %3109 = vrot.lane.b32.xlu0 %v2877, 112
      %v3110 = vpop.permute.xlu0 %3109
      %3111 = vrot.lane.b32.xlu0 %v2882, 112
      %v3112 = vpop.permute.xlu0 %3111
      %3113 = vrot.lane.b32.xlu0 %v2892, 112
      %v3114 = vpop.permute.xlu0 %3113
      %3115 = vrot.lane.b32.xlu0 %v2897, 112
      %v3116 = vpop.permute.xlu0 %3115
      %3117 = vrot.lane.b32.xlu0 %v2902, 112
      %v3118 = vpop.permute.xlu0 %3117
      %3119 = vrot.lane.b32.xlu0 %v2912, 112
      %v3120 = vpop.permute.xlu0 %3119
      %3121 = vrot.lane.b32.xlu0 %v2917, 112
      %v3122 = vpop.permute.xlu0 %3121
      %3123 = vrot.lane.b32.xlu0 %v2922, 112
      %v3124 = vpop.permute.xlu0 %3123
      %v3149 = vrot.slane %v3078, 1
      %v3150 = vrot.slane %v3080, 1
      %v3151 = vrot.slane %v3082, 1
      %v3152 = vrot.slane %v3084, 1
      %v3153 = vrot.slane %v3086, 1
      %v3154 = vrot.slane %v3088, 1
      %v3155 = vrot.slane %v3090, 1
      %v3156 = vrot.slane %v3092, 1
      %v3157 = vrot.slane %v3094, 1
      %v3158 = vrot.slane %v3096, 1
      %v3159 = vrot.slane %v3098, 1
      %v3160 = vrot.slane %v3100, 1
      %v3161 = vrot.slane %v3102, 1
      %v3162 = vrot.slane %v3104, 1
      %v3163 = vrot.slane %v3106, 1
      %v3164 = vrot.slane %v3108, 1
      %v3165 = vrot.slane %v3110, 1
      %v3166 = vrot.slane %v3112, 1
      %v3167 = vrot.slane %v3114, 1
      %v3168 = vrot.slane %v3116, 1
      %v3169 = vrot.slane %v3118, 1
      %v3170 = vrot.slane %v3120, 1
      %v3171 = vrot.slane %v3122, 1
      %v3172 = vrot.slane %v3124, 1
      %vm3173 = vcmp.lt.s32.totalorder %v2955, 7
      %v3174 = vsel %vm3173, %v3171, %v3172
      %v3175 = vsel %vm3173, %v3170, %v3171
      %v3176 = vsel %vm3173, %v3168, %v3169
      %v3177 = vsel %vm3173, %v3167, %v3168
      %v3178 = vsel %vm3173, %v3165, %v3166
      %v3179 = vsel %vm3173, %v3164, %v3165
      %v3180 = vsel %vm3173, %v3162, %v3163
      %v3181 = vsel %vm3173, %v3161, %v3162
      %v3182 = vsel %vm3173, %v3159, %v3160
      %v3183 = vsel %vm3173, %v3158, %v3159
      %v3184 = vsel %vm3173, %v3156, %v3157
      %v3185 = vsel %vm3173, %v3155, %v3156
      %v3186 = vsel %vm3173, %v3153, %v3154
      %v3187 = vsel %vm3173, %v3152, %v3153
      %v3188 = vsel %vm3173, %v3150, %v3151
      %v3189 = vsel %vm3173, %v3149, %v3150
      %v3190 = vadd.f32 %v3053, %v3189
      %v3191 = vadd.f32 %v3054, %v3188
      %v3192 = vadd.f32 %v3055, %v3187
      %v3193 = vadd.f32 %v3056, %v3186
      %v3194 = vadd.f32 %v3057, %v3185
      %v3195 = vadd.f32 %v3058, %v3184
      %v3196 = vadd.f32 %v3059, %v3183
      %v3197 = vadd.f32 %v3060, %v3182
      %v3198 = vadd.f32 %v3061, %v3181
      %v3199 = vadd.f32 %v3062, %v3180
      %v3200 = vadd.f32 %v3063, %v3179
      %v3201 = vadd.f32 %v3064, %v3178
      %v3202 = vadd.f32 %v3065, %v3177
      %v3203 = vadd.f32 %v3066, %v3176
      %v3204 = vadd.f32 %v3067, %v3175
      %v3205 = vadd.f32 %v3068, %v3174
      %v3206 = vld [vmem:[%s2555] sm:$0xff]
      %v3207 = vld [vmem:[%s2555 + $0x8] sm:$0xff]
      %v3208 = vld [vmem:[%s2555 + $0x10] sm:$0xff]
      %v3209 = vld [vmem:[%s2555 + $0x18] sm:$0xff]
      %v3210 = vld [vmem:[%s2555 + $0x20] sm:$0xff]
      %v3211 = vld [vmem:[%s2555 + $0x28] sm:$0xff]
      %v3212 = vld [vmem:[%s2555 + $0x30] sm:$0xff]
      %v3213 = vld [vmem:[%s2555 + $0x38] sm:$0xff]
      %v3214 = vld [vmem:[%s2555 + $0x40] sm:$0xff]
      %v3215 = vld [vmem:[%s2555 + $0x48] sm:$0xff]
      %v3216 = vld [vmem:[%s2555 + $0x50] sm:$0xff]
      %v3217 = vld [vmem:[%s2555 + $0x58] sm:$0xff]
      %v3218 = vld [vmem:[%s2555 + $0x60] sm:$0xff]
      %v3219 = vld [vmem:[%s2555 + $0x68] sm:$0xff]
      %v3220 = vld [vmem:[%s2555 + $0x70] sm:$0xff]
      %v3221 = vld [vmem:[%s2555 + $0x78] sm:$0xff]
      %v3222 = vld [vmem:[%s2555 + $0x80] sm:$0xff]
      %v3223 = vld [vmem:[%s2555 + $0x88] sm:$0xff]
      %v3224 = vld [vmem:[%s2555 + $0x90] sm:$0xff]
      %v3225 = vld [vmem:[%s2555 + $0x98] sm:$0xff]
      %v3226 = vld [vmem:[%s2555 + $0xa0] sm:$0xff]
      %v3227 = vld [vmem:[%s2555 + $0xa8] sm:$0xff]
      %v3228 = vld [vmem:[%s2555 + $0xb0] sm:$0xff]
      %v3229 = vld [vmem:[%s2555 + $0xb8] sm:$0xff]
      %v3230 = vld [vmem:[%s2555 + $0xc0] sm:$0xff]
      %v3231 = vld [vmem:[%s2555 + $0xc8] sm:$0xff]
      %v3232 = vld [vmem:[%s2555 + $0xd0] sm:$0xff]
      %v3233 = vld [vmem:[%s2555 + $0xd8] sm:$0xff]
      %v3234 = vld [vmem:[%s2555 + $0xe0] sm:$0xff]
      %v3235 = vld [vmem:[%s2555 + $0xe8] sm:$0xff]
      %v3236 = vld [vmem:[%s2555 + $0xf0] sm:$0xff]
      %v3237 = vld [vmem:[%s2555 + $0xf8] sm:$0xff]
      %s3238 = scalar_lea.vmem %s13, 16
      %v3239 = vld [vmem:[%s3238] sm:$0xff]
      %v3240 = vld [vmem:[%s3238 + $0x8] sm:$0xff]
      %v3242 = vsel %vm1428, %v3206, 0
      %v3245 = vsel %vm1428, %v3207, 0
      %v3248 = vsel %vm1428, %v3208, 0
      %v3251 = vsel %vm1428, %v3209, 0
      %v3254 = vsel %vm1428, %v3210, 0
      %v3257 = vsel %vm1428, %v3211, 0
      %v3260 = vsel %vm1428, %v3212, 0
      %v3263 = vsel %vm1428, %v3213, 0
      %v3266 = vsel %vm1428, %v3214, 0
      %v3269 = vsel %vm1428, %v3215, 0
      %v3272 = vsel %vm1428, %v3216, 0
      %v3275 = vsel %vm1428, %v3217, 0
      %v3278 = vsel %vm1428, %v3218, 0
      %v3281 = vsel %vm1428, %v3219, 0
      %v3284 = vsel %vm1428, %v3220, 0
      %v3287 = vsel %vm1428, %v3221, 0
      %v3290 = vsel %vm1428, %v3222, 0
      %v3293 = vsel %vm1428, %v3223, 0
      %v3296 = vsel %vm1428, %v3224, 0
      %v3299 = vsel %vm1428, %v3225, 0
      %v3302 = vsel %vm1428, %v3226, 0
      %v3305 = vsel %vm1428, %v3227, 0
      %v3308 = vsel %vm1428, %v3228, 0
      %v3311 = vsel %vm1428, %v3229, 0
      %v3314 = vsel %vm1428, %v3230, 0
      %v3317 = vsel %vm1428, %v3231, 0
      %v3320 = vsel %vm1428, %v3232, 0
      %v3323 = vsel %vm1428, %v3233, 0
      %v3326 = vsel %vm1428, %v3234, 0
      %v3329 = vsel %vm1428, %v3235, 0
      %v3332 = vsel %vm1428, %v3236, 0
      %v3335 = vsel %vm1428, %v3237, 0
      %3337 = vmatprep.subr.mxu0 0.0
      %3338 = vmatpush1.msra.mxu0 0.0
      %3339 = vmatprep.subr.mxu0 0.0
      %3340 = vmatpush1.msra.mxu0 0.0
      %3341 = vmatprep.subr.mxu0 0.0
      %3342 = vmatpush1.msra.mxu0 0.0
      %3343 = vmatprep.subr.mxu0 0.0
      %3344 = vmatpush1.msra.mxu0 0.0
      %3345 = vmatprep.subr.mxu0 0.0
      %3346 = vmatpush1.msra.mxu0 0.0
      %3347 = vmatprep.subr.mxu0 0.0
      %3348 = vmatpush1.msra.mxu0 0.0
      %3349 = vmatprep.subr.mxu0 0.0
      %3350 = vmatpush1.msra.mxu0 0.0
      %3351 = vmatprep.subr.mxu0 0.0
      %3352 = vmatpush1.msra.mxu0 0.0
      %3353 = vmatprep.subr.mxu0 0.0
      %3354 = vmatpush1.msra.mxu0 0.0
      %3355 = vmatprep.subr.mxu0 0.0
      %3356 = vmatpush1.msra.mxu0 0.0
      %3357 = vmatprep.subr.mxu0 0.0
      %3358 = vmatpush1.msra.mxu0 0.0
      %3359 = vmatprep.subr.mxu0 0.0
      %3360 = vmatpush1.msra.mxu0 0.0
      %3361 = vmatprep.subr.mxu0 0.0
      %3362 = vmatpush1.msra.mxu0 0.0
      %3363 = vmatprep.subr.mxu0 0.0
      %3364 = vmatpush1.msra.mxu0 0.0
      %3365 = vmatprep.subr.mxu0 0.0
      %3366 = vmatpush1.msra.mxu0 %v3240
      %3367 = vmatprep.subr.mxu0 0.0
      %3368 = vmatpush1.msra.mxu0 %v3239
      %3369 = vmatprep.subr.mxu0 0.0
      %3370 = vmatpush2.msra.mxu0 0.0
      %3371 = vmatprep.subr.mxu0 0.0
      %3372 = vmatpush2.msra.mxu0 0.0
      %3373 = vmatprep.subr.mxu0 0.0
      %3374 = vmatpush2.msra.mxu0 0.0
      %3375 = vmatprep.subr.mxu0 0.0
      %3376 = vmatpush2.msra.mxu0 0.0
      %3377 = vmatprep.subr.mxu0 0.0
      %3378 = vmatpush2.msra.mxu0 0.0
      %3379 = vmatprep.subr.mxu0 0.0
      %3380 = vmatpush2.msra.mxu0 0.0
      %3381 = vmatprep.subr.mxu0 0.0
      %3382 = vmatpush2.msra.mxu0 0.0
      %3383 = vmatprep.subr.mxu0 0.0
      %3384 = vmatpush2.msra.mxu0 0.0
      %3385 = vmatprep.subr.mxu0 0.0
      %3386 = vmatpush2.msra.mxu0 0.0
      %3387 = vmatprep.subr.mxu0 0.0
      %3388 = vmatpush2.msra.mxu0 0.0
      %3389 = vmatprep.subr.mxu0 0.0
      %3390 = vmatpush2.msra.mxu0 0.0
      %3391 = vmatprep.subr.mxu0 0.0
      %3392 = vmatpush2.msra.mxu0 0.0
      %3393 = vmatprep.subr.mxu0 0.0
      %3394 = vmatpush2.msra.mxu0 0.0
      %3395 = vmatprep.subr.mxu0 0.0
      %3396 = vmatpush2.msra.mxu0 0.0
      %3397 = vmatprep.subr.mxu0 0.0
      %3398 = vmatpush2.msra.mxu0 0.0
      %3399 = vmatprep.subr.mxu0 0.0
      %3400 = vmatpush2.msra.mxu0 0.0
      %3401 = vmatprep.mubr.f32.mxu0 0.0
      %3402 = vmatmul.mubr.f32.gmra.mxu0 %v3242
      %v3403 = vpop.f32.mrf.mxu0
      %v3404 = vadd.f32 0.0, %v3403
      %v3405 = vpop.f32.mrf.mxu0
      %3406 = vmatprep.mubr.f32.mxu0 0.0
      %3407 = vmatmul.mubr.f32.gmra.mxu0 %v3245
      %v3408 = vpop.f32.mrf.mxu0
      %v3409 = vadd.f32 0.0, %v3408
      %v3410 = vpop.f32.mrf.mxu0
      %3411 = vmatprep.mubr.f32.mxu0 0.0
      %3412 = vmatmul.mubr.f32.gmra.mxu0 %v3248
      %v3413 = vpop.f32.mrf.mxu0
      %v3414 = vadd.f32 0.0, %v3413
      %v3415 = vpop.f32.mrf.mxu0
      %3416 = vmatprep.mubr.f32.mxu0 0.0
      %3417 = vmatmul.mubr.f32.gmra.mxu0 %v3251
      %v3418 = vpop.f32.mrf.mxu0
      %v3419 = vadd.f32 0.0, %v3418
      %v3420 = vpop.f32.mrf.mxu0
      %3421 = vmatprep.mubr.f32.mxu0 0.0
      %3422 = vmatmul.mubr.f32.gmra.mxu0 %v3254
      %v3423 = vpop.f32.mrf.mxu0
      %v3424 = vadd.f32 0.0, %v3423
      %v3425 = vpop.f32.mrf.mxu0
      %3426 = vmatprep.mubr.f32.mxu0 0.0
      %3427 = vmatmul.mubr.f32.gmra.mxu0 %v3257
      %v3428 = vpop.f32.mrf.mxu0
      %v3429 = vadd.f32 0.0, %v3428
      %v3430 = vpop.f32.mrf.mxu0
      %3431 = vmatprep.mubr.f32.mxu0 0.0
      %3432 = vmatmul.mubr.f32.gmra.mxu0 %v3260
      %v3433 = vpop.f32.mrf.mxu0
      %v3434 = vadd.f32 0.0, %v3433
      %v3435 = vpop.f32.mrf.mxu0
      %3436 = vmatprep.mubr.f32.mxu0 0.0
      %3437 = vmatmul.mubr.f32.gmra.mxu0 %v3263
      %v3438 = vpop.f32.mrf.mxu0
      %v3439 = vadd.f32 0.0, %v3438
      %v3440 = vpop.f32.mrf.mxu0
      %3441 = vmatprep.mubr.f32.mxu0 0.0
      %3442 = vmatmul.mubr.f32.gmra.mxu0 %v3266
      %v3443 = vpop.f32.mrf.mxu0
      %v3444 = vadd.f32 0.0, %v3443
      %v3445 = vpop.f32.mrf.mxu0
      %3446 = vmatprep.mubr.f32.mxu0 0.0
      %3447 = vmatmul.mubr.f32.gmra.mxu0 %v3269
      %v3448 = vpop.f32.mrf.mxu0
      %v3449 = vadd.f32 0.0, %v3448
      %v3450 = vpop.f32.mrf.mxu0
      %3451 = vmatprep.mubr.f32.mxu0 0.0
      %3452 = vmatmul.mubr.f32.gmra.mxu0 %v3272
      %v3453 = vpop.f32.mrf.mxu0
      %v3454 = vadd.f32 0.0, %v3453
      %v3455 = vpop.f32.mrf.mxu0
      %3456 = vmatprep.mubr.f32.mxu0 0.0
      %3457 = vmatmul.mubr.f32.gmra.mxu0 %v3275
      %v3458 = vpop.f32.mrf.mxu0
      %v3459 = vadd.f32 0.0, %v3458
      %v3460 = vpop.f32.mrf.mxu0
      %3461 = vmatprep.mubr.f32.mxu0 0.0
      %3462 = vmatmul.mubr.f32.gmra.mxu0 %v3278
      %v3463 = vpop.f32.mrf.mxu0
      %v3464 = vadd.f32 0.0, %v3463
      %v3465 = vpop.f32.mrf.mxu0
      %3466 = vmatprep.mubr.f32.mxu0 0.0
      %3467 = vmatmul.mubr.f32.gmra.mxu0 %v3281
      %v3468 = vpop.f32.mrf.mxu0
      %v3469 = vadd.f32 0.0, %v3468
      %v3470 = vpop.f32.mrf.mxu0
      %3471 = vmatprep.mubr.f32.mxu0 0.0
      %3472 = vmatmul.mubr.f32.gmra.mxu0 %v3284
      %v3473 = vpop.f32.mrf.mxu0
      %v3474 = vadd.f32 0.0, %v3473
      %v3475 = vpop.f32.mrf.mxu0
      %3476 = vmatprep.mubr.f32.mxu0 0.0
      %3477 = vmatmul.mubr.f32.gmra.mxu0 %v3287
      %v3478 = vpop.f32.mrf.mxu0
      %v3479 = vadd.f32 0.0, %v3478
      %v3480 = vpop.f32.mrf.mxu0
      %3481 = vmatprep.mubr.f32.mxu0 0.0
      %3482 = vmatmul.mubr.f32.gmra.mxu0 %v3290
      %v3483 = vpop.f32.mrf.mxu0
      %v3484 = vadd.f32 0.0, %v3483
      %v3485 = vpop.f32.mrf.mxu0
      %3486 = vmatprep.mubr.f32.mxu0 0.0
      %3487 = vmatmul.mubr.f32.gmra.mxu0 %v3293
      %v3488 = vpop.f32.mrf.mxu0
      %v3489 = vadd.f32 0.0, %v3488
      %v3490 = vpop.f32.mrf.mxu0
      %3491 = vmatprep.mubr.f32.mxu0 0.0
      %3492 = vmatmul.mubr.f32.gmra.mxu0 %v3296
      %v3493 = vpop.f32.mrf.mxu0
      %v3494 = vadd.f32 0.0, %v3493
      %v3495 = vpop.f32.mrf.mxu0
      %3496 = vmatprep.mubr.f32.mxu0 0.0
      %3497 = vmatmul.mubr.f32.gmra.mxu0 %v3299
      %v3498 = vpop.f32.mrf.mxu0
      %v3499 = vadd.f32 0.0, %v3498
      %v3500 = vpop.f32.mrf.mxu0
      %3501 = vmatprep.mubr.f32.mxu0 0.0
      %3502 = vmatmul.mubr.f32.gmra.mxu0 %v3302
      %v3503 = vpop.f32.mrf.mxu0
      %v3504 = vadd.f32 0.0, %v3503
      %v3505 = vpop.f32.mrf.mxu0
      %3506 = vmatprep.mubr.f32.mxu0 0.0
      %3507 = vmatmul.mubr.f32.gmra.mxu0 %v3305
      %v3508 = vpop.f32.mrf.mxu0
      %v3509 = vadd.f32 0.0, %v3508
      %v3510 = vpop.f32.mrf.mxu0
      %3511 = vmatprep.mubr.f32.mxu0 0.0
      %3512 = vmatmul.mubr.f32.gmra.mxu0 %v3308
      %v3513 = vpop.f32.mrf.mxu0
      %v3514 = vadd.f32 0.0, %v3513
      %v3515 = vpop.f32.mrf.mxu0
      %3516 = vmatprep.mubr.f32.mxu0 0.0
      %3517 = vmatmul.mubr.f32.gmra.mxu0 %v3311
      %v3518 = vpop.f32.mrf.mxu0
      %v3519 = vadd.f32 0.0, %v3518
      %v3520 = vpop.f32.mrf.mxu0
      %3521 = vmatprep.mubr.f32.mxu0 0.0
      %3522 = vmatmul.mubr.f32.gmra.mxu0 %v3314
      %v3523 = vpop.f32.mrf.mxu0
      %v3524 = vadd.f32 0.0, %v3523
      %v3525 = vpop.f32.mrf.mxu0
      %3526 = vmatprep.mubr.f32.mxu0 0.0
      %3527 = vmatmul.mubr.f32.gmra.mxu0 %v3317
      %v3528 = vpop.f32.mrf.mxu0
      %v3529 = vadd.f32 0.0, %v3528
      %v3530 = vpop.f32.mrf.mxu0
      %3531 = vmatprep.mubr.f32.mxu0 0.0
      %3532 = vmatmul.mubr.f32.gmra.mxu0 %v3320
      %v3533 = vpop.f32.mrf.mxu0
      %v3534 = vadd.f32 0.0, %v3533
      %v3535 = vpop.f32.mrf.mxu0
      %3536 = vmatprep.mubr.f32.mxu0 0.0
      %3537 = vmatmul.mubr.f32.gmra.mxu0 %v3323
      %v3538 = vpop.f32.mrf.mxu0
      %v3539 = vadd.f32 0.0, %v3538
      %v3540 = vpop.f32.mrf.mxu0
      %3541 = vmatprep.mubr.f32.mxu0 0.0
      %3542 = vmatmul.mubr.f32.gmra.mxu0 %v3326
      %v3543 = vpop.f32.mrf.mxu0
      %v3544 = vadd.f32 0.0, %v3543
      %v3545 = vpop.f32.mrf.mxu0
      %3546 = vmatprep.mubr.f32.mxu0 0.0
      %3547 = vmatmul.mubr.f32.gmra.mxu0 %v3329
      %v3548 = vpop.f32.mrf.mxu0
      %v3549 = vadd.f32 0.0, %v3548
      %v3550 = vpop.f32.mrf.mxu0
      %3551 = vmatprep.mubr.f32.mxu0 0.0
      %3552 = vmatmul.mubr.f32.gmra.mxu0 %v3332
      %v3553 = vpop.f32.mrf.mxu0
      %v3554 = vadd.f32 0.0, %v3553
      %v3555 = vpop.f32.mrf.mxu0
      %3556 = vmatprep.mubr.f32.mxu0 0.0
      %3557 = vmatmul.mubr.f32.gmra.mxu0 %v3335
      %v3558 = vpop.f32.mrf.mxu0
      %v3559 = vadd.f32 0.0, %v3558
      %v3560 = vpop.f32.mrf.mxu0
      %3561 = vdwg.mxu0
      %v3562 = vrot.slane %v3404, 7
      %v3563 = vrot.slane %v3409, 7
      %v3564 = vrot.slane %v3419, 7
      %v3565 = vrot.slane %v3424, 7
      %v3566 = vrot.slane %v3429, 7
      %v3567 = vrot.slane %v3439, 7
      %v3568 = vrot.slane %v3444, 7
      %v3569 = vrot.slane %v3449, 7
      %v3570 = vrot.slane %v3459, 7
      %v3571 = vrot.slane %v3464, 7
      %v3572 = vrot.slane %v3469, 7
      %v3573 = vrot.slane %v3479, 7
      %v3574 = vrot.slane %v3484, 7
      %v3575 = vrot.slane %v3489, 7
      %v3576 = vrot.slane %v3499, 7
      %v3577 = vrot.slane %v3504, 7
      %v3578 = vrot.slane %v3509, 7
      %v3579 = vrot.slane %v3519, 7
      %v3580 = vrot.slane %v3524, 7
      %v3581 = vrot.slane %v3529, 7
      %v3582 = vrot.slane %v3539, 7
      %v3583 = vrot.slane %v3544, 7
      %v3584 = vrot.slane %v3549, 7
      %v3585 = vrot.slane %v3559, 7
      %v3586 = vsel %vm2956, %v3583, %v3584
      %v3587 = vsel %vm2956, %v3582, %v3583
      %v3588 = vsel %vm2956, %v3580, %v3581
      %v3589 = vsel %vm2956, %v3579, %v3580
      %v3590 = vsel %vm2956, %v3577, %v3578
      %v3591 = vsel %vm2956, %v3576, %v3577
      %v3592 = vsel %vm2956, %v3574, %v3575
      %v3593 = vsel %vm2956, %v3573, %v3574
      %v3594 = vsel %vm2956, %v3571, %v3572
      %v3595 = vsel %vm2956, %v3570, %v3571
      %v3596 = vsel %vm2956, %v3568, %v3569
      %v3597 = vsel %vm2956, %v3567, %v3568
      %v3598 = vsel %vm2956, %v3565, %v3566
      %v3599 = vsel %vm2956, %v3564, %v3565
      %v3600 = vsel %vm2956, %v3562, %v3563
      %v3601 = vsel %vm2956, %v3585, %v3562
      %v3602 = vadd.f32 %v3190, %v3601
      %v3603 = vadd.f32 %v3191, %v3600
      %v3604 = vadd.f32 %v3192, %v3599
      %v3605 = vadd.f32 %v3193, %v3598
      %v3606 = vadd.f32 %v3194, %v3597
      %v3607 = vadd.f32 %v3195, %v3596
      %v3608 = vadd.f32 %v3196, %v3595
      %v3609 = vadd.f32 %v3197, %v3594
      %v3610 = vadd.f32 %v3198, %v3593
      %v3611 = vadd.f32 %v3199, %v3592
      %v3612 = vadd.f32 %v3200, %v3591
      %v3613 = vadd.f32 %v3201, %v3590
      %v3614 = vadd.f32 %v3202, %v3589
      %v3615 = vadd.f32 %v3203, %v3588
      %v3616 = vadd.f32 %v3204, %v3587
      %v3617 = vadd.f32 %v3205, %v3586
      %3634 = vrot.lane.b32.xlu0 %v3404, 120
      %v3635 = vpop.permute.xlu0 %3634
      %3636 = vrot.lane.b32.xlu0 %v3409, 120
      %v3637 = vpop.permute.xlu0 %3636
      %3638 = vrot.lane.b32.xlu0 %v3424, 120
      %v3639 = vpop.permute.xlu0 %3638
      %3640 = vrot.lane.b32.xlu0 %v3429, 120
      %v3641 = vpop.permute.xlu0 %3640
      %3642 = vrot.lane.b32.xlu0 %v3444, 120
      %v3643 = vpop.permute.xlu0 %3642
      %3644 = vrot.lane.b32.xlu0 %v3449, 120
      %v3645 = vpop.permute.xlu0 %3644
      %3646 = vrot.lane.b32.xlu0 %v3464, 120
      %v3647 = vpop.permute.xlu0 %3646
      %3648 = vrot.lane.b32.xlu0 %v3469, 120
      %v3649 = vpop.permute.xlu0 %3648
      %3650 = vrot.lane.b32.xlu0 %v3484, 120
      %v3651 = vpop.permute.xlu0 %3650
      %3652 = vrot.lane.b32.xlu0 %v3489, 120
      %v3653 = vpop.permute.xlu0 %3652
      %3654 = vrot.lane.b32.xlu0 %v3504, 120
      %v3655 = vpop.permute.xlu0 %3654
      %3656 = vrot.lane.b32.xlu0 %v3509, 120
      %v3657 = vpop.permute.xlu0 %3656
      %3658 = vrot.lane.b32.xlu0 %v3524, 120
      %v3659 = vpop.permute.xlu0 %3658
      %3660 = vrot.lane.b32.xlu0 %v3529, 120
      %v3661 = vpop.permute.xlu0 %3660
      %3662 = vrot.lane.b32.xlu0 %v3544, 120
      %v3663 = vpop.permute.xlu0 %3662
      %3664 = vrot.lane.b32.xlu0 %v3549, 120
      %v3665 = vpop.permute.xlu0 %3664
      %v3682 = vadd.f32 %v3602, %v3635
      %v3683 = vadd.f32 %v3603, %v3637
      %v3684 = vadd.f32 %v3604, %v3639
      %v3685 = vadd.f32 %v3605, %v3641
      %v3686 = vadd.f32 %v3606, %v3643
      %v3687 = vadd.f32 %v3607, %v3645
      %v3688 = vadd.f32 %v3608, %v3647
      %v3689 = vadd.f32 %v3609, %v3649
      %v3690 = vadd.f32 %v3610, %v3651
      %v3691 = vadd.f32 %v3611, %v3653
      %v3692 = vadd.f32 %v3612, %v3655
      %v3693 = vadd.f32 %v3613, %v3657
      %v3694 = vadd.f32 %v3614, %v3659
      %v3695 = vadd.f32 %v3615, %v3661
      %v3696 = vadd.f32 %v3616, %v3663
      %v3697 = vadd.f32 %v3617, %v3665
      %3706 = vrot.lane.b32.xlu0 %v3404, 112
      %v3707 = vpop.permute.xlu0 %3706
      %3708 = vrot.lane.b32.xlu0 %v3409, 112
      %v3709 = vpop.permute.xlu0 %3708
      %3710 = vrot.lane.b32.xlu0 %v3414, 112
      %v3711 = vpop.permute.xlu0 %3710
      %3712 = vrot.lane.b32.xlu0 %v3424, 112
      %v3713 = vpop.permute.xlu0 %3712
      %3714 = vrot.lane.b32.xlu0 %v3429, 112
      %v3715 = vpop.permute.xlu0 %3714
      %3716 = vrot.lane.b32.xlu0 %v3434, 112
      %v3717 = vpop.permute.xlu0 %3716
      %3718 = vrot.lane.b32.xlu0 %v3444, 112
      %v3719 = vpop.permute.xlu0 %3718
      %3720 = vrot.lane.b32.xlu0 %v3449, 112
      %v3721 = vpop.permute.xlu0 %3720
      %3722 = vrot.lane.b32.xlu0 %v3454, 112
      %v3723 = vpop.permute.xlu0 %3722
      %3724 = vrot.lane.b32.xlu0 %v3464, 112
      %v3725 = vpop.permute.xlu0 %3724
      %3726 = vrot.lane.b32.xlu0 %v3469, 112
      %v3727 = vpop.permute.xlu0 %3726
      %3728 = vrot.lane.b32.xlu0 %v3474, 112
      %v3729 = vpop.permute.xlu0 %3728
      %3730 = vrot.lane.b32.xlu0 %v3484, 112
      %v3731 = vpop.permute.xlu0 %3730
      %3732 = vrot.lane.b32.xlu0 %v3489, 112
      %v3733 = vpop.permute.xlu0 %3732
      %3734 = vrot.lane.b32.xlu0 %v3494, 112
      %v3735 = vpop.permute.xlu0 %3734
      %3736 = vrot.lane.b32.xlu0 %v3504, 112
      %v3737 = vpop.permute.xlu0 %3736
      %3738 = vrot.lane.b32.xlu0 %v3509, 112
      %v3739 = vpop.permute.xlu0 %3738
      %3740 = vrot.lane.b32.xlu0 %v3514, 112
      %v3741 = vpop.permute.xlu0 %3740
      %3742 = vrot.lane.b32.xlu0 %v3524, 112
      %v3743 = vpop.permute.xlu0 %3742
      %3744 = vrot.lane.b32.xlu0 %v3529, 112
      %v3745 = vpop.permute.xlu0 %3744
      %3746 = vrot.lane.b32.xlu0 %v3534, 112
      %v3747 = vpop.permute.xlu0 %3746
      %3748 = vrot.lane.b32.xlu0 %v3544, 112
      %v3749 = vpop.permute.xlu0 %3748
      %3750 = vrot.lane.b32.xlu0 %v3549, 112
      %v3751 = vpop.permute.xlu0 %3750
      %3752 = vrot.lane.b32.xlu0 %v3554, 112
      %v3753 = vpop.permute.xlu0 %3752
      %v3778 = vrot.slane %v3707, 1
      %v3779 = vrot.slane %v3709, 1
      %v3780 = vrot.slane %v3711, 1
      %v3781 = vrot.slane %v3713, 1
      %v3782 = vrot.slane %v3715, 1
      %v3783 = vrot.slane %v3717, 1
      %v3784 = vrot.slane %v3719, 1
      %v3785 = vrot.slane %v3721, 1
      %v3786 = vrot.slane %v3723, 1
      %v3787 = vrot.slane %v3725, 1
      %v3788 = vrot.slane %v3727, 1
      %v3789 = vrot.slane %v3729, 1
      %v3790 = vrot.slane %v3731, 1
      %v3791 = vrot.slane %v3733, 1
      %v3792 = vrot.slane %v3735, 1
      %v3793 = vrot.slane %v3737, 1
      %v3794 = vrot.slane %v3739, 1
      %v3795 = vrot.slane %v3741, 1
      %v3796 = vrot.slane %v3743, 1
      %v3797 = vrot.slane %v3745, 1
      %v3798 = vrot.slane %v3747, 1
      %v3799 = vrot.slane %v3749, 1
      %v3800 = vrot.slane %v3751, 1
      %v3801 = vrot.slane %v3753, 1
      %v3802 = vsel %vm3173, %v3800, %v3801
      %v3803 = vsel %vm3173, %v3799, %v3800
      %v3804 = vsel %vm3173, %v3797, %v3798
      %v3805 = vsel %vm3173, %v3796, %v3797
      %v3806 = vsel %vm3173, %v3794, %v3795
      %v3807 = vsel %vm3173, %v3793, %v3794
      %v3808 = vsel %vm3173, %v3791, %v3792
      %v3809 = vsel %vm3173, %v3790, %v3791
      %v3810 = vsel %vm3173, %v3788, %v3789
      %v3811 = vsel %vm3173, %v3787, %v3788
      %v3812 = vsel %vm3173, %v3785, %v3786
      %v3813 = vsel %vm3173, %v3784, %v3785
      %v3814 = vsel %vm3173, %v3782, %v3783
      %v3815 = vsel %vm3173, %v3781, %v3782
      %v3816 = vsel %vm3173, %v3779, %v3780
      %v3817 = vsel %vm3173, %v3778, %v3779
      %v3818 = vadd.f32 %v3682, %v3817
      %v3819 = vadd.f32 %v3683, %v3816
      %v3820 = vadd.f32 %v3684, %v3815
      %v3821 = vadd.f32 %v3685, %v3814
      %v3822 = vadd.f32 %v3686, %v3813
      %v3823 = vadd.f32 %v3687, %v3812
      %v3824 = vadd.f32 %v3688, %v3811
      %v3825 = vadd.f32 %v3689, %v3810
      %v3826 = vadd.f32 %v3690, %v3809
      %v3827 = vadd.f32 %v3691, %v3808
      %v3828 = vadd.f32 %v3692, %v3807
      %v3829 = vadd.f32 %v3693, %v3806
      %v3830 = vadd.f32 %v3694, %v3805
      %v3831 = vadd.f32 %v3695, %v3804
      %v3832 = vadd.f32 %v3696, %v3803
      %v3833 = vadd.f32 %v3697, %v3802
      %s3834 = scalar_lea.vmem [#allocation3], 64
      %v3835 = vld [vmem:[%s3834] sm:$0xff]
      %v3836 = vld [vmem:[%s3834 + $0x8] sm:$0xff]
      %v3837 = vld [vmem:[%s3834 + $0x10] sm:$0xff]
      %v3838 = vld [vmem:[%s3834 + $0x18] sm:$0xff]
      %v3839 = vld [vmem:[%s3834 + $0x20] sm:$0xff]
      %v3840 = vld [vmem:[%s3834 + $0x28] sm:$0xff]
      %v3841 = vld [vmem:[%s3834 + $0x30] sm:$0xff]
      %v3842 = vld [vmem:[%s3834 + $0x38] sm:$0xff]
      %v3843 = vld [vmem:[%s3834 + $0x40] sm:$0xff]
      %v3844 = vld [vmem:[%s3834 + $0x48] sm:$0xff]
      %v3845 = vld [vmem:[%s3834 + $0x50] sm:$0xff]
      %v3846 = vld [vmem:[%s3834 + $0x58] sm:$0xff]
      %v3847 = vld [vmem:[%s3834 + $0x60] sm:$0xff]
      %v3848 = vld [vmem:[%s3834 + $0x68] sm:$0xff]
      %v3849 = vld [vmem:[%s3834 + $0x70] sm:$0xff]
      %v3850 = vld [vmem:[%s3834 + $0x78] sm:$0xff]
      %v3851 = vld [vmem:[%s3834 + $0x80] sm:$0xff]
      %v3852 = vld [vmem:[%s3834 + $0x88] sm:$0xff]
      %v3853 = vld [vmem:[%s3834 + $0x90] sm:$0xff]
      %v3854 = vld [vmem:[%s3834 + $0x98] sm:$0xff]
      %v3855 = vld [vmem:[%s3834 + $0xa0] sm:$0xff]
      %v3856 = vld [vmem:[%s3834 + $0xa8] sm:$0xff]
      %v3857 = vld [vmem:[%s3834 + $0xb0] sm:$0xff]
      %v3858 = vld [vmem:[%s3834 + $0xb8] sm:$0xff]
      %v3859 = vld [vmem:[%s3834 + $0xc0] sm:$0xff]
      %v3860 = vld [vmem:[%s3834 + $0xc8] sm:$0xff]
      %v3861 = vld [vmem:[%s3834 + $0xd0] sm:$0xff]
      %v3862 = vld [vmem:[%s3834 + $0xd8] sm:$0xff]
      %v3863 = vld [vmem:[%s3834 + $0xe0] sm:$0xff]
      %v3864 = vld [vmem:[%s3834 + $0xe8] sm:$0xff]
      %v3865 = vld [vmem:[%s3834 + $0xf0] sm:$0xff]
      %v3866 = vld [vmem:[%s3834 + $0xf8] sm:$0xff]
      %s3867 = scalar_lea.vmem %s13, 32
      %v3868 = vld [vmem:[%s3867] sm:$0xff]
      %v3869 = vld [vmem:[%s3867 + $0x8] sm:$0xff]
      %v3871 = vsel %vm1428, %v3835, 0
      %v3874 = vsel %vm1428, %v3836, 0
      %v3877 = vsel %vm1428, %v3837, 0
      %v3880 = vsel %vm1428, %v3838, 0
      %v3883 = vsel %vm1428, %v3839, 0
      %v3886 = vsel %vm1428, %v3840, 0
      %v3889 = vsel %vm1428, %v3841, 0
      %v3892 = vsel %vm1428, %v3842, 0
      %v3895 = vsel %vm1428, %v3843, 0
      %v3898 = vsel %vm1428, %v3844, 0
      %v3901 = vsel %vm1428, %v3845, 0
      %v3904 = vsel %vm1428, %v3846, 0
      %v3907 = vsel %vm1428, %v3847, 0
      %v3910 = vsel %vm1428, %v3848, 0
      %v3913 = vsel %vm1428, %v3849, 0
      %v3916 = vsel %vm1428, %v3850, 0
      %v3919 = vsel %vm1428, %v3851, 0
      %v3922 = vsel %vm1428, %v3852, 0
      %v3925 = vsel %vm1428, %v3853, 0
      %v3928 = vsel %vm1428, %v3854, 0
      %v3931 = vsel %vm1428, %v3855, 0
      %v3934 = vsel %vm1428, %v3856, 0
      %v3937 = vsel %vm1428, %v3857, 0
      %v3940 = vsel %vm1428, %v3858, 0
      %v3943 = vsel %vm1428, %v3859, 0
      %v3946 = vsel %vm1428, %v3860, 0
      %v3949 = vsel %vm1428, %v3861, 0
      %v3952 = vsel %vm1428, %v3862, 0
      %v3955 = vsel %vm1428, %v3863, 0
      %v3958 = vsel %vm1428, %v3864, 0
      %v3961 = vsel %vm1428, %v3865, 0
      %v3964 = vsel %vm1428, %v3866, 0
      %3966 = vmatprep.subr.mxu0 0.0
      %3967 = vmatpush1.msra.mxu0 0.0
      %3968 = vmatprep.subr.mxu0 0.0
      %3969 = vmatpush1.msra.mxu0 0.0
      %3970 = vmatprep.subr.mxu0 0.0
      %3971 = vmatpush1.msra.mxu0 0.0
      %3972 = vmatprep.subr.mxu0 0.0
      %3973 = vmatpush1.msra.mxu0 0.0
      %3974 = vmatprep.subr.mxu0 0.0
      %3975 = vmatpush1.msra.mxu0 0.0
      %3976 = vmatprep.subr.mxu0 0.0
      %3977 = vmatpush1.msra.mxu0 0.0
      %3978 = vmatprep.subr.mxu0 0.0
      %3979 = vmatpush1.msra.mxu0 0.0
      %3980 = vmatprep.subr.mxu0 0.0
      %3981 = vmatpush1.msra.mxu0 0.0
      %3982 = vmatprep.subr.mxu0 0.0
      %3983 = vmatpush1.msra.mxu0 0.0
      %3984 = vmatprep.subr.mxu0 0.0
      %3985 = vmatpush1.msra.mxu0 0.0
      %3986 = vmatprep.subr.mxu0 0.0
      %3987 = vmatpush1.msra.mxu0 0.0
      %3988 = vmatprep.subr.mxu0 0.0
      %3989 = vmatpush1.msra.mxu0 0.0
      %3990 = vmatprep.subr.mxu0 0.0
      %3991 = vmatpush1.msra.mxu0 0.0
      %3992 = vmatprep.subr.mxu0 0.0
      %3993 = vmatpush1.msra.mxu0 0.0
      %3994 = vmatprep.subr.mxu0 0.0
      %3995 = vmatpush1.msra.mxu0 %v3869
      %3996 = vmatprep.subr.mxu0 0.0
      %3997 = vmatpush1.msra.mxu0 %v3868
      %3998 = vmatprep.subr.mxu0 0.0
      %3999 = vmatpush2.msra.mxu0 0.0
      %4000 = vmatprep.subr.mxu0 0.0
      %4001 = vmatpush2.msra.mxu0 0.0
      %4002 = vmatprep.subr.mxu0 0.0
      %4003 = vmatpush2.msra.mxu0 0.0
      %4004 = vmatprep.subr.mxu0 0.0
      %4005 = vmatpush2.msra.mxu0 0.0
      %4006 = vmatprep.subr.mxu0 0.0
      %4007 = vmatpush2.msra.mxu0 0.0
      %4008 = vmatprep.subr.mxu0 0.0
      %4009 = vmatpush2.msra.mxu0 0.0
      %4010 = vmatprep.subr.mxu0 0.0
      %4011 = vmatpush2.msra.mxu0 0.0
      %4012 = vmatprep.subr.mxu0 0.0
      %4013 = vmatpush2.msra.mxu0 0.0
      %4014 = vmatprep.subr.mxu0 0.0
      %4015 = vmatpush2.msra.mxu0 0.0
      %4016 = vmatprep.subr.mxu0 0.0
      %4017 = vmatpush2.msra.mxu0 0.0
      %4018 = vmatprep.subr.mxu0 0.0
      %4019 = vmatpush2.msra.mxu0 0.0
      %4020 = vmatprep.subr.mxu0 0.0
      %4021 = vmatpush2.msra.mxu0 0.0
      %4022 = vmatprep.subr.mxu0 0.0
      %4023 = vmatpush2.msra.mxu0 0.0
      %4024 = vmatprep.subr.mxu0 0.0
      %4025 = vmatpush2.msra.mxu0 0.0
      %4026 = vmatprep.subr.mxu0 0.0
      %4027 = vmatpush2.msra.mxu0 0.0
      %4028 = vmatprep.subr.mxu0 0.0
      %4029 = vmatpush2.msra.mxu0 0.0
      %4030 = vmatprep.mubr.f32.mxu0 0.0
      %4031 = vmatmul.mubr.f32.gmra.mxu0 %v3871
      %v4032 = vpop.f32.mrf.mxu0
      %v4033 = vadd.f32 0.0, %v4032
      %v4034 = vpop.f32.mrf.mxu0
      %4035 = vmatprep.mubr.f32.mxu0 0.0
      %4036 = vmatmul.mubr.f32.gmra.mxu0 %v3874
      %v4037 = vpop.f32.mrf.mxu0
      %v4038 = vadd.f32 0.0, %v4037
      %v4039 = vpop.f32.mrf.mxu0
      %4040 = vmatprep.mubr.f32.mxu0 0.0
      %4041 = vmatmul.mubr.f32.gmra.mxu0 %v3877
      %v4042 = vpop.f32.mrf.mxu0
      %v4043 = vadd.f32 0.0, %v4042
      %v4044 = vpop.f32.mrf.mxu0
      %4045 = vmatprep.mubr.f32.mxu0 0.0
      %4046 = vmatmul.mubr.f32.gmra.mxu0 %v3880
      %v4047 = vpop.f32.mrf.mxu0
      %v4048 = vadd.f32 0.0, %v4047
      %v4049 = vpop.f32.mrf.mxu0
      %4050 = vmatprep.mubr.f32.mxu0 0.0
      %4051 = vmatmul.mubr.f32.gmra.mxu0 %v3883
      %v4052 = vpop.f32.mrf.mxu0
      %v4053 = vadd.f32 0.0, %v4052
      %v4054 = vpop.f32.mrf.mxu0
      %4055 = vmatprep.mubr.f32.mxu0 0.0
      %4056 = vmatmul.mubr.f32.gmra.mxu0 %v3886
      %v4057 = vpop.f32.mrf.mxu0
      %v4058 = vadd.f32 0.0, %v4057
      %v4059 = vpop.f32.mrf.mxu0
      %4060 = vmatprep.mubr.f32.mxu0 0.0
      %4061 = vmatmul.mubr.f32.gmra.mxu0 %v3889
      %v4062 = vpop.f32.mrf.mxu0
      %v4063 = vadd.f32 0.0, %v4062
      %v4064 = vpop.f32.mrf.mxu0
      %4065 = vmatprep.mubr.f32.mxu0 0.0
      %4066 = vmatmul.mubr.f32.gmra.mxu0 %v3892
      %v4067 = vpop.f32.mrf.mxu0
      %v4068 = vadd.f32 0.0, %v4067
      %v4069 = vpop.f32.mrf.mxu0
      %4070 = vmatprep.mubr.f32.mxu0 0.0
      %4071 = vmatmul.mubr.f32.gmra.mxu0 %v3895
      %v4072 = vpop.f32.mrf.mxu0
      %v4073 = vadd.f32 0.0, %v4072
      %v4074 = vpop.f32.mrf.mxu0
      %4075 = vmatprep.mubr.f32.mxu0 0.0
      %4076 = vmatmul.mubr.f32.gmra.mxu0 %v3898
      %v4077 = vpop.f32.mrf.mxu0
      %v4078 = vadd.f32 0.0, %v4077
      %v4079 = vpop.f32.mrf.mxu0
      %4080 = vmatprep.mubr.f32.mxu0 0.0
      %4081 = vmatmul.mubr.f32.gmra.mxu0 %v3901
      %v4082 = vpop.f32.mrf.mxu0
      %v4083 = vadd.f32 0.0, %v4082
      %v4084 = vpop.f32.mrf.mxu0
      %4085 = vmatprep.mubr.f32.mxu0 0.0
      %4086 = vmatmul.mubr.f32.gmra.mxu0 %v3904
      %v4087 = vpop.f32.mrf.mxu0
      %v4088 = vadd.f32 0.0, %v4087
      %v4089 = vpop.f32.mrf.mxu0
      %4090 = vmatprep.mubr.f32.mxu0 0.0
      %4091 = vmatmul.mubr.f32.gmra.mxu0 %v3907
      %v4092 = vpop.f32.mrf.mxu0
      %v4093 = vadd.f32 0.0, %v4092
      %v4094 = vpop.f32.mrf.mxu0
      %4095 = vmatprep.mubr.f32.mxu0 0.0
      %4096 = vmatmul.mubr.f32.gmra.mxu0 %v3910
      %v4097 = vpop.f32.mrf.mxu0
      %v4098 = vadd.f32 0.0, %v4097
      %v4099 = vpop.f32.mrf.mxu0
      %4100 = vmatprep.mubr.f32.mxu0 0.0
      %4101 = vmatmul.mubr.f32.gmra.mxu0 %v3913
      %v4102 = vpop.f32.mrf.mxu0
      %v4103 = vadd.f32 0.0, %v4102
      %v4104 = vpop.f32.mrf.mxu0
      %4105 = vmatprep.mubr.f32.mxu0 0.0
      %4106 = vmatmul.mubr.f32.gmra.mxu0 %v3916
      %v4107 = vpop.f32.mrf.mxu0
      %v4108 = vadd.f32 0.0, %v4107
      %v4109 = vpop.f32.mrf.mxu0
      %4110 = vmatprep.mubr.f32.mxu0 0.0
      %4111 = vmatmul.mubr.f32.gmra.mxu0 %v3919
      %v4112 = vpop.f32.mrf.mxu0
      %v4113 = vadd.f32 0.0, %v4112
      %v4114 = vpop.f32.mrf.mxu0
      %4115 = vmatprep.mubr.f32.mxu0 0.0
      %4116 = vmatmul.mubr.f32.gmra.mxu0 %v3922
      %v4117 = vpop.f32.mrf.mxu0
      %v4118 = vadd.f32 0.0, %v4117
      %v4119 = vpop.f32.mrf.mxu0
      %4120 = vmatprep.mubr.f32.mxu0 0.0
      %4121 = vmatmul.mubr.f32.gmra.mxu0 %v3925
      %v4122 = vpop.f32.mrf.mxu0
      %v4123 = vadd.f32 0.0, %v4122
      %v4124 = vpop.f32.mrf.mxu0
      %4125 = vmatprep.mubr.f32.mxu0 0.0
      %4126 = vmatmul.mubr.f32.gmra.mxu0 %v3928
      %v4127 = vpop.f32.mrf.mxu0
      %v4128 = vadd.f32 0.0, %v4127
      %v4129 = vpop.f32.mrf.mxu0
      %4130 = vmatprep.mubr.f32.mxu0 0.0
      %4131 = vmatmul.mubr.f32.gmra.mxu0 %v3931
      %v4132 = vpop.f32.mrf.mxu0
      %v4133 = vadd.f32 0.0, %v4132
      %v4134 = vpop.f32.mrf.mxu0
      %4135 = vmatprep.mubr.f32.mxu0 0.0
      %4136 = vmatmul.mubr.f32.gmra.mxu0 %v3934
      %v4137 = vpop.f32.mrf.mxu0
      %v4138 = vadd.f32 0.0, %v4137
      %v4139 = vpop.f32.mrf.mxu0
      %4140 = vmatprep.mubr.f32.mxu0 0.0
      %4141 = vmatmul.mubr.f32.gmra.mxu0 %v3937
      %v4142 = vpop.f32.mrf.mxu0
      %v4143 = vadd.f32 0.0, %v4142
      %v4144 = vpop.f32.mrf.mxu0
      %4145 = vmatprep.mubr.f32.mxu0 0.0
      %4146 = vmatmul.mubr.f32.gmra.mxu0 %v3940
      %v4147 = vpop.f32.mrf.mxu0
      %v4148 = vadd.f32 0.0, %v4147
      %v4149 = vpop.f32.mrf.mxu0
      %4150 = vmatprep.mubr.f32.mxu0 0.0
      %4151 = vmatmul.mubr.f32.gmra.mxu0 %v3943
      %v4152 = vpop.f32.mrf.mxu0
      %v4153 = vadd.f32 0.0, %v4152
      %v4154 = vpop.f32.mrf.mxu0
      %4155 = vmatprep.mubr.f32.mxu0 0.0
      %4156 = vmatmul.mubr.f32.gmra.mxu0 %v3946
      %v4157 = vpop.f32.mrf.mxu0
      %v4158 = vadd.f32 0.0, %v4157
      %v4159 = vpop.f32.mrf.mxu0
      %4160 = vmatprep.mubr.f32.mxu0 0.0
      %4161 = vmatmul.mubr.f32.gmra.mxu0 %v3949
      %v4162 = vpop.f32.mrf.mxu0
      %v4163 = vadd.f32 0.0, %v4162
      %v4164 = vpop.f32.mrf.mxu0
      %4165 = vmatprep.mubr.f32.mxu0 0.0
      %4166 = vmatmul.mubr.f32.gmra.mxu0 %v3952
      %v4167 = vpop.f32.mrf.mxu0
      %v4168 = vadd.f32 0.0, %v4167
      %v4169 = vpop.f32.mrf.mxu0
      %4170 = vmatprep.mubr.f32.mxu0 0.0
      %4171 = vmatmul.mubr.f32.gmra.mxu0 %v3955
      %v4172 = vpop.f32.mrf.mxu0
      %v4173 = vadd.f32 0.0, %v4172
      %v4174 = vpop.f32.mrf.mxu0
      %4175 = vmatprep.mubr.f32.mxu0 0.0
      %4176 = vmatmul.mubr.f32.gmra.mxu0 %v3958
      %v4177 = vpop.f32.mrf.mxu0
      %v4178 = vadd.f32 0.0, %v4177
      %v4179 = vpop.f32.mrf.mxu0
      %4180 = vmatprep.mubr.f32.mxu0 0.0
      %4181 = vmatmul.mubr.f32.gmra.mxu0 %v3961
      %v4182 = vpop.f32.mrf.mxu0
      %v4183 = vadd.f32 0.0, %v4182
      %v4184 = vpop.f32.mrf.mxu0
      %4185 = vmatprep.mubr.f32.mxu0 0.0
      %4186 = vmatmul.mubr.f32.gmra.mxu0 %v3964
      %v4187 = vpop.f32.mrf.mxu0
      %v4188 = vadd.f32 0.0, %v4187
      %v4189 = vpop.f32.mrf.mxu0
      %4190 = vdwg.mxu0
      %v4191 = vrot.slane %v4033, 7
      %v4192 = vrot.slane %v4038, 7
      %v4193 = vrot.slane %v4048, 7
      %v4194 = vrot.slane %v4053, 7
      %v4195 = vrot.slane %v4058, 7
      %v4196 = vrot.slane %v4068, 7
      %v4197 = vrot.slane %v4073, 7
      %v4198 = vrot.slane %v4078, 7
      %v4199 = vrot.slane %v4088, 7
      %v4200 = vrot.slane %v4093, 7
      %v4201 = vrot.slane %v4098, 7
      %v4202 = vrot.slane %v4108, 7
      %v4203 = vrot.slane %v4113, 7
      %v4204 = vrot.slane %v4118, 7
      %v4205 = vrot.slane %v4128, 7
      %v4206 = vrot.slane %v4133, 7
      %v4207 = vrot.slane %v4138, 7
      %v4208 = vrot.slane %v4148, 7
      %v4209 = vrot.slane %v4153, 7
      %v4210 = vrot.slane %v4158, 7
      %v4211 = vrot.slane %v4168, 7
      %v4212 = vrot.slane %v4173, 7
      %v4213 = vrot.slane %v4178, 7
      %v4214 = vrot.slane %v4188, 7
      %v4215 = vsel %vm2956, %v4212, %v4213
      %v4216 = vsel %vm2956, %v4211, %v4212
      %v4217 = vsel %vm2956, %v4209, %v4210
      %v4218 = vsel %vm2956, %v4208, %v4209
      %v4219 = vsel %vm2956, %v4206, %v4207
      %v4220 = vsel %vm2956, %v4205, %v4206
      %v4221 = vsel %vm2956, %v4203, %v4204
      %v4222 = vsel %vm2956, %v4202, %v4203
      %v4223 = vsel %vm2956, %v4200, %v4201
      %v4224 = vsel %vm2956, %v4199, %v4200
      %v4225 = vsel %vm2956, %v4197, %v4198
      %v4226 = vsel %vm2956, %v4196, %v4197
      %v4227 = vsel %vm2956, %v4194, %v4195
      %v4228 = vsel %vm2956, %v4193, %v4194
      %v4229 = vsel %vm2956, %v4191, %v4192
      %v4230 = vsel %vm2956, %v4214, %v4191
      %v4231 = vadd.f32 %v3818, %v4230
      %v4232 = vadd.f32 %v3819, %v4229
      %v4233 = vadd.f32 %v3820, %v4228
      %v4234 = vadd.f32 %v3821, %v4227
      %v4235 = vadd.f32 %v3822, %v4226
      %v4236 = vadd.f32 %v3823, %v4225
      %v4237 = vadd.f32 %v3824, %v4224
      %v4238 = vadd.f32 %v3825, %v4223
      %v4239 = vadd.f32 %v3826, %v4222
      %v4240 = vadd.f32 %v3827, %v4221
      %v4241 = vadd.f32 %v3828, %v4220
      %v4242 = vadd.f32 %v3829, %v4219
      %v4243 = vadd.f32 %v3830, %v4218
      %v4244 = vadd.f32 %v3831, %v4217
      %v4245 = vadd.f32 %v3832, %v4216
      %v4246 = vadd.f32 %v3833, %v4215
      %4263 = vrot.lane.b32.xlu0 %v4033, 120
      %v4264 = vpop.permute.xlu0 %4263
      %4265 = vrot.lane.b32.xlu0 %v4038, 120
      %v4266 = vpop.permute.xlu0 %4265
      %4267 = vrot.lane.b32.xlu0 %v4053, 120
      %v4268 = vpop.permute.xlu0 %4267
      %4269 = vrot.lane.b32.xlu0 %v4058, 120
      %v4270 = vpop.permute.xlu0 %4269
      %4271 = vrot.lane.b32.xlu0 %v4073, 120
      %v4272 = vpop.permute.xlu0 %4271
      %4273 = vrot.lane.b32.xlu0 %v4078, 120
      %v4274 = vpop.permute.xlu0 %4273
      %4275 = vrot.lane.b32.xlu0 %v4093, 120
      %v4276 = vpop.permute.xlu0 %4275
      %4277 = vrot.lane.b32.xlu0 %v4098, 120
      %v4278 = vpop.permute.xlu0 %4277
      %4279 = vrot.lane.b32.xlu0 %v4113, 120
      %v4280 = vpop.permute.xlu0 %4279
      %4281 = vrot.lane.b32.xlu0 %v4118, 120
      %v4282 = vpop.permute.xlu0 %4281
      %4283 = vrot.lane.b32.xlu0 %v4133, 120
      %v4284 = vpop.permute.xlu0 %4283
      %4285 = vrot.lane.b32.xlu0 %v4138, 120
      %v4286 = vpop.permute.xlu0 %4285
      %4287 = vrot.lane.b32.xlu0 %v4153, 120
      %v4288 = vpop.permute.xlu0 %4287
      %4289 = vrot.lane.b32.xlu0 %v4158, 120
      %v4290 = vpop.permute.xlu0 %4289
      %4291 = vrot.lane.b32.xlu0 %v4173, 120
      %v4292 = vpop.permute.xlu0 %4291
      %4293 = vrot.lane.b32.xlu0 %v4178, 120
      %v4294 = vpop.permute.xlu0 %4293
      %v4311 = vadd.f32 %v4231, %v4264
      %v4312 = vadd.f32 %v4232, %v4266
      %v4313 = vadd.f32 %v4233, %v4268
      %v4314 = vadd.f32 %v4234, %v4270
      %v4315 = vadd.f32 %v4235, %v4272
      %v4316 = vadd.f32 %v4236, %v4274
      %v4317 = vadd.f32 %v4237, %v4276
      %v4318 = vadd.f32 %v4238, %v4278
      %v4319 = vadd.f32 %v4239, %v4280
      %v4320 = vadd.f32 %v4240, %v4282
      %v4321 = vadd.f32 %v4241, %v4284
      %v4322 = vadd.f32 %v4242, %v4286
      %v4323 = vadd.f32 %v4243, %v4288
      %v4324 = vadd.f32 %v4244, %v4290
      %v4325 = vadd.f32 %v4245, %v4292
      %v4326 = vadd.f32 %v4246, %v4294
      %4335 = vrot.lane.b32.xlu0 %v4033, 112
      %v4336 = vpop.permute.xlu0 %4335
      %4337 = vrot.lane.b32.xlu0 %v4038, 112
      %v4338 = vpop.permute.xlu0 %4337
      %4339 = vrot.lane.b32.xlu0 %v4043, 112
      %v4340 = vpop.permute.xlu0 %4339
      %4341 = vrot.lane.b32.xlu0 %v4053, 112
      %v4342 = vpop.permute.xlu0 %4341
      %4343 = vrot.lane.b32.xlu0 %v4058, 112
      %v4344 = vpop.permute.xlu0 %4343
      %4345 = vrot.lane.b32.xlu0 %v4063, 112
      %v4346 = vpop.permute.xlu0 %4345
      %4347 = vrot.lane.b32.xlu0 %v4073, 112
      %v4348 = vpop.permute.xlu0 %4347
      %4349 = vrot.lane.b32.xlu0 %v4078, 112
      %v4350 = vpop.permute.xlu0 %4349
      %4351 = vrot.lane.b32.xlu0 %v4083, 112
      %v4352 = vpop.permute.xlu0 %4351
      %4353 = vrot.lane.b32.xlu0 %v4093, 112
      %v4354 = vpop.permute.xlu0 %4353
      %4355 = vrot.lane.b32.xlu0 %v4098, 112
      %v4356 = vpop.permute.xlu0 %4355
      %4357 = vrot.lane.b32.xlu0 %v4103, 112
      %v4358 = vpop.permute.xlu0 %4357
      %4359 = vrot.lane.b32.xlu0 %v4113, 112
      %v4360 = vpop.permute.xlu0 %4359
      %4361 = vrot.lane.b32.xlu0 %v4118, 112
      %v4362 = vpop.permute.xlu0 %4361
      %4363 = vrot.lane.b32.xlu0 %v4123, 112
      %v4364 = vpop.permute.xlu0 %4363
      %4365 = vrot.lane.b32.xlu0 %v4133, 112
      %v4366 = vpop.permute.xlu0 %4365
      %4367 = vrot.lane.b32.xlu0 %v4138, 112
      %v4368 = vpop.permute.xlu0 %4367
      %4369 = vrot.lane.b32.xlu0 %v4143, 112
      %v4370 = vpop.permute.xlu0 %4369
      %4371 = vrot.lane.b32.xlu0 %v4153, 112
      %v4372 = vpop.permute.xlu0 %4371
      %4373 = vrot.lane.b32.xlu0 %v4158, 112
      %v4374 = vpop.permute.xlu0 %4373
      %4375 = vrot.lane.b32.xlu0 %v4163, 112
      %v4376 = vpop.permute.xlu0 %4375
      %4377 = vrot.lane.b32.xlu0 %v4173, 112
      %v4378 = vpop.permute.xlu0 %4377
      %4379 = vrot.lane.b32.xlu0 %v4178, 112
      %v4380 = vpop.permute.xlu0 %4379
      %4381 = vrot.lane.b32.xlu0 %v4183, 112
      %v4382 = vpop.permute.xlu0 %4381
      %v4407 = vrot.slane %v4336, 1
      %v4408 = vrot.slane %v4338, 1
      %v4409 = vrot.slane %v4340, 1
      %v4410 = vrot.slane %v4342, 1
      %v4411 = vrot.slane %v4344, 1
      %v4412 = vrot.slane %v4346, 1
      %v4413 = vrot.slane %v4348, 1
      %v4414 = vrot.slane %v4350, 1
      %v4415 = vrot.slane %v4352, 1
      %v4416 = vrot.slane %v4354, 1
      %v4417 = vrot.slane %v4356, 1
      %v4418 = vrot.slane %v4358, 1
      %v4419 = vrot.slane %v4360, 1
      %v4420 = vrot.slane %v4362, 1
      %v4421 = vrot.slane %v4364, 1
      %v4422 = vrot.slane %v4366, 1
      %v4423 = vrot.slane %v4368, 1
      %v4424 = vrot.slane %v4370, 1
      %v4425 = vrot.slane %v4372, 1
      %v4426 = vrot.slane %v4374, 1
      %v4427 = vrot.slane %v4376, 1
      %v4428 = vrot.slane %v4378, 1
      %v4429 = vrot.slane %v4380, 1
      %v4430 = vrot.slane %v4382, 1
      %v4431 = vsel %vm3173, %v4429, %v4430
      %v4432 = vsel %vm3173, %v4428, %v4429
      %v4433 = vsel %vm3173, %v4426, %v4427
      %v4434 = vsel %vm3173, %v4425, %v4426
      %v4435 = vsel %vm3173, %v4423, %v4424
      %v4436 = vsel %vm3173, %v4422, %v4423
      %v4437 = vsel %vm3173, %v4420, %v4421
      %v4438 = vsel %vm3173, %v4419, %v4420
      %v4439 = vsel %vm3173, %v4417, %v4418
      %v4440 = vsel %vm3173, %v4416, %v4417
      %v4441 = vsel %vm3173, %v4414, %v4415
      %v4442 = vsel %vm3173, %v4413, %v4414
      %v4443 = vsel %vm3173, %v4411, %v4412
      %v4444 = vsel %vm3173, %v4410, %v4411
      %v4445 = vsel %vm3173, %v4408, %v4409
      %v4446 = vsel %vm3173, %v4407, %v4408
      %v4447 = vadd.f32 %v4311, %v4446
      %v4448 = vadd.f32 %v4312, %v4445
      %v4449 = vadd.f32 %v4313, %v4444
      %v4450 = vadd.f32 %v4314, %v4443
      %v4451 = vadd.f32 %v4315, %v4442
      %v4452 = vadd.f32 %v4316, %v4441
      %v4453 = vadd.f32 %v4317, %v4440
      %v4454 = vadd.f32 %v4318, %v4439
      %v4455 = vadd.f32 %v4319, %v4438
      %v4456 = vadd.f32 %v4320, %v4437
      %v4457 = vadd.f32 %v4321, %v4436
      %v4458 = vadd.f32 %v4322, %v4435
      %v4459 = vadd.f32 %v4323, %v4434
      %v4460 = vadd.f32 %v4324, %v4433
      %v4461 = vadd.f32 %v4325, %v4432
      %v4462 = vadd.f32 %v4326, %v4431
      %v4464 = vlaneseq
      %v4465 = vshrl.u32 %v4464, 7
      %v4466 = vsub.s32 0, %v4465
      %v4467 = vrot.slane %v847, %v4466
      %v4469 = vmul.f32 %v4447, %v4467
      %v4470 = vmul.f32 %v4448, %v4467
      %v4471 = vmul.f32 %v4449, %v4467
      %v4472 = vmul.f32 %v4450, %v4467
      %v4473 = vmul.f32 %v4451, %v4467
      %v4474 = vmul.f32 %v4452, %v4467
      %v4475 = vmul.f32 %v4453, %v4467
      %v4476 = vmul.f32 %v4454, %v4467
      %v4477 = vmul.f32 %v4455, %v4467
      %v4478 = vmul.f32 %v4456, %v4467
      %v4479 = vmul.f32 %v4457, %v4467
      %v4480 = vmul.f32 %v4458, %v4467
      %v4481 = vmul.f32 %v4459, %v4467
      %v4482 = vmul.f32 %v4460, %v4467
      %v4483 = vmul.f32 %v4461, %v4467
      %v4484 = vmul.f32 %v4462, %v4467
      %v4486 = vlaneseq
      %v4487 = vshrl.u32 %v4486, 7
      %v4488 = vsub.s32 0, %v4487
      %v4489 = vrot.slane %v848, %v4488
      %v4491 = vadd.f32 %v4469, %v4489
      %v4492 = vadd.f32 %v4470, %v4489
      %v4493 = vadd.f32 %v4471, %v4489
      %v4494 = vadd.f32 %v4472, %v4489
      %v4495 = vadd.f32 %v4473, %v4489
      %v4496 = vadd.f32 %v4474, %v4489
      %v4497 = vadd.f32 %v4475, %v4489
      %v4498 = vadd.f32 %v4476, %v4489
      %v4499 = vadd.f32 %v4477, %v4489
      %v4500 = vadd.f32 %v4478, %v4489
      %v4501 = vadd.f32 %v4479, %v4489
      %v4502 = vadd.f32 %v4480, %v4489
      %v4503 = vadd.f32 %v4481, %v4489
      %v4504 = vadd.f32 %v4482, %v4489
      %v4505 = vadd.f32 %v4483, %v4489
      %v4506 = vadd.f32 %v4484, %v4489
      %vm4507 = vcmask 64512
      %4508 = vst.msk [vmem:[%s826] sm:$0xff] %vm4507, %v4491
      %4509 = vst.msk [vmem:[%s826 + $0x8] sm:$0xff] %vm4507, %v4492
      %4510 = vst.msk [vmem:[%s826 + $0x10] sm:$0xff] %vm4507, %v4493
      %4511 = vst.msk [vmem:[%s826 + $0x18] sm:$0xff] %vm4507, %v4494
      %4512 = vst.msk [vmem:[%s826 + $0x20] sm:$0xff] %vm4507, %v4495
      %4513 = vst.msk [vmem:[%s826 + $0x28] sm:$0xff] %vm4507, %v4496
      %4514 = vst.msk [vmem:[%s826 + $0x30] sm:$0xff] %vm4507, %v4497
      %4515 = vst.msk [vmem:[%s826 + $0x38] sm:$0xff] %vm4507, %v4498
      %4516 = vst.msk [vmem:[%s826 + $0x40] sm:$0xff] %vm4507, %v4499
      %4517 = vst.msk [vmem:[%s826 + $0x48] sm:$0xff] %vm4507, %v4500
      %4518 = vst.msk [vmem:[%s826 + $0x50] sm:$0xff] %vm4507, %v4501
      %4519 = vst.msk [vmem:[%s826 + $0x58] sm:$0xff] %vm4507, %v4502
      %4520 = vst.msk [vmem:[%s826 + $0x60] sm:$0xff] %vm4507, %v4503
      %4521 = vst.msk [vmem:[%s826 + $0x68] sm:$0xff] %vm4507, %v4504
      %4522 = vst.msk [vmem:[%s826 + $0x70] sm:$0xff] %vm4507, %v4505
      %4523 = vst.msk [vmem:[%s826 + $0x78] sm:$0xff] %vm4507, %v4506
      %s4524 = smul.u32 8, %s40
      %p4525 = scmp.lt.s32.totalorder %s39, 1
      %s4526 = scalar_select %p4525, %s39, 1
      %p4527 = scmp.lt.s32.totalorder %s4524, 15
      %s4528 = scalar_select %p4527, %s4524, 15
      %s4529 = smul.addr %s4528, 2
      %s4530 = smul.addr %s4526, 32
      %s4531 = sadd.s32 %s4529, %s4530
      %s4532 = smul.addr %s4531, 8
      %s4533 = scalar_lea.vmem %s16, %s4532
      %s4534 = smul.u32 8, %s40
      %p4535 = scmp.lt.s32.totalorder %s39, 1
      %s4536 = scalar_select %p4535, %s39, 1
      %p4537 = scmp.lt.s32.totalorder %s4534, 15
      %s4538 = scalar_select %p4537, %s4534, 15
      %s4539 = smul.addr %s4538, 2
      %s4540 = smul.addr %s4536, 32
      %s4541 = sadd.s32 %s4539, %s4540
      %s4542 = smul.addr %s4541, 8
      %s4543 = scalar_lea.vmem %s17, %s4542
      // Predicated region
      $region81: #{_lambda_.1} parent=79 // pred_check
        %p4544 = pneg %p446
      $region82: #{_lambda_.1} parent=79 // pred_check_branch
        %4546 = sbr.rel (%p4544) target = $region84
      $region83: #{_lambda_.1} parent=79 // pred_region
        %s4547 = smul.u32 8, %s40
      $region84: #{_lambda_.1} parent=79 // pred_fallthru
        _
      // Predicated region
      $region85: #{_lambda_.1} parent=79 // pred_check
        %p4548 = pneg %p474
      $region86: #{_lambda_.1} parent=79 // pred_check_branch
        %4550 = sbr.rel (%p4548) target = $region88
      $region87: #{_lambda_.1} parent=79 // pred_region
        %s4551 = smul.u32 8, %s40
      $region88: #{_lambda_.1} parent=79 // pred_fallthru
        _
    $region80: #{_lambda_.1} parent=5 // pred_fallthru
      _
    %p4552 = scmp.le.s32.totalorder 2, %s30
    // Predicated region
    $region89: #{_lambda_.1} parent=5 // pred_check
      %p4553 = pneg %p4552
    $region90: #{_lambda_.1} parent=5 // pred_check_branch
      %4555 = sbr.rel (%p4553) target = $region92
    $region91: #{_lambda_.1} parent=5 // pred_region
      %s4556 = ssub.s32 %s30, 2
      // Predicated region
      $region93: #{_lambda_.1} parent=91 // pred_check
        %p4557 = pneg %p452
      $region94: #{_lambda_.1} parent=91 // pred_check_branch
        %4559 = sbr.rel (%p4557) target = $region96
      $region95: #{_lambda_.1} parent=91 // pred_region
        %s4560 = smul.u32 8, %s42
        %p4561 = scmp.lt.s32.totalorder %s41, 1
        %s4562 = scalar_select %p4561, %s41, 1
        %p4563 = scmp.lt.s32.totalorder %s4560, 15
        %s4564 = scalar_select %p4563, %s4560, 15
        %s4565 = smul.addr %s4564, 2
        %s4566 = smul.addr %s4562, 32
        %s4567 = sadd.s32 %s4565, %s4566
        %s4568 = smul.addr %s4567, 8
        %s4569 = scalar_lea.vmem %s16, %s4568
      $region96: #{_lambda_.1} parent=91 // pred_fallthru
        _
      // Predicated region
      $region97: #{_lambda_.1} parent=91 // pred_check
        %p4570 = pneg %p480
      $region98: #{_lambda_.1} parent=91 // pred_check_branch
        %4572 = sbr.rel (%p4570) target = $region100
      $region99: #{_lambda_.1} parent=91 // pred_region
        %s4573 = smul.u32 8, %s42
        %p4574 = scmp.lt.s32.totalorder %s41, 1
        %s4575 = scalar_select %p4574, %s41, 1
        %p4576 = scmp.lt.s32.totalorder %s4573, 15
        %s4577 = scalar_select %p4576, %s4573, 15
        %s4578 = smul.addr %s4577, 2
        %s4579 = smul.addr %s4575, 32
        %s4580 = sadd.s32 %s4578, %s4579
        %s4581 = smul.addr %s4580, 8
        %s4582 = scalar_lea.vmem %s17, %s4581
      $region100: #{_lambda_.1} parent=91 // pred_fallthru
        _
    $region92: #{_lambda_.1} parent=5 // pred_fallthru
      _
  $region6: #{_lambda_.1} parent=0 // loop_footer
    %s34 = sadd.s32 1, %s30
  $region7: #{_lambda_.1} parent=0 // loop_footer_branch
    %29 = sbr.rel target = $region3
  $region8: #{_lambda_.1} parent=0 // loop_exit
    _

</llo_original>
